<compile_context>
chip_gen: v5e
topology: v5e:2x2
jax: 0.10.0
libtpu: 0.0.40
codegen_flags: <defaults>
</compile_context>

<pallas_src>
import functools

import numpy as np
import jax
import jax.numpy as jnp
from jax.experimental import pallas as pl
from jax.experimental.pallas import tpu as pltpu

EPS = 1e-5
_TAPS = tuple((dy, dx) for dy in (-1, 0, 1) for dx in (-1, 0, 1))   # t = ky*3 + kx


# ---------------------------------------------------------------------------
# Fused kernel: one grid step == one image; everything stays on-chip.
# ---------------------------------------------------------------------------
def _downup_kernel(x_ref, masks_ref,
                   s0_ref, b0_ref, w0t_ref,
                   wf12_ref, bf1_ref, bf2_ref, g1_ref, g2_ref,
                   wf3_ref, bf3_ref, wdw_ref, sel_ref,
                   u2_ref, u4_ref,
                   sp1_ref, bp1_ref, wc1_ref,
                   sp2_ref, bp2_ref, wc2_ref,
                   sp3_ref, bp3_ref, wc3_ref,
                   scc_ref, bcc_ref, wct_ref,
                   ss_ref, bs_ref, wsct_ref,
                   o_ref, *, H, W, Cp, inv_k1, inv_k2):
    f32, bf16 = jnp.float32, jnp.bfloat16
    HW = H * W

    x = x_ref[0]                                  # (C, HW) f32
    xb = x.astype(bf16)
    masks = masks_ref[...]                        # (9, HW) f32, 0/1 boundary masks
    mrow = [masks[t:t + 1] for t in range(9)]     # hoisted once, reused everywhere

    def rolled(v, t):
        # b[c, q] = v[c, q + dy*W + dx] if spatially in-bounds else 0 (zero pad).
        dy, dx = _TAPS[t]
        d = dy * W + dx
        if d == 0:
            return v
        return pltpu.roll(v, shift=(-d) % HW, axis=1) * mrow[t]

    # --- scale0 : BN -> ReLU -> 1x1 ----------------------------------------
    a0 = jnp.maximum(x * s0_ref[...] + b0_ref[...], 0.0).astype(bf16)
    y0 = jnp.dot(w0t_ref[...], a0, preferred_element_type=f32)            # (Cp, HW)

    # --- scale1/scale2 : stacked folded-BN 1x1 (one MXU pass) + avg-pool GEMM
    t12 = jnp.dot(wf12_ref[...], xb, preferred_element_type=f32)          # (2Cp, HW)
    s1 = jnp.dot(t12[:Cp].astype(bf16), g1_ref[...],
                 preferred_element_type=f32) * inv_k1 + bf1_ref[...]      # (Cp, S1)
    s2 = jnp.dot(t12[Cp:].astype(bf16), g2_ref[...],
                 preferred_element_type=f32) * inv_k2 + bf2_ref[...]      # (Cp, S2)

    # --- scale3 : depthwise 3x3 (9 rolled VPU MACs) -> folded-BN 1x1 -> stride-2
    d_full = x * wdw_ref[4]
    for t in range(9):
        if t == 4:
            continue
        d_full = d_full + wdw_ref[t] * rolled(x, t)
    t3 = jnp.dot(wf3_ref[...], d_full.astype(bf16), preferred_element_type=f32)
    s3 = jnp.dot(t3.astype(bf16), sel_ref[...],
                 preferred_element_type=f32) + bf3_ref[...]               # (Cp, S1)

    # --- process_k : nearest-up (GEMM) + residual -> BN -> ReLU -> 3x3 conv
    # The 3x3 conv is ONE (9*Cp, Cp) x (Cp, HW) matmul; the 9 per-tap partial
    # outputs are then rolled/masked and summed in f32.  No 9*Cp-row tap stack
    # of the activation is ever materialized.
    def process(s_small, u_ref, y_prev, sp_ref, bp_ref, wst_ref):
        up = jnp.dot(s_small.astype(bf16), u_ref[...], preferred_element_type=f32)
        a = jnp.maximum((up + y_prev) * sp_ref[...] + bp_ref[...], 0.0).astype(bf16)
        u_all = jnp.dot(wst_ref[...], a, preferred_element_type=f32)      # (9Cp, HW)
        out = u_all[4 * Cp:5 * Cp]
        for t in range(9):
            if t == 4:
                continue
            out = out + rolled(u_all[t * Cp:(t + 1) * Cp], t)
        return out                                                        # (Cp, HW)

    y1 = process(s1, u2_ref, y0, sp1_ref, bp1_ref, wc1_ref)
    y2 = process(s2, u4_ref, y1, sp2_ref, bp2_ref, wc2_ref)
    y3 = process(s3, u2_ref, y2, sp3_ref, bp3_ref, wc3_ref)

    # --- compression(cat(y0..y3)) + shortcut(x), concat in-register --------
    ycat = jnp.concatenate([y0, y1, y2, y3], axis=0)                      # (4Cp, HW)
    ac = jnp.maximum(ycat * scc_ref[...] + bcc_ref[...], 0.0).astype(bf16)
    ax = jnp.maximum(x * ss_ref[...] + bs_ref[...], 0.0).astype(bf16)
    o_ref[0] = (jnp.dot(wct_ref[...], ac, preferred_element_type=f32) +
                jnp.dot(wsct_ref[...], ax, preferred_element_type=f32))


# ---------------------------------------------------------------------------
# pallas_call wrapper
# ---------------------------------------------------------------------------
def _rep(arr):
    nd = arr.ndim
    return pl.BlockSpec(arr.shape, lambda *_: (0,) * nd)


def down_up_bone_forward(x_nchw, prep):
    N, C, H, W = x_nchw.shape
    HW = H * W
    xf = x_nchw.reshape(N, C, HW).astype(jnp.float32)   # NCHW: just flatten spatial
    Cp = prep['w0t'].shape[0]
    Cout = prep['wsct'].shape[0]

    kern = functools.partial(_downup_kernel, H=H, W=W, Cp=Cp,
                             inv_k1=1.0 / 25.0, inv_k2=1.0 / 81.0)

    args = (xf, prep['masks'],
            prep['s0'], prep['b0'], prep['w0t'],
            prep['wf12'], prep['bf1'], prep['bf2'], prep['g1'], prep['g2'],
            prep['wf3'], prep['bf3'], prep['wdw9'], prep['sel'],
            prep['u2'], prep['u4'],
            prep['sp1'], prep['bp1'], prep['wc1'],
            prep['sp2'], prep['bp2'], prep['wc2'],
            prep['sp3'], prep['bp3'], prep['wc3'],
            prep['scc'], prep['bcc'], prep['wct'],
            prep['ss'], prep['bs'], prep['wsct'])

    in_specs = [pl.BlockSpec((1, C, HW), lambda n: (n, 0, 0))] + \
               [_rep(a) for a in args[1:]]

    # TODO(synk): for large H*W the O(HW^2) pool/upsample/selection constants and
    # whole-image blocks must be replaced by row-tiled pipelines with 1-row halos
    # (and single-buffered constants) to respect v7x's 64 MiB VMEM.
    # TODO(synk): for N == 1 on v7x, add a second parallel grid axis (lane split)
    # so both TensorCores are used; with N >= 2 the batch axis already covers it.
    out = pl.pallas_call(
        kern, grid=(N,),
        in_specs=in_specs,
        out_specs=pl.BlockSpec((1, Cout, HW), lambda n: (n, 0, 0)),
        out_shape=jax.ShapeDtypeStruct((N, Cout, HW), jnp.float32),
        compiler_params=pltpu.CompilerParams(
            dimension_semantics=("parallel",),
            vmem_limit_bytes=32 * 1024 * 1024),
    )(*args)
    return out.reshape(N, Cout, H, W)


# ---------------------------------------------------------------------------
# One-time constant / parameter preparation (never rebuilt per forward call)
# ---------------------------------------------------------------------------
def _pool_matrix01(H, W, k, s, p):
    # nn.AvgPool2d(k, s, p), count_include_pad=True; 0/1 entries (exact in bf16),
    # the 1/k^2 factor is applied in f32 inside the kernel.
    Ho = (H + 2 * p - k) // s + 1
    Wo = (W + 2 * p - k) // s + 1
    g = np.zeros((H * W, Ho * Wo), np.float32)
    for ho in range(Ho):
        for wo in range(Wo):
            for hh in range(s * ho - p, s * ho - p + k):
                if hh < 0 or hh >= H:
                    continue
                for ww in range(s * wo - p, s * wo - p + k):
                    if ww < 0 or ww >= W:
                        continue
                    g[hh * W + ww, ho * Wo + wo] = 1.0
    return g


def _upsample_matrix(H, W, f):
    Hs, Ws = H // f, W // f
    u = np.zeros((Hs * Ws, H * W), np.float32)
    for h in range(H):
        for w in range(W):
            u[(h // f) * Ws + (w // f), h * W + w] = 1.0
    return u


def _stride2_select(H, W):
    Ho, Wo = H // 2, W // 2
    sel = np.zeros((H * W, Ho * Wo), np.float32)
    for ho in range(Ho):
        for wo in range(Wo):
            sel[(2 * ho) * W + 2 * wo, ho * Wo + wo] = 1.0
    return sel


def _tap_masks(H, W):
    # masks[t, h*W + w] = 1 iff (h + dy, w + dx) is in-bounds for tap t.
    m = np.zeros((9, H * W), np.float32)
    for t, (dy, dx) in enumerate(_TAPS):
        for h in range(H):
            for w in range(W):
                if 0 <= h + dy < H and 0 <= w + dx < W:
                    m[t, h * W + w] = 1.0
    return m


def prepare_params(p, inplanes, H, W):
    C = inplanes
    assert p['w_sc'].shape[1] == p['w_c'].shape[1], \
        "residual add requires out_channel == inplanes"

    def fold(bn):
        g, b, m, v = bn
        s = g / jnp.sqrt(v + EPS)
        return s, b - m * s

    def col(a):
        return jnp.asarray(a, jnp.float32).reshape(-1, 1)

    def bf(a):
        return jnp.asarray(a, jnp.bfloat16)

    def fold_into_w(bn, w1x1):            # conv1x1(BN(x)), no ReLU in between
        s, b = fold(bn)
        wt = w1x1.T                        # (Cout, Cin)
        return wt * s[None, :], col(wt @ b)

    def conv9_stacked(w3):                 # (3,3,Ci,Co) -> (9*Co, Ci), tap-major rows
        co = w3.shape[-1]
        ci = w3.shape[-2]
        return bf(jnp.transpose(w3, (0, 1, 3, 2)).reshape(9 * co, ci))

    s0, b0 = fold(p['bn0'])
    wf1, bf1 = fold_into_w(p['bn1'], p['w_s1'])
    wf2, bf2 = fold_into_w(p['bn2'], p['w_s2'])
    wf3, bf3 = fold_into_w(p['bn3'], p['w_s3'])
    sp1, bp1 = fold(p['bnp1'])
    sp2, bp2 = fold(p['bnp2'])
    sp3, bp3 = fold(p['bnp3'])
    scc, bcc = fold(p['bnc'])
    ss, bs = fold(p['bns'])

    return dict(
        masks=jnp.asarray(_tap_masks(H, W), jnp.float32),
        s0=col(s0), b0=col(b0), w0t=bf(p['w_s0'].T),
        wf12=bf(jnp.concatenate([wf1, wf2], axis=0)), bf1=bf1, bf2=bf2,
        g1=jnp.asarray(_pool_matrix01(H, W, 5, 2, 2), jnp.bfloat16),
        g2=jnp.asarray(_pool_matrix01(H, W, 9, 4, 4), jnp.bfloat16),
        wf3=bf(wf3), bf3=bf3,
        wdw9=jnp.asarray(p['w_dw'], jnp.float32).reshape(9, C, 1),
        sel=jnp.asarray(_stride2_select(H, W), jnp.bfloat16),
        u2=jnp.asarray(_upsample_matrix(H, W, 2), jnp.bfloat16),
        u4=jnp.asarray(_upsample_matrix(H, W, 4), jnp.bfloat16),
        sp1=col(sp1), bp1=col(bp1), wc1=conv9_stacked(p['w_p1']),
        sp2=col(sp2), bp2=col(bp2), wc2=conv9_stacked(p['w_p2']),
        sp3=col(sp3), bp3=col(bp3), wc3=conv9_stacked(p['w_p3']),
        scc=col(scc), bcc=col(bcc), wct=bf(p['w_c'].T),
        ss=col(ss), bs=col(bs), wsct=bf(p['w_sc'].T),
    )


# ---------------------------------------------------------------------------
# Pure-JAX reference (independent path for verification)
# ---------------------------------------------------------------------------
def down_up_bone_ref(x_nchw, p):
    x = jnp.transpose(x_nchw, (0, 2, 3, 1)).astype(jnp.float32)

    def bn_(t, bn):
        g, b, m, v = bn
        return (t - m) / jnp.sqrt(v + EPS) * g + b

    def c1(t, w):
        return jnp.einsum('nhwc,cd->nhwd', t, w)

    def c3(t, w, stride=1, pad=1, groups=1):
        return jax.lax.conv_general_dilated(
            t, w, (stride, stride), [(pad, pad), (pad, pad)],
            dimension_numbers=('NHWC', 'HWIO', 'NHWC'), feature_group_count=groups)

    def ap(t, k, s, pd):
        tp = jnp.pad(t, ((0, 0), (pd, pd), (pd, pd), (0, 0)))
        sm = jax.lax.reduce_window(tp, 0.0, jax.lax.add, (1, k, k, 1), (1, s, s, 1), 'VALID')
        return sm / float(k * k)

    def up(t, f):
        return jnp.repeat(jnp.repeat(t, f, axis=1), f, axis=2)

    x0 = c1(jnp.maximum(bn_(x, p['bn0']), 0), p['w_s0'])
    s1 = c1(bn_(ap(x, 5, 2, 2), p['bn1']), p['w_s1'])
    x1 = c3(jnp.maximum(bn_(up(s1, 2) + x0, p['bnp1']), 0), p['w_p1'])
    s2 = c1(bn_(ap(x, 9, 4, 4), p['bn2']), p['w_s2'])
    x2 = c3(jnp.maximum(bn_(up(s2, 4) + x1, p['bnp2']), 0), p['w_p2'])
    dw = c3(x, p['w_dw'].reshape(3, 3, 1, -1), stride=2, pad=1, groups=x.shape[-1])
    s3 = c1(bn_(dw, p['bn3']), p['w_s3'])
    x3 = c3(jnp.maximum(bn_(up(s3, 2) + x2, p['bnp3']), 0), p['w_p3'])
    cat = jnp.concatenate([x0, x1, x2, x3], axis=-1)
    comp = c1(jnp.maximum(bn_(cat, p['bnc']), 0), p['w_c'])
    sc = c1(jnp.maximum(bn_(x, p['bns']), 0), p['w_sc'])
    return jnp.transpose(comp + sc, (0, 3, 1, 2))


# ---------------------------------------------------------------------------
# Deterministic parameter initialization (shapes from DownUpBone.__init__)
# ---------------------------------------------------------------------------
def init_params(key, inplanes, out_channel):
    outp = inplanes // 2
    ks = iter(jax.random.split(key, 64))

    def bn(c):
        g = 1.0 + 0.1 * jax.random.normal(next(ks), (c,), jnp.float32)
        b = 0.1 * jax.random.normal(next(ks), (c,), jnp.float32)
        m = 0.1 * jax.random.normal(next(ks), (c,), jnp.float32)
        v = jax.random.uniform(next(ks), (c,), jnp.float32, 0.5, 1.5)
        return (g, b, m, v)

    def conv1x1(ci, co):
        return jax.random.normal(next(ks), (ci, co), jnp.float32) / jnp.sqrt(ci)

    def conv3x3(ci, co):
        return jax.random.normal(next(ks), (3, 3, ci, co), jnp.float32) / jnp.sqrt(9.0 * ci)

    return dict(
        bn0=bn(inplanes), w_s0=conv1x1(inplanes, outp),
        bn1=bn(inplanes), w_s1=conv1x1(inplanes, outp),
        bn2=bn(inplanes), w_s2=conv1x1(inplanes, outp),
        w_dw=jax.random.normal(next(ks), (3, 3, inplanes), jnp.float32) / 3.0,
        bn3=bn(inplanes), w_s3=conv1x1(inplanes, outp),
        bnp1=bn(outp), w_p1=conv3x3(outp, outp),
        bnp2=bn(outp), w_p2=conv3x3(outp, outp),
        bnp3=bn(outp), w_p3=conv3x3(outp, outp),
        bnc=bn(4 * outp), w_c=conv1x1(4 * outp, inplanes),
        bns=bn(inplanes), w_sc=conv1x1(inplanes, out_channel),
    )


if __name__ == "__main__":
    N, inplanes, H, W = 2, 16, 16, 16
    out_channel = inplanes  # forward() adds compression (inplanes) + shortcut (out_channel)

    key = jax.random.PRNGKey(0)
    kx, kp = jax.random.split(key)
    x = jax.random.normal(kx, (N, inplanes, H, W), jnp.float32)
    params = init_params(kp, inplanes, out_channel)
    prep = prepare_params(params, inplanes, H, W)   # one-time folding / constants

    fwd = jax.jit(down_up_bone_forward)
    out = jax.block_until_ready(fwd(x, prep))
    assert out.shape == (N, inplanes, H, W)

    ref = jax.block_until_ready(down_up_bone_ref(x, params))
    np.testing.assert_allclose(np.asarray(out), np.asarray(ref), rtol=5e-2, atol=5e-2)
    print("KERNEL_OK")
</pallas_src>

<mosaic_0001>
module attributes {stable_mosaic.version = 11 : i64} {
  func.func @_downup_kernel(%arg0: i32, %arg1: memref<1x16x256xf32, #tpu.memory_space<vmem>>, %arg2: memref<9x256xf32, #tpu.memory_space<vmem>>, %arg3: memref<16x1xf32, #tpu.memory_space<vmem>>, %arg4: memref<16x1xf32, #tpu.memory_space<vmem>>, %arg5: memref<8x16xbf16, #tpu.memory_space<vmem>>, %arg6: memref<16x16xbf16, #tpu.memory_space<vmem>>, %arg7: memref<8x1xf32, #tpu.memory_space<vmem>>, %arg8: memref<8x1xf32, #tpu.memory_space<vmem>>, %arg9: memref<256x64xbf16, #tpu.memory_space<vmem>>, %arg10: memref<256x16xbf16, #tpu.memory_space<vmem>>, %arg11: memref<8x16xbf16, #tpu.memory_space<vmem>>, %arg12: memref<8x1xf32, #tpu.memory_space<vmem>>, %arg13: memref<9x16x1xf32, #tpu.memory_space<vmem>>, %arg14: memref<256x64xbf16, #tpu.memory_space<vmem>>, %arg15: memref<64x256xbf16, #tpu.memory_space<vmem>>, %arg16: memref<16x256xbf16, #tpu.memory_space<vmem>>, %arg17: memref<8x1xf32, #tpu.memory_space<vmem>>, %arg18: memref<8x1xf32, #tpu.memory_space<vmem>>, %arg19: memref<72x8xbf16, #tpu.memory_space<vmem>>, %arg20: memref<8x1xf32, #tpu.memory_space<vmem>>, %arg21: memref<8x1xf32, #tpu.memory_space<vmem>>, %arg22: memref<72x8xbf16, #tpu.memory_space<vmem>>, %arg23: memref<8x1xf32, #tpu.memory_space<vmem>>, %arg24: memref<8x1xf32, #tpu.memory_space<vmem>>, %arg25: memref<72x8xbf16, #tpu.memory_space<vmem>>, %arg26: memref<32x1xf32, #tpu.memory_space<vmem>>, %arg27: memref<32x1xf32, #tpu.memory_space<vmem>>, %arg28: memref<16x32xbf16, #tpu.memory_space<vmem>>, %arg29: memref<16x1xf32, #tpu.memory_space<vmem>>, %arg30: memref<16x1xf32, #tpu.memory_space<vmem>>, %arg31: memref<16x16xbf16, #tpu.memory_space<vmem>>, %arg32: memref<1x16x256xf32, #tpu.memory_space<vmem>>) attributes {dimension_semantics = [#tpu.dimension_semantics<parallel>], iteration_bounds = array<i64: 2>, scalar_prefetch = 0 : i64, scratch_operands = 0 : i64, tpu.core_type = #tpu.core_type<tc>, window_params = [{transform_indices = @transform_0, window_bounds = array<i64: 1, 16, 256>}, {pipeline_mode = #tpu.pipeline_mode<synchronous>, transform_indices = @transform_1, window_bounds = array<i64: 9, 256>}, {pipeline_mode = #tpu.pipeline_mode<synchronous>, transform_indices = @transform_2, window_bounds = array<i64: 16, 1>}, {pipeline_mode = #tpu.pipeline_mode<synchronous>, transform_indices = @transform_3, window_bounds = array<i64: 16, 1>}, {pipeline_mode = #tpu.pipeline_mode<synchronous>, transform_indices = @transform_4, window_bounds = array<i64: 8, 16>}, {pipeline_mode = #tpu.pipeline_mode<synchronous>, transform_indices = @transform_5, window_bounds = array<i64: 16, 16>}, {pipeline_mode = #tpu.pipeline_mode<synchronous>, transform_indices = @transform_6, window_bounds = array<i64: 8, 1>}, {pipeline_mode = #tpu.pipeline_mode<synchronous>, transform_indices = @transform_7, window_bounds = array<i64: 8, 1>}, {pipeline_mode = #tpu.pipeline_mode<synchronous>, transform_indices = @transform_8, window_bounds = array<i64: 256, 64>}, {pipeline_mode = #tpu.pipeline_mode<synchronous>, transform_indices = @transform_9, window_bounds = array<i64: 256, 16>}, {pipeline_mode = #tpu.pipeline_mode<synchronous>, transform_indices = @transform_10, window_bounds = array<i64: 8, 16>}, {pipeline_mode = #tpu.pipeline_mode<synchronous>, transform_indices = @transform_11, window_bounds = array<i64: 8, 1>}, {pipeline_mode = #tpu.pipeline_mode<synchronous>, transform_indices = @transform_12, window_bounds = array<i64: 9, 16, 1>}, {pipeline_mode = #tpu.pipeline_mode<synchronous>, transform_indices = @transform_13, window_bounds = array<i64: 256, 64>}, {pipeline_mode = #tpu.pipeline_mode<synchronous>, transform_indices = @transform_14, window_bounds = array<i64: 64, 256>}, {pipeline_mode = #tpu.pipeline_mode<synchronous>, transform_indices = @transform_15, window_bounds = array<i64: 16, 256>}, {pipeline_mode = #tpu.pipeline_mode<synchronous>, transform_indices = @transform_16, window_bounds = array<i64: 8, 1>}, {pipeline_mode = #tpu.pipeline_mode<synchronous>, transform_indices = @transform_17, window_bounds = array<i64: 8, 1>}, {pipeline_mode = #tpu.pipeline_mode<synchronous>, transform_indices = @transform_18, window_bounds = array<i64: 72, 8>}, {pipeline_mode = #tpu.pipeline_mode<synchronous>, transform_indices = @transform_19, window_bounds = array<i64: 8, 1>}, {pipeline_mode = #tpu.pipeline_mode<synchronous>, transform_indices = @transform_20, window_bounds = array<i64: 8, 1>}, {pipeline_mode = #tpu.pipeline_mode<synchronous>, transform_indices = @transform_21, window_bounds = array<i64: 72, 8>}, {pipeline_mode = #tpu.pipeline_mode<synchronous>, transform_indices = @transform_22, window_bounds = array<i64: 8, 1>}, {pipeline_mode = #tpu.pipeline_mode<synchronous>, transform_indices = @transform_23, window_bounds = array<i64: 8, 1>}, {pipeline_mode = #tpu.pipeline_mode<synchronous>, transform_indices = @transform_24, window_bounds = array<i64: 72, 8>}, {pipeline_mode = #tpu.pipeline_mode<synchronous>, transform_indices = @transform_25, window_bounds = array<i64: 32, 1>}, {pipeline_mode = #tpu.pipeline_mode<synchronous>, transform_indices = @transform_26, window_bounds = array<i64: 32, 1>}, {pipeline_mode = #tpu.pipeline_mode<synchronous>, transform_indices = @transform_27, window_bounds = array<i64: 16, 32>}, {pipeline_mode = #tpu.pipeline_mode<synchronous>, transform_indices = @transform_28, window_bounds = array<i64: 16, 1>}, {pipeline_mode = #tpu.pipeline_mode<synchronous>, transform_indices = @transform_29, window_bounds = array<i64: 16, 1>}, {pipeline_mode = #tpu.pipeline_mode<synchronous>, transform_indices = @transform_30, window_bounds = array<i64: 16, 16>}, {transform_indices = @transform_31, window_bounds = array<i64: 1, 16, 256>}]} {
    %c0 = arith.constant 0 : index
    %c0_0 = arith.constant 0 : index
    %c0_1 = arith.constant 0 : index
    %0 = vector.load %arg1[%c0, %c0_0, %c0_1] : memref<1x16x256xf32, #tpu.memory_space<vmem>>, vector<1x16x256xf32>
    %1 = vector.shape_cast %0 : vector<1x16x256xf32> to vector<16x256xf32>
    %2 = arith.truncf %1 : vector<16x256xf32> to vector<16x256xbf16>
    %c0_2 = arith.constant 0 : index
    %c0_3 = arith.constant 0 : index
    %3 = vector.load %arg2[%c0_2, %c0_3] : memref<9x256xf32, #tpu.memory_space<vmem>>, vector<9x256xf32>
    %4 = vector.extract_strided_slice %3 {offsets = [0, 0], sizes = [1, 256], strides = [1, 1]} : vector<9x256xf32> to vector<1x256xf32>
    %5 = vector.extract_strided_slice %3 {offsets = [1, 0], sizes = [1, 256], strides = [1, 1]} : vector<9x256xf32> to vector<1x256xf32>
    %6 = vector.extract_strided_slice %3 {offsets = [2, 0], sizes = [1, 256], strides = [1, 1]} : vector<9x256xf32> to vector<1x256xf32>
    %7 = vector.extract_strided_slice %3 {offsets = [3, 0], sizes = [1, 256], strides = [1, 1]} : vector<9x256xf32> to vector<1x256xf32>
    %8 = vector.extract_strided_slice %3 {offsets = [5, 0], sizes = [1, 256], strides = [1, 1]} : vector<9x256xf32> to vector<1x256xf32>
    %9 = vector.extract_strided_slice %3 {offsets = [6, 0], sizes = [1, 256], strides = [1, 1]} : vector<9x256xf32> to vector<1x256xf32>
    %10 = vector.extract_strided_slice %3 {offsets = [7, 0], sizes = [1, 256], strides = [1, 1]} : vector<9x256xf32> to vector<1x256xf32>
    %11 = vector.extract_strided_slice %3 {offsets = [8, 0], sizes = [1, 256], strides = [1, 1]} : vector<9x256xf32> to vector<1x256xf32>
    %c0_4 = arith.constant 0 : index
    %c0_5 = arith.constant 0 : index
    %12 = vector.load %arg3[%c0_4, %c0_5] : memref<16x1xf32, #tpu.memory_space<vmem>>, vector<16x1xf32>
    %13 = vector.broadcast %12 : vector<16x1xf32> to vector<16x256xf32>
    %14 = arith.mulf %1, %13 : vector<16x256xf32>
    %c0_6 = arith.constant 0 : index
    %c0_7 = arith.constant 0 : index
    %15 = vector.load %arg4[%c0_6, %c0_7] : memref<16x1xf32, #tpu.memory_space<vmem>>, vector<16x1xf32>
    %16 = vector.broadcast %15 : vector<16x1xf32> to vector<16x256xf32>
    %17 = arith.addf %14, %16 : vector<16x256xf32>
    %cst = arith.constant 0.000000e+00 : f32
    %18 = vector.broadcast %cst : f32 to vector<16x256xf32>
    %19 = arith.maximumf %17, %18 : vector<16x256xf32>
    %20 = arith.truncf %19 : vector<16x256xf32> to vector<16x256xbf16>
    %c0_8 = arith.constant 0 : index
    %c0_9 = arith.constant 0 : index
    %21 = vector.load %arg5[%c0_8, %c0_9] : memref<8x16xbf16, #tpu.memory_space<vmem>>, vector<8x16xbf16>
    %cst_10 = arith.constant dense<0.000000e+00> : vector<8x256xf32>
    %22 = tpu.matmul %21, %20, %cst_10 {dimension_numbers = #tpu.dot_dimension_numbers<[1], [0], [0], [1], [0, 0, 1, 1], [], []>} : vector<8x16xbf16>, vector<16x256xbf16>, vector<8x256xf32> -> vector<8x256xf32>
    %c0_11 = arith.constant 0 : index
    %c0_12 = arith.constant 0 : index
    %23 = vector.load %arg6[%c0_11, %c0_12] : memref<16x16xbf16, #tpu.memory_space<vmem>>, vector<16x16xbf16>
    %cst_13 = arith.constant dense<0.000000e+00> : vector<16x256xf32>
    %24 = tpu.matmul %23, %2, %cst_13 {dimension_numbers = #tpu.dot_dimension_numbers<[1], [0], [0], [1], [0, 0, 1, 1], [], []>} : vector<16x16xbf16>, vector<16x256xbf16>, vector<16x256xf32> -> vector<16x256xf32>
    %25 = vector.extract_strided_slice %24 {offsets = [0, 0], sizes = [8, 256], strides = [1, 1]} : vector<16x256xf32> to vector<8x256xf32>
    %26 = arith.truncf %25 : vector<8x256xf32> to vector<8x256xbf16>
    %c0_14 = arith.constant 0 : index
    %c0_15 = arith.constant 0 : index
    %27 = vector.load %arg9[%c0_14, %c0_15] : memref<256x64xbf16, #tpu.memory_space<vmem>>, vector<256x64xbf16>
    %cst_16 = arith.constant dense<0.000000e+00> : vector<8x64xf32>
    %28 = tpu.matmul %26, %27, %cst_16 {dimension_numbers = #tpu.dot_dimension_numbers<[1], [0], [0], [1], [0, 0, 1, 1], [], []>} : vector<8x256xbf16>, vector<256x64xbf16>, vector<8x64xf32> -> vector<8x64xf32>
    %cst_17 = arith.constant 4.000000e-02 : f32
    %29 = vector.broadcast %cst_17 : f32 to vector<8x64xf32>
    %30 = arith.mulf %28, %29 : vector<8x64xf32>
    %c0_18 = arith.constant 0 : index
    %c0_19 = arith.constant 0 : index
    %31 = vector.load %arg7[%c0_18, %c0_19] : memref<8x1xf32, #tpu.memory_space<vmem>>, vector<8x1xf32>
    %32 = vector.broadcast %31 : vector<8x1xf32> to vector<8x64xf32>
    %33 = arith.addf %30, %32 : vector<8x64xf32>
    %34 = vector.extract_strided_slice %24 {offsets = [8, 0], sizes = [8, 256], strides = [1, 1]} : vector<16x256xf32> to vector<8x256xf32>
    %35 = arith.truncf %34 : vector<8x256xf32> to vector<8x256xbf16>
    %c0_20 = arith.constant 0 : index
    %c0_21 = arith.constant 0 : index
    %36 = vector.load %arg10[%c0_20, %c0_21] : memref<256x16xbf16, #tpu.memory_space<vmem>>, vector<256x16xbf16>
    %cst_22 = arith.constant dense<0.000000e+00> : vector<8x16xf32>
    %37 = tpu.matmul %35, %36, %cst_22 {dimension_numbers = #tpu.dot_dimension_numbers<[1], [0], [0], [1], [0, 0, 1, 1], [], []>} : vector<8x256xbf16>, vector<256x16xbf16>, vector<8x16xf32> -> vector<8x16xf32>
    %cst_23 = arith.constant 0.0123456791 : f32
    %38 = vector.broadcast %cst_23 : f32 to vector<8x16xf32>
    %39 = arith.mulf %37, %38 : vector<8x16xf32>
    %c0_24 = arith.constant 0 : index
    %c0_25 = arith.constant 0 : index
    %40 = vector.load %arg8[%c0_24, %c0_25] : memref<8x1xf32, #tpu.memory_space<vmem>>, vector<8x1xf32>
    %41 = vector.broadcast %40 : vector<8x1xf32> to vector<8x16xf32>
    %42 = arith.addf %39, %41 : vector<8x16xf32>
    %c4 = arith.constant 4 : index
    %c0_26 = arith.constant 0 : index
    %c0_27 = arith.constant 0 : index
    %43 = vector.load %arg13[%c4, %c0_26, %c0_27] : memref<9x16x1xf32, #tpu.memory_space<vmem>>, vector<1x16x1xf32>
    %44 = vector.shape_cast %43 : vector<1x16x1xf32> to vector<16x1xf32>
    %45 = vector.broadcast %44 : vector<16x1xf32> to vector<16x256xf32>
    %46 = arith.mulf %1, %45 : vector<16x256xf32>
    %c0_28 = arith.constant 0 : index
    %c0_29 = arith.constant 0 : index
    %c0_30 = arith.constant 0 : index
    %47 = vector.load %arg13[%c0_28, %c0_29, %c0_30] : memref<9x16x1xf32, #tpu.memory_space<vmem>>, vector<1x16x1xf32>
    %48 = vector.shape_cast %47 : vector<1x16x1xf32> to vector<16x1xf32>
    %c17_i32 = arith.constant 17 : i32
    %49 = tpu.dynamic_rotate %1 by %c17_i32 dim 1 : vector<16x256xf32>, i32 -> vector<16x256xf32>
    %50 = vector.broadcast %4 : vector<1x256xf32> to vector<16x256xf32>
    %51 = arith.mulf %49, %50 : vector<16x256xf32>
    %52 = vector.broadcast %48 : vector<16x1xf32> to vector<16x256xf32>
    %53 = arith.mulf %52, %51 : vector<16x256xf32>
    %54 = arith.addf %46, %53 : vector<16x256xf32>
    %c1 = arith.constant 1 : index
    %c0_31 = arith.constant 0 : index
    %c0_32 = arith.constant 0 : index
    %55 = vector.load %arg13[%c1, %c0_31, %c0_32] : memref<9x16x1xf32, #tpu.memory_space<vmem>>, vector<1x16x1xf32>
    %56 = vector.shape_cast %55 : vector<1x16x1xf32> to vector<16x1xf32>
    %c16_i32 = arith.constant 16 : i32
    %57 = tpu.dynamic_rotate %1 by %c16_i32 dim 1 : vector<16x256xf32>, i32 -> vector<16x256xf32>
    %58 = vector.broadcast %5 : vector<1x256xf32> to vector<16x256xf32>
    %59 = arith.mulf %57, %58 : vector<16x256xf32>
    %60 = vector.broadcast %56 : vector<16x1xf32> to vector<16x256xf32>
    %61 = arith.mulf %60, %59 : vector<16x256xf32>
    %62 = arith.addf %54, %61 : vector<16x256xf32>
    %c2 = arith.constant 2 : index
    %c0_33 = arith.constant 0 : index
    %c0_34 = arith.constant 0 : index
    %63 = vector.load %arg13[%c2, %c0_33, %c0_34] : memref<9x16x1xf32, #tpu.memory_space<vmem>>, vector<1x16x1xf32>
    %64 = vector.shape_cast %63 : vector<1x16x1xf32> to vector<16x1xf32>
    %c15_i32 = arith.constant 15 : i32
    %65 = tpu.dynamic_rotate %1 by %c15_i32 dim 1 : vector<16x256xf32>, i32 -> vector<16x256xf32>
    %66 = vector.broadcast %6 : vector<1x256xf32> to vector<16x256xf32>
    %67 = arith.mulf %65, %66 : vector<16x256xf32>
    %68 = vector.broadcast %64 : vector<16x1xf32> to vector<16x256xf32>
    %69 = arith.mulf %68, %67 : vector<16x256xf32>
    %70 = arith.addf %62, %69 : vector<16x256xf32>
    %c3 = arith.constant 3 : index
    %c0_35 = arith.constant 0 : index
    %c0_36 = arith.constant 0 : index
    %71 = vector.load %arg13[%c3, %c0_35, %c0_36] : memref<9x16x1xf32, #tpu.memory_space<vmem>>, vector<1x16x1xf32>
    %72 = vector.shape_cast %71 : vector<1x16x1xf32> to vector<16x1xf32>
    %c1_i32 = arith.constant 1 : i32
    %73 = tpu.dynamic_rotate %1 by %c1_i32 dim 1 : vector<16x256xf32>, i32 -> vector<16x256xf32>
    %74 = vector.broadcast %7 : vector<1x256xf32> to vector<16x256xf32>
    %75 = arith.mulf %73, %74 : vector<16x256xf32>
    %76 = vector.broadcast %72 : vector<16x1xf32> to vector<16x256xf32>
    %77 = arith.mulf %76, %75 : vector<16x256xf32>
    %78 = arith.addf %70, %77 : vector<16x256xf32>
    %c5 = arith.constant 5 : index
    %c0_37 = arith.constant 0 : index
    %c0_38 = arith.constant 0 : index
    %79 = vector.load %arg13[%c5, %c0_37, %c0_38] : memref<9x16x1xf32, #tpu.memory_space<vmem>>, vector<1x16x1xf32>
    %80 = vector.shape_cast %79 : vector<1x16x1xf32> to vector<16x1xf32>
    %c255_i32 = arith.constant 255 : i32
    %81 = tpu.dynamic_rotate %1 by %c255_i32 dim 1 : vector<16x256xf32>, i32 -> vector<16x256xf32>
    %82 = vector.broadcast %8 : vector<1x256xf32> to vector<16x256xf32>
    %83 = arith.mulf %81, %82 : vector<16x256xf32>
    %84 = vector.broadcast %80 : vector<16x1xf32> to vector<16x256xf32>
    %85 = arith.mulf %84, %83 : vector<16x256xf32>
    %86 = arith.addf %78, %85 : vector<16x256xf32>
    %c6 = arith.constant 6 : index
    %c0_39 = arith.constant 0 : index
    %c0_40 = arith.constant 0 : index
    %87 = vector.load %arg13[%c6, %c0_39, %c0_40] : memref<9x16x1xf32, #tpu.memory_space<vmem>>, vector<1x16x1xf32>
    %88 = vector.shape_cast %87 : vector<1x16x1xf32> to vector<16x1xf32>
    %c241_i32 = arith.constant 241 : i32
    %89 = tpu.dynamic_rotate %1 by %c241_i32 dim 1 : vector<16x256xf32>, i32 -> vector<16x256xf32>
    %90 = vector.broadcast %9 : vector<1x256xf32> to vector<16x256xf32>
    %91 = arith.mulf %89, %90 : vector<16x256xf32>
    %92 = vector.broadcast %88 : vector<16x1xf32> to vector<16x256xf32>
    %93 = arith.mulf %92, %91 : vector<16x256xf32>
    %94 = arith.addf %86, %93 : vector<16x256xf32>
    %c7 = arith.constant 7 : index
    %c0_41 = arith.constant 0 : index
    %c0_42 = arith.constant 0 : index
    %95 = vector.load %arg13[%c7, %c0_41, %c0_42] : memref<9x16x1xf32, #tpu.memory_space<vmem>>, vector<1x16x1xf32>
    %96 = vector.shape_cast %95 : vector<1x16x1xf32> to vector<16x1xf32>
    %c240_i32 = arith.constant 240 : i32
    %97 = tpu.dynamic_rotate %1 by %c240_i32 dim 1 : vector<16x256xf32>, i32 -> vector<16x256xf32>
    %98 = vector.broadcast %10 : vector<1x256xf32> to vector<16x256xf32>
    %99 = arith.mulf %97, %98 : vector<16x256xf32>
    %100 = vector.broadcast %96 : vector<16x1xf32> to vector<16x256xf32>
    %101 = arith.mulf %100, %99 : vector<16x256xf32>
    %102 = arith.addf %94, %101 : vector<16x256xf32>
    %c8 = arith.constant 8 : index
    %c0_43 = arith.constant 0 : index
    %c0_44 = arith.constant 0 : index
    %103 = vector.load %arg13[%c8, %c0_43, %c0_44] : memref<9x16x1xf32, #tpu.memory_space<vmem>>, vector<1x16x1xf32>
    %104 = vector.shape_cast %103 : vector<1x16x1xf32> to vector<16x1xf32>
    %c239_i32 = arith.constant 239 : i32
    %105 = tpu.dynamic_rotate %1 by %c239_i32 dim 1 : vector<16x256xf32>, i32 -> vector<16x256xf32>
    %106 = vector.broadcast %11 : vector<1x256xf32> to vector<16x256xf32>
    %107 = arith.mulf %105, %106 : vector<16x256xf32>
    %108 = vector.broadcast %104 : vector<16x1xf32> to vector<16x256xf32>
    %109 = arith.mulf %108, %107 : vector<16x256xf32>
    %110 = arith.addf %102, %109 : vector<16x256xf32>
    %c0_45 = arith.constant 0 : index
    %c0_46 = arith.constant 0 : index
    %111 = vector.load %arg11[%c0_45, %c0_46] : memref<8x16xbf16, #tpu.memory_space<vmem>>, vector<8x16xbf16>
    %112 = arith.truncf %110 : vector<16x256xf32> to vector<16x256xbf16>
    %cst_47 = arith.constant dense<0.000000e+00> : vector<8x256xf32>
    %113 = tpu.matmul %111, %112, %cst_47 {dimension_numbers = #tpu.dot_dimension_numbers<[1], [0], [0], [1], [0, 0, 1, 1], [], []>} : vector<8x16xbf16>, vector<16x256xbf16>, vector<8x256xf32> -> vector<8x256xf32>
    %114 = arith.truncf %113 : vector<8x256xf32> to vector<8x256xbf16>
    %c0_48 = arith.constant 0 : index
    %c0_49 = arith.constant 0 : index
    %115 = vector.load %arg14[%c0_48, %c0_49] : memref<256x64xbf16, #tpu.memory_space<vmem>>, vector<256x64xbf16>
    %cst_50 = arith.constant dense<0.000000e+00> : vector<8x64xf32>
    %116 = tpu.matmul %114, %115, %cst_50 {dimension_numbers = #tpu.dot_dimension_numbers<[1], [0], [0], [1], [0, 0, 1, 1], [], []>} : vector<8x256xbf16>, vector<256x64xbf16>, vector<8x64xf32> -> vector<8x64xf32>
    %c0_51 = arith.constant 0 : index
    %c0_52 = arith.constant 0 : index
    %117 = vector.load %arg12[%c0_51, %c0_52] : memref<8x1xf32, #tpu.memory_space<vmem>>, vector<8x1xf32>
    %118 = vector.broadcast %117 : vector<8x1xf32> to vector<8x64xf32>
    %119 = arith.addf %116, %118 : vector<8x64xf32>
    %120 = arith.truncf %33 : vector<8x64xf32> to vector<8x64xbf16>
    %c0_53 = arith.constant 0 : index
    %c0_54 = arith.constant 0 : index
    %121 = vector.load %arg15[%c0_53, %c0_54] : memref<64x256xbf16, #tpu.memory_space<vmem>>, vector<64x256xbf16>
    %cst_55 = arith.constant dense<0.000000e+00> : vector<8x256xf32>
    %122 = tpu.matmul %120, %121, %cst_55 {dimension_numbers = #tpu.dot_dimension_numbers<[1], [0], [0], [1], [0, 0, 1, 1], [], []>} : vector<8x64xbf16>, vector<64x256xbf16>, vector<8x256xf32> -> vector<8x256xf32>
    %123 = arith.addf %122, %22 : vector<8x256xf32>
    %c0_56 = arith.constant 0 : index
    %c0_57 = arith.constant 0 : index
    %124 = vector.load %arg17[%c0_56, %c0_57] : memref<8x1xf32, #tpu.memory_space<vmem>>, vector<8x1xf32>
    %125 = vector.broadcast %124 : vector<8x1xf32> to vector<8x256xf32>
    %126 = arith.mulf %123, %125 : vector<8x256xf32>
    %c0_58 = arith.constant 0 : index
    %c0_59 = arith.constant 0 : index
    %127 = vector.load %arg18[%c0_58, %c0_59] : memref<8x1xf32, #tpu.memory_space<vmem>>, vector<8x1xf32>
    %128 = vector.broadcast %127 : vector<8x1xf32> to vector<8x256xf32>
    %129 = arith.addf %126, %128 : vector<8x256xf32>
    %cst_60 = arith.constant 0.000000e+00 : f32
    %130 = vector.broadcast %cst_60 : f32 to vector<8x256xf32>
    %131 = arith.maximumf %129, %130 : vector<8x256xf32>
    %132 = arith.truncf %131 : vector<8x256xf32> to vector<8x256xbf16>
    %c0_61 = arith.constant 0 : index
    %c0_62 = arith.constant 0 : index
    %133 = vector.load %arg19[%c0_61, %c0_62] : memref<72x8xbf16, #tpu.memory_space<vmem>>, vector<72x8xbf16>
    %cst_63 = arith.constant dense<0.000000e+00> : vector<72x256xf32>
    %134 = tpu.matmul %133, %132, %cst_63 {dimension_numbers = #tpu.dot_dimension_numbers<[1], [0], [0], [1], [0, 0, 1, 1], [], []>} : vector<72x8xbf16>, vector<8x256xbf16>, vector<72x256xf32> -> vector<72x256xf32>
    %135 = vector.extract_strided_slice %134 {offsets = [32, 0], sizes = [8, 256], strides = [1, 1]} : vector<72x256xf32> to vector<8x256xf32>
    %136 = vector.extract_strided_slice %134 {offsets = [0, 0], sizes = [8, 256], strides = [1, 1]} : vector<72x256xf32> to vector<8x256xf32>
    %c17_i32_64 = arith.constant 17 : i32
    %137 = tpu.dynamic_rotate %136 by %c17_i32_64 dim 1 : vector<8x256xf32>, i32 -> vector<8x256xf32>
    %138 = vector.broadcast %4 : vector<1x256xf32> to vector<8x256xf32>
    %139 = arith.mulf %137, %138 : vector<8x256xf32>
    %140 = arith.addf %135, %139 : vector<8x256xf32>
    %141 = vector.extract_strided_slice %134 {offsets = [8, 0], sizes = [8, 256], strides = [1, 1]} : vector<72x256xf32> to vector<8x256xf32>
    %c16_i32_65 = arith.constant 16 : i32
    %142 = tpu.dynamic_rotate %141 by %c16_i32_65 dim 1 : vector<8x256xf32>, i32 -> vector<8x256xf32>
    %143 = vector.broadcast %5 : vector<1x256xf32> to vector<8x256xf32>
    %144 = arith.mulf %142, %143 : vector<8x256xf32>
    %145 = arith.addf %140, %144 : vector<8x256xf32>
    %146 = vector.extract_strided_slice %134 {offsets = [16, 0], sizes = [8, 256], strides = [1, 1]} : vector<72x256xf32> to vector<8x256xf32>
    %c15_i32_66 = arith.constant 15 : i32
    %147 = tpu.dynamic_rotate %146 by %c15_i32_66 dim 1 : vector<8x256xf32>, i32 -> vector<8x256xf32>
    %148 = vector.broadcast %6 : vector<1x256xf32> to vector<8x256xf32>
    %149 = arith.mulf %147, %148 : vector<8x256xf32>
    %150 = arith.addf %145, %149 : vector<8x256xf32>
    %151 = vector.extract_strided_slice %134 {offsets = [24, 0], sizes = [8, 256], strides = [1, 1]} : vector<72x256xf32> to vector<8x256xf32>
    %c1_i32_67 = arith.constant 1 : i32
    %152 = tpu.dynamic_rotate %151 by %c1_i32_67 dim 1 : vector<8x256xf32>, i32 -> vector<8x256xf32>
    %153 = vector.broadcast %7 : vector<1x256xf32> to vector<8x256xf32>
    %154 = arith.mulf %152, %153 : vector<8x256xf32>
    %155 = arith.addf %150, %154 : vector<8x256xf32>
    %156 = vector.extract_strided_slice %134 {offsets = [40, 0], sizes = [8, 256], strides = [1, 1]} : vector<72x256xf32> to vector<8x256xf32>
    %c255_i32_68 = arith.constant 255 : i32
    %157 = tpu.dynamic_rotate %156 by %c255_i32_68 dim 1 : vector<8x256xf32>, i32 -> vector<8x256xf32>
    %158 = vector.broadcast %8 : vector<1x256xf32> to vector<8x256xf32>
    %159 = arith.mulf %157, %158 : vector<8x256xf32>
    %160 = arith.addf %155, %159 : vector<8x256xf32>
    %161 = vector.extract_strided_slice %134 {offsets = [48, 0], sizes = [8, 256], strides = [1, 1]} : vector<72x256xf32> to vector<8x256xf32>
    %c241_i32_69 = arith.constant 241 : i32
    %162 = tpu.dynamic_rotate %161 by %c241_i32_69 dim 1 : vector<8x256xf32>, i32 -> vector<8x256xf32>
    %163 = vector.broadcast %9 : vector<1x256xf32> to vector<8x256xf32>
    %164 = arith.mulf %162, %163 : vector<8x256xf32>
    %165 = arith.addf %160, %164 : vector<8x256xf32>
    %166 = vector.extract_strided_slice %134 {offsets = [56, 0], sizes = [8, 256], strides = [1, 1]} : vector<72x256xf32> to vector<8x256xf32>
    %c240_i32_70 = arith.constant 240 : i32
    %167 = tpu.dynamic_rotate %166 by %c240_i32_70 dim 1 : vector<8x256xf32>, i32 -> vector<8x256xf32>
    %168 = vector.broadcast %10 : vector<1x256xf32> to vector<8x256xf32>
    %169 = arith.mulf %167, %168 : vector<8x256xf32>
    %170 = arith.addf %165, %169 : vector<8x256xf32>
    %171 = vector.extract_strided_slice %134 {offsets = [64, 0], sizes = [8, 256], strides = [1, 1]} : vector<72x256xf32> to vector<8x256xf32>
    %c239_i32_71 = arith.constant 239 : i32
    %172 = tpu.dynamic_rotate %171 by %c239_i32_71 dim 1 : vector<8x256xf32>, i32 -> vector<8x256xf32>
    %173 = vector.broadcast %11 : vector<1x256xf32> to vector<8x256xf32>
    %174 = arith.mulf %172, %173 : vector<8x256xf32>
    %175 = arith.addf %170, %174 : vector<8x256xf32>
    %176 = arith.truncf %42 : vector<8x16xf32> to vector<8x16xbf16>
    %c0_72 = arith.constant 0 : index
    %c0_73 = arith.constant 0 : index
    %177 = vector.load %arg16[%c0_72, %c0_73] : memref<16x256xbf16, #tpu.memory_space<vmem>>, vector<16x256xbf16>
    %cst_74 = arith.constant dense<0.000000e+00> : vector<8x256xf32>
    %178 = tpu.matmul %176, %177, %cst_74 {dimension_numbers = #tpu.dot_dimension_numbers<[1], [0], [0], [1], [0, 0, 1, 1], [], []>} : vector<8x16xbf16>, vector<16x256xbf16>, vector<8x256xf32> -> vector<8x256xf32>
    %179 = arith.addf %178, %175 : vector<8x256xf32>
    %c0_75 = arith.constant 0 : index
    %c0_76 = arith.constant 0 : index
    %180 = vector.load %arg20[%c0_75, %c0_76] : memref<8x1xf32, #tpu.memory_space<vmem>>, vector<8x1xf32>
    %181 = vector.broadcast %180 : vector<8x1xf32> to vector<8x256xf32>
    %182 = arith.mulf %179, %181 : vector<8x256xf32>
    %c0_77 = arith.constant 0 : index
    %c0_78 = arith.constant 0 : index
    %183 = vector.load %arg21[%c0_77, %c0_78] : memref<8x1xf32, #tpu.memory_space<vmem>>, vector<8x1xf32>
    %184 = vector.broadcast %183 : vector<8x1xf32> to vector<8x256xf32>
    %185 = arith.addf %182, %184 : vector<8x256xf32>
    %cst_79 = arith.constant 0.000000e+00 : f32
    %186 = vector.broadcast %cst_79 : f32 to vector<8x256xf32>
    %187 = arith.maximumf %185, %186 : vector<8x256xf32>
    %188 = arith.truncf %187 : vector<8x256xf32> to vector<8x256xbf16>
    %c0_80 = arith.constant 0 : index
    %c0_81 = arith.constant 0 : index
    %189 = vector.load %arg22[%c0_80, %c0_81] : memref<72x8xbf16, #tpu.memory_space<vmem>>, vector<72x8xbf16>
    %cst_82 = arith.constant dense<0.000000e+00> : vector<72x256xf32>
    %190 = tpu.matmul %189, %188, %cst_82 {dimension_numbers = #tpu.dot_dimension_numbers<[1], [0], [0], [1], [0, 0, 1, 1], [], []>} : vector<72x8xbf16>, vector<8x256xbf16>, vector<72x256xf32> -> vector<72x256xf32>
    %191 = vector.extract_strided_slice %190 {offsets = [32, 0], sizes = [8, 256], strides = [1, 1]} : vector<72x256xf32> to vector<8x256xf32>
    %192 = vector.extract_strided_slice %190 {offsets = [0, 0], sizes = [8, 256], strides = [1, 1]} : vector<72x256xf32> to vector<8x256xf32>
    %c17_i32_83 = arith.constant 17 : i32
    %193 = tpu.dynamic_rotate %192 by %c17_i32_83 dim 1 : vector<8x256xf32>, i32 -> vector<8x256xf32>
    %194 = vector.broadcast %4 : vector<1x256xf32> to vector<8x256xf32>
    %195 = arith.mulf %193, %194 : vector<8x256xf32>
    %196 = arith.addf %191, %195 : vector<8x256xf32>
    %197 = vector.extract_strided_slice %190 {offsets = [8, 0], sizes = [8, 256], strides = [1, 1]} : vector<72x256xf32> to vector<8x256xf32>
    %c16_i32_84 = arith.constant 16 : i32
    %198 = tpu.dynamic_rotate %197 by %c16_i32_84 dim 1 : vector<8x256xf32>, i32 -> vector<8x256xf32>
    %199 = vector.broadcast %5 : vector<1x256xf32> to vector<8x256xf32>
    %200 = arith.mulf %198, %199 : vector<8x256xf32>
    %201 = arith.addf %196, %200 : vector<8x256xf32>
    %202 = vector.extract_strided_slice %190 {offsets = [16, 0], sizes = [8, 256], strides = [1, 1]} : vector<72x256xf32> to vector<8x256xf32>
    %c15_i32_85 = arith.constant 15 : i32
    %203 = tpu.dynamic_rotate %202 by %c15_i32_85 dim 1 : vector<8x256xf32>, i32 -> vector<8x256xf32>
    %204 = vector.broadcast %6 : vector<1x256xf32> to vector<8x256xf32>
    %205 = arith.mulf %203, %204 : vector<8x256xf32>
    %206 = arith.addf %201, %205 : vector<8x256xf32>
    %207 = vector.extract_strided_slice %190 {offsets = [24, 0], sizes = [8, 256], strides = [1, 1]} : vector<72x256xf32> to vector<8x256xf32>
    %c1_i32_86 = arith.constant 1 : i32
    %208 = tpu.dynamic_rotate %207 by %c1_i32_86 dim 1 : vector<8x256xf32>, i32 -> vector<8x256xf32>
    %209 = vector.broadcast %7 : vector<1x256xf32> to vector<8x256xf32>
    %210 = arith.mulf %208, %209 : vector<8x256xf32>
    %211 = arith.addf %206, %210 : vector<8x256xf32>
    %212 = vector.extract_strided_slice %190 {offsets = [40, 0], sizes = [8, 256], strides = [1, 1]} : vector<72x256xf32> to vector<8x256xf32>
    %c255_i32_87 = arith.constant 255 : i32
    %213 = tpu.dynamic_rotate %212 by %c255_i32_87 dim 1 : vector<8x256xf32>, i32 -> vector<8x256xf32>
    %214 = vector.broadcast %8 : vector<1x256xf32> to vector<8x256xf32>
    %215 = arith.mulf %213, %214 : vector<8x256xf32>
    %216 = arith.addf %211, %215 : vector<8x256xf32>
    %217 = vector.extract_strided_slice %190 {offsets = [48, 0], sizes = [8, 256], strides = [1, 1]} : vector<72x256xf32> to vector<8x256xf32>
    %c241_i32_88 = arith.constant 241 : i32
    %218 = tpu.dynamic_rotate %217 by %c241_i32_88 dim 1 : vector<8x256xf32>, i32 -> vector<8x256xf32>
    %219 = vector.broadcast %9 : vector<1x256xf32> to vector<8x256xf32>
    %220 = arith.mulf %218, %219 : vector<8x256xf32>
    %221 = arith.addf %216, %220 : vector<8x256xf32>
    %222 = vector.extract_strided_slice %190 {offsets = [56, 0], sizes = [8, 256], strides = [1, 1]} : vector<72x256xf32> to vector<8x256xf32>
    %c240_i32_89 = arith.constant 240 : i32
    %223 = tpu.dynamic_rotate %222 by %c240_i32_89 dim 1 : vector<8x256xf32>, i32 -> vector<8x256xf32>
    %224 = vector.broadcast %10 : vector<1x256xf32> to vector<8x256xf32>
    %225 = arith.mulf %223, %224 : vector<8x256xf32>
    %226 = arith.addf %221, %225 : vector<8x256xf32>
    %227 = vector.extract_strided_slice %190 {offsets = [64, 0], sizes = [8, 256], strides = [1, 1]} : vector<72x256xf32> to vector<8x256xf32>
    %c239_i32_90 = arith.constant 239 : i32
    %228 = tpu.dynamic_rotate %227 by %c239_i32_90 dim 1 : vector<8x256xf32>, i32 -> vector<8x256xf32>
    %229 = vector.broadcast %11 : vector<1x256xf32> to vector<8x256xf32>
    %230 = arith.mulf %228, %229 : vector<8x256xf32>
    %231 = arith.addf %226, %230 : vector<8x256xf32>
    %232 = arith.truncf %119 : vector<8x64xf32> to vector<8x64xbf16>
    %c0_91 = arith.constant 0 : index
    %c0_92 = arith.constant 0 : index
    %233 = vector.load %arg15[%c0_91, %c0_92] : memref<64x256xbf16, #tpu.memory_space<vmem>>, vector<64x256xbf16>
    %cst_93 = arith.constant dense<0.000000e+00> : vector<8x256xf32>
    %234 = tpu.matmul %232, %233, %cst_93 {dimension_numbers = #tpu.dot_dimension_numbers<[1], [0], [0], [1], [0, 0, 1, 1], [], []>} : vector<8x64xbf16>, vector<64x256xbf16>, vector<8x256xf32> -> vector<8x256xf32>
    %235 = arith.addf %234, %231 : vector<8x256xf32>
    %c0_94 = arith.constant 0 : index
    %c0_95 = arith.constant 0 : index
    %236 = vector.load %arg23[%c0_94, %c0_95] : memref<8x1xf32, #tpu.memory_space<vmem>>, vector<8x1xf32>
    %237 = vector.broadcast %236 : vector<8x1xf32> to vector<8x256xf32>
    %238 = arith.mulf %235, %237 : vector<8x256xf32>
    %c0_96 = arith.constant 0 : index
    %c0_97 = arith.constant 0 : index
    %239 = vector.load %arg24[%c0_96, %c0_97] : memref<8x1xf32, #tpu.memory_space<vmem>>, vector<8x1xf32>
    %240 = vector.broadcast %239 : vector<8x1xf32> to vector<8x256xf32>
    %241 = arith.addf %238, %240 : vector<8x256xf32>
    %cst_98 = arith.constant 0.000000e+00 : f32
    %242 = vector.broadcast %cst_98 : f32 to vector<8x256xf32>
    %243 = arith.maximumf %241, %242 : vector<8x256xf32>
    %244 = arith.truncf %243 : vector<8x256xf32> to vector<8x256xbf16>
    %c0_99 = arith.constant 0 : index
    %c0_100 = arith.constant 0 : index
    %245 = vector.load %arg25[%c0_99, %c0_100] : memref<72x8xbf16, #tpu.memory_space<vmem>>, vector<72x8xbf16>
    %cst_101 = arith.constant dense<0.000000e+00> : vector<72x256xf32>
    %246 = tpu.matmul %245, %244, %cst_101 {dimension_numbers = #tpu.dot_dimension_numbers<[1], [0], [0], [1], [0, 0, 1, 1], [], []>} : vector<72x8xbf16>, vector<8x256xbf16>, vector<72x256xf32> -> vector<72x256xf32>
    %247 = vector.extract_strided_slice %246 {offsets = [32, 0], sizes = [8, 256], strides = [1, 1]} : vector<72x256xf32> to vector<8x256xf32>
    %248 = vector.extract_strided_slice %246 {offsets = [0, 0], sizes = [8, 256], strides = [1, 1]} : vector<72x256xf32> to vector<8x256xf32>
    %c17_i32_102 = arith.constant 17 : i32
    %249 = tpu.dynamic_rotate %248 by %c17_i32_102 dim 1 : vector<8x256xf32>, i32 -> vector<8x256xf32>
    %250 = vector.broadcast %4 : vector<1x256xf32> to vector<8x256xf32>
    %251 = arith.mulf %249, %250 : vector<8x256xf32>
    %252 = arith.addf %247, %251 : vector<8x256xf32>
    %253 = vector.extract_strided_slice %246 {offsets = [8, 0], sizes = [8, 256], strides = [1, 1]} : vector<72x256xf32> to vector<8x256xf32>
    %c16_i32_103 = arith.constant 16 : i32
    %254 = tpu.dynamic_rotate %253 by %c16_i32_103 dim 1 : vector<8x256xf32>, i32 -> vector<8x256xf32>
    %255 = vector.broadcast %5 : vector<1x256xf32> to vector<8x256xf32>
    %256 = arith.mulf %254, %255 : vector<8x256xf32>
    %257 = arith.addf %252, %256 : vector<8x256xf32>
    %258 = vector.extract_strided_slice %246 {offsets = [16, 0], sizes = [8, 256], strides = [1, 1]} : vector<72x256xf32> to vector<8x256xf32>
    %c15_i32_104 = arith.constant 15 : i32
    %259 = tpu.dynamic_rotate %258 by %c15_i32_104 dim 1 : vector<8x256xf32>, i32 -> vector<8x256xf32>
    %260 = vector.broadcast %6 : vector<1x256xf32> to vector<8x256xf32>
    %261 = arith.mulf %259, %260 : vector<8x256xf32>
    %262 = arith.addf %257, %261 : vector<8x256xf32>
    %263 = vector.extract_strided_slice %246 {offsets = [24, 0], sizes = [8, 256], strides = [1, 1]} : vector<72x256xf32> to vector<8x256xf32>
    %c1_i32_105 = arith.constant 1 : i32
    %264 = tpu.dynamic_rotate %263 by %c1_i32_105 dim 1 : vector<8x256xf32>, i32 -> vector<8x256xf32>
    %265 = vector.broadcast %7 : vector<1x256xf32> to vector<8x256xf32>
    %266 = arith.mulf %264, %265 : vector<8x256xf32>
    %267 = arith.addf %262, %266 : vector<8x256xf32>
    %268 = vector.extract_strided_slice %246 {offsets = [40, 0], sizes = [8, 256], strides = [1, 1]} : vector<72x256xf32> to vector<8x256xf32>
    %c255_i32_106 = arith.constant 255 : i32
    %269 = tpu.dynamic_rotate %268 by %c255_i32_106 dim 1 : vector<8x256xf32>, i32 -> vector<8x256xf32>
    %270 = vector.broadcast %8 : vector<1x256xf32> to vector<8x256xf32>
    %271 = arith.mulf %269, %270 : vector<8x256xf32>
    %272 = arith.addf %267, %271 : vector<8x256xf32>
    %273 = vector.extract_strided_slice %246 {offsets = [48, 0], sizes = [8, 256], strides = [1, 1]} : vector<72x256xf32> to vector<8x256xf32>
    %c241_i32_107 = arith.constant 241 : i32
    %274 = tpu.dynamic_rotate %273 by %c241_i32_107 dim 1 : vector<8x256xf32>, i32 -> vector<8x256xf32>
    %275 = vector.broadcast %9 : vector<1x256xf32> to vector<8x256xf32>
    %276 = arith.mulf %274, %275 : vector<8x256xf32>
    %277 = arith.addf %272, %276 : vector<8x256xf32>
    %278 = vector.extract_strided_slice %246 {offsets = [56, 0], sizes = [8, 256], strides = [1, 1]} : vector<72x256xf32> to vector<8x256xf32>
    %c240_i32_108 = arith.constant 240 : i32
    %279 = tpu.dynamic_rotate %278 by %c240_i32_108 dim 1 : vector<8x256xf32>, i32 -> vector<8x256xf32>
    %280 = vector.broadcast %10 : vector<1x256xf32> to vector<8x256xf32>
    %281 = arith.mulf %279, %280 : vector<8x256xf32>
    %282 = arith.addf %277, %281 : vector<8x256xf32>
    %283 = vector.extract_strided_slice %246 {offsets = [64, 0], sizes = [8, 256], strides = [1, 1]} : vector<72x256xf32> to vector<8x256xf32>
    %c239_i32_109 = arith.constant 239 : i32
    %284 = tpu.dynamic_rotate %283 by %c239_i32_109 dim 1 : vector<8x256xf32>, i32 -> vector<8x256xf32>
    %285 = vector.broadcast %11 : vector<1x256xf32> to vector<8x256xf32>
    %286 = arith.mulf %284, %285 : vector<8x256xf32>
    %287 = arith.addf %282, %286 : vector<8x256xf32>
    %288 = tpu.concatenate %22, %175, %231, %287 in 0 : vector<8x256xf32>, vector<8x256xf32>, vector<8x256xf32>, vector<8x256xf32> -> vector<32x256xf32>
    %c0_110 = arith.constant 0 : index
    %c0_111 = arith.constant 0 : index
    %289 = vector.load %arg26[%c0_110, %c0_111] : memref<32x1xf32, #tpu.memory_space<vmem>>, vector<32x1xf32>
    %290 = vector.broadcast %289 : vector<32x1xf32> to vector<32x256xf32>
    %291 = arith.mulf %288, %290 : vector<32x256xf32>
    %c0_112 = arith.constant 0 : index
    %c0_113 = arith.constant 0 : index
    %292 = vector.load %arg27[%c0_112, %c0_113] : memref<32x1xf32, #tpu.memory_space<vmem>>, vector<32x1xf32>
    %293 = vector.broadcast %292 : vector<32x1xf32> to vector<32x256xf32>
    %294 = arith.addf %291, %293 : vector<32x256xf32>
    %cst_114 = arith.constant 0.000000e+00 : f32
    %295 = vector.broadcast %cst_114 : f32 to vector<32x256xf32>
    %296 = arith.maximumf %294, %295 : vector<32x256xf32>
    %297 = arith.truncf %296 : vector<32x256xf32> to vector<32x256xbf16>
    %c0_115 = arith.constant 0 : index
    %c0_116 = arith.constant 0 : index
    %298 = vector.load %arg29[%c0_115, %c0_116] : memref<16x1xf32, #tpu.memory_space<vmem>>, vector<16x1xf32>
    %299 = vector.broadcast %298 : vector<16x1xf32> to vector<16x256xf32>
    %300 = arith.mulf %1, %299 : vector<16x256xf32>
    %c0_117 = arith.constant 0 : index
    %c0_118 = arith.constant 0 : index
    %301 = vector.load %arg30[%c0_117, %c0_118] : memref<16x1xf32, #tpu.memory_space<vmem>>, vector<16x1xf32>
    %302 = vector.broadcast %301 : vector<16x1xf32> to vector<16x256xf32>
    %303 = arith.addf %300, %302 : vector<16x256xf32>
    %cst_119 = arith.constant 0.000000e+00 : f32
    %304 = vector.broadcast %cst_119 : f32 to vector<16x256xf32>
    %305 = arith.maximumf %303, %304 : vector<16x256xf32>
    %306 = arith.truncf %305 : vector<16x256xf32> to vector<16x256xbf16>
    %c0_120 = arith.constant 0 : index
    %c0_121 = arith.constant 0 : index
    %307 = vector.load %arg28[%c0_120, %c0_121] : memref<16x32xbf16, #tpu.memory_space<vmem>>, vector<16x32xbf16>
    %cst_122 = arith.constant dense<0.000000e+00> : vector<16x256xf32>
    %308 = tpu.matmul %307, %297, %cst_122 {dimension_numbers = #tpu.dot_dimension_numbers<[1], [0], [0], [1], [0, 0, 1, 1], [], []>} : vector<16x32xbf16>, vector<32x256xbf16>, vector<16x256xf32> -> vector<16x256xf32>
    %c0_123 = arith.constant 0 : index
    %c0_124 = arith.constant 0 : index
    %309 = vector.load %arg31[%c0_123, %c0_124] : memref<16x16xbf16, #tpu.memory_space<vmem>>, vector<16x16xbf16>
    %cst_125 = arith.constant dense<0.000000e+00> : vector<16x256xf32>
    %310 = tpu.matmul %309, %306, %cst_125 {dimension_numbers = #tpu.dot_dimension_numbers<[1], [0], [0], [1], [0, 0, 1, 1], [], []>} : vector<16x16xbf16>, vector<16x256xbf16>, vector<16x256xf32> -> vector<16x256xf32>
    %311 = arith.addf %308, %310 : vector<16x256xf32>
    %c0_126 = arith.constant 0 : index
    %c0_127 = arith.constant 0 : index
    %c0_128 = arith.constant 0 : index
    %312 = vector.load %arg32[%c0_126, %c0_127, %c0_128] : memref<1x16x256xf32, #tpu.memory_space<vmem>>, vector<1x16x256xf32>
    %313 = vector.shape_cast %312 : vector<1x16x256xf32> to vector<16x256xf32>
    %314 = vector.shape_cast %311 : vector<16x256xf32> to vector<1x16x256xf32>
    tpu.vector_store %arg32[%c0_126, %c0_127, %c0_128], %314 {strides = array<i32>} : memref<1x16x256xf32, #tpu.memory_space<vmem>>, vector<1x16x256xf32>,
    return
  }
  func.func @transform_0(%arg0: i32) -> (i32, i32, i32) {
    %c0_i32 = arith.constant 0 : i32
    %c0_i32_0 = arith.constant 0 : i32
    %c0_i32_1 = arith.constant 0 : i32
    return %arg0, %c0_i32, %c0_i32_0 : i32, i32, i32
  }
  func.func @transform_1(%arg0: i32) -> (i32, i32) {
    %c0_i32 = arith.constant 0 : i32
    %c0_i32_0 = arith.constant 0 : i32
    %c0_i32_1 = arith.constant 0 : i32
    return %c0_i32, %c0_i32_0 : i32, i32
  }
  func.func @transform_2(%arg0: i32) -> (i32, i32) {
    %c0_i32 = arith.constant 0 : i32
    %c0_i32_0 = arith.constant 0 : i32
    %c0_i32_1 = arith.constant 0 : i32
    return %c0_i32, %c0_i32_0 : i32, i32
  }
  func.func @transform_3(%arg0: i32) -> (i32, i32) {
    %c0_i32 = arith.constant 0 : i32
    %c0_i32_0 = arith.constant 0 : i32
    %c0_i32_1 = arith.constant 0 : i32
    return %c0_i32, %c0_i32_0 : i32, i32
  }
  func.func @transform_4(%arg0: i32) -> (i32, i32) {
    %c0_i32 = arith.constant 0 : i32
    %c0_i32_0 = arith.constant 0 : i32
    %c0_i32_1 = arith.constant 0 : i32
    return %c0_i32, %c0_i32_0 : i32, i32
  }
  func.func @transform_5(%arg0: i32) -> (i32, i32) {
    %c0_i32 = arith.constant 0 : i32
    %c0_i32_0 = arith.constant 0 : i32
    %c0_i32_1 = arith.constant 0 : i32
    return %c0_i32, %c0_i32_0 : i32, i32
  }
  func.func @transform_6(%arg0: i32) -> (i32, i32) {
    %c0_i32 = arith.constant 0 : i32
    %c0_i32_0 = arith.constant 0 : i32
    %c0_i32_1 = arith.constant 0 : i32
    return %c0_i32, %c0_i32_0 : i32, i32
  }
  func.func @transform_7(%arg0: i32) -> (i32, i32) {
    %c0_i32 = arith.constant 0 : i32
    %c0_i32_0 = arith.constant 0 : i32
    %c0_i32_1 = arith.constant 0 : i32
    return %c0_i32, %c0_i32_0 : i32, i32
  }
  func.func @transform_8(%arg0: i32) -> (i32, i32) {
    %c0_i32 = arith.constant 0 : i32
    %c0_i32_0 = arith.constant 0 : i32
    %c0_i32_1 = arith.constant 0 : i32
    return %c0_i32, %c0_i32_0 : i32, i32
  }
  func.func @transform_9(%arg0: i32) -> (i32, i32) {
    %c0_i32 = arith.constant 0 : i32
    %c0_i32_0 = arith.constant 0 : i32
    %c0_i32_1 = arith.constant 0 : i32
    return %c0_i32, %c0_i32_0 : i32, i32
  }
  func.func @transform_10(%arg0: i32) -> (i32, i32) {
    %c0_i32 = arith.constant 0 : i32
    %c0_i32_0 = arith.constant 0 : i32
    %c0_i32_1 = arith.constant 0 : i32
    return %c0_i32, %c0_i32_0 : i32, i32
  }
  func.func @transform_11(%arg0: i32) -> (i32, i32) {
    %c0_i32 = arith.constant 0 : i32
    %c0_i32_0 = arith.constant 0 : i32
    %c0_i32_1 = arith.constant 0 : i32
    return %c0_i32, %c0_i32_0 : i32, i32
  }
  func.func @transform_12(%arg0: i32) -> (i32, i32, i32) {
    %c0_i32 = arith.constant 0 : i32
    %c0_i32_0 = arith.constant 0 : i32
    %c0_i32_1 = arith.constant 0 : i32
    %c0_i32_2 = arith.constant 0 : i32
    return %c0_i32, %c0_i32_0, %c0_i32_1 : i32, i32, i32
  }
  func.func @transform_13(%arg0: i32) -> (i32, i32) {
    %c0_i32 = arith.constant 0 : i32
    %c0_i32_0 = arith.constant 0 : i32
    %c0_i32_1 = arith.constant 0 : i32
    return %c0_i32, %c0_i32_0 : i32, i32
  }
  func.func @transform_14(%arg0: i32) -> (i32, i32) {
    %c0_i32 = arith.constant 0 : i32
    %c0_i32_0 = arith.constant 0 : i32
    %c0_i32_1 = arith.constant 0 : i32
    return %c0_i32, %c0_i32_0 : i32, i32
  }
  func.func @transform_15(%arg0: i32) -> (i32, i32) {
    %c0_i32 = arith.constant 0 : i32
    %c0_i32_0 = arith.constant 0 : i32
    %c0_i32_1 = arith.constant 0 : i32
    return %c0_i32, %c0_i32_0 : i32, i32
  }
  func.func @transform_16(%arg0: i32) -> (i32, i32) {
    %c0_i32 = arith.constant 0 : i32
    %c0_i32_0 = arith.constant 0 : i32
    %c0_i32_1 = arith.constant 0 : i32
    return %c0_i32, %c0_i32_0 : i32, i32
  }
  func.func @transform_17(%arg0: i32) -> (i32, i32) {
    %c0_i32 = arith.constant 0 : i32
    %c0_i32_0 = arith.constant 0 : i32
    %c0_i32_1 = arith.constant 0 : i32
    return %c0_i32, %c0_i32_0 : i32, i32
  }
  func.func @transform_18(%arg0: i32) -> (i32, i32) {
    %c0_i32 = arith.constant 0 : i32
    %c0_i32_0 = arith.constant 0 : i32
    %c0_i32_1 = arith.constant 0 : i32
    return %c0_i32, %c0_i32_0 : i32, i32
  }
  func.func @transform_19(%arg0: i32) -> (i32, i32) {
    %c0_i32 = arith.constant 0 : i32
    %c0_i32_0 = arith.constant 0 : i32
    %c0_i32_1 = arith.constant 0 : i32
    return %c0_i32, %c0_i32_0 : i32, i32
  }
  func.func @transform_20(%arg0: i32) -> (i32, i32) {
    %c0_i32 = arith.constant 0 : i32
    %c0_i32_0 = arith.constant 0 : i32
    %c0_i32_1 = arith.constant 0 : i32
    return %c0_i32, %c0_i32_0 : i32, i32
  }
  func.func @transform_21(%arg0: i32) -> (i32, i32) {
    %c0_i32 = arith.constant 0 : i32
    %c0_i32_0 = arith.constant 0 : i32
    %c0_i32_1 = arith.constant 0 : i32
    return %c0_i32, %c0_i32_0 : i32, i32
  }
  func.func @transform_22(%arg0: i32) -> (i32, i32) {
    %c0_i32 = arith.constant 0 : i32
    %c0_i32_0 = arith.constant 0 : i32
    %c0_i32_1 = arith.constant 0 : i32
    return %c0_i32, %c0_i32_0 : i32, i32
  }
  func.func @transform_23(%arg0: i32) -> (i32, i32) {
    %c0_i32 = arith.constant 0 : i32
    %c0_i32_0 = arith.constant 0 : i32
    %c0_i32_1 = arith.constant 0 : i32
    return %c0_i32, %c0_i32_0 : i32, i32
  }
  func.func @transform_24(%arg0: i32) -> (i32, i32) {
    %c0_i32 = arith.constant 0 : i32
    %c0_i32_0 = arith.constant 0 : i32
    %c0_i32_1 = arith.constant 0 : i32
    return %c0_i32, %c0_i32_0 : i32, i32
  }
  func.func @transform_25(%arg0: i32) -> (i32, i32) {
    %c0_i32 = arith.constant 0 : i32
    %c0_i32_0 = arith.constant 0 : i32
    %c0_i32_1 = arith.constant 0 : i32
    return %c0_i32, %c0_i32_0 : i32, i32
  }
  func.func @transform_26(%arg0: i32) -> (i32, i32) {
    %c0_i32 = arith.constant 0 : i32
    %c0_i32_0 = arith.constant 0 : i32
    %c0_i32_1 = arith.constant 0 : i32
    return %c0_i32, %c0_i32_0 : i32, i32
  }
  func.func @transform_27(%arg0: i32) -> (i32, i32) {
    %c0_i32 = arith.constant 0 : i32
    %c0_i32_0 = arith.constant 0 : i32
    %c0_i32_1 = arith.constant 0 : i32
    return %c0_i32, %c0_i32_0 : i32, i32
  }
  func.func @transform_28(%arg0: i32) -> (i32, i32) {
    %c0_i32 = arith.constant 0 : i32
    %c0_i32_0 = arith.constant 0 : i32
    %c0_i32_1 = arith.constant 0 : i32
    return %c0_i32, %c0_i32_0 : i32, i32
  }
  func.func @transform_29(%arg0: i32) -> (i32, i32) {
    %c0_i32 = arith.constant 0 : i32
    %c0_i32_0 = arith.constant 0 : i32
    %c0_i32_1 = arith.constant 0 : i32
    return %c0_i32, %c0_i32_0 : i32, i32
  }
  func.func @transform_30(%arg0: i32) -> (i32, i32) {
    %c0_i32 = arith.constant 0 : i32
    %c0_i32_0 = arith.constant 0 : i32
    %c0_i32_1 = arith.constant 0 : i32
    return %c0_i32, %c0_i32_0 : i32, i32
  }
  func.func @transform_31(%arg0: i32) -> (i32, i32, i32) {
    %c0_i32 = arith.constant 0 : i32
    %c0_i32_0 = arith.constant 0 : i32
    %c0_i32_1 = arith.constant 0 : i32
    return %arg0, %c0_i32, %c0_i32_0 : i32, i32, i32
  }
}

</mosaic_0001>

<llo_original>
// kernel: down_up_bone_forward.1
$region0: #{down_up_bone_forward.1}
  #allocation0 [shape = 'u32[]', space=smem, size = 0x4, offset = 0x4, fixed_abs, tag = 'smem constant byte address 0x4 - core index']
  #allocation1 [shape = 'u32[72,128]{1,0:T(1,128)}', space=vmem, size = 0x9000, scoped, tag = 'internal scratch']
  %s0 = inlined_call_operand.smem [shape: u32[32], index: -1, kind: input, shape index: {}]
  %s1 = sld [smem:[%s0]]
  %s2 = scalar_lea.smem %s0, 1
  %s3 = sld [smem:[%s2]]
  %s4 = scalar_lea.smem %s0, 2
  %s5 = sld [smem:[%s4]]
  %s6 = scalar_lea.smem %s0, 3
  %s7 = sld [smem:[%s6]]
  %s8 = scalar_lea.smem %s0, 4
  %s9 = sld [smem:[%s8]]
  %s10 = scalar_lea.smem %s0, 5
  %s11 = sld [smem:[%s10]]
  %s12 = scalar_lea.smem %s0, 6
  %s13 = sld [smem:[%s12]]
  %s14 = scalar_lea.smem %s0, 7
  %s15 = sld [smem:[%s14]]
  %s16 = scalar_lea.smem %s0, 8
  %s17 = sld [smem:[%s16]]
  %s18 = scalar_lea.smem %s0, 9
  %s19 = sld [smem:[%s18]]
  %s20 = scalar_lea.smem %s0, 10
  %s21 = sld [smem:[%s20]]
  %s22 = scalar_lea.smem %s0, 11
  %s23 = sld [smem:[%s22]]
  %s24 = scalar_lea.smem %s0, 12
  %s25 = sld [smem:[%s24]]
  %s26 = scalar_lea.smem %s0, 13
  %s27 = sld [smem:[%s26]]
  %s28 = scalar_lea.smem %s0, 14
  %s29 = sld [smem:[%s28]]
  %s30 = scalar_lea.smem %s0, 15
  %s31 = sld [smem:[%s30]]
  %s32 = scalar_lea.smem %s0, 16
  %s33 = sld [smem:[%s32]]
  %s34 = scalar_lea.smem %s0, 17
  %s35 = sld [smem:[%s34]]
  %s36 = scalar_lea.smem %s0, 18
  %s37 = sld [smem:[%s36]]
  %s38 = scalar_lea.smem %s0, 19
  %s39 = sld [smem:[%s38]]
  %s40 = scalar_lea.smem %s0, 20
  %s41 = sld [smem:[%s40]]
  %s42 = scalar_lea.smem %s0, 21
  %s43 = sld [smem:[%s42]]
  %s44 = scalar_lea.smem %s0, 22
  %s45 = sld [smem:[%s44]]
  %s46 = scalar_lea.smem %s0, 23
  %s47 = sld [smem:[%s46]]
  %s48 = scalar_lea.smem %s0, 24
  %s49 = sld [smem:[%s48]]
  %s50 = scalar_lea.smem %s0, 25
  %s51 = sld [smem:[%s50]]
  %s52 = scalar_lea.smem %s0, 26
  %s53 = sld [smem:[%s52]]
  %s54 = scalar_lea.smem %s0, 27
  %s55 = sld [smem:[%s54]]
  %s56 = scalar_lea.smem %s0, 28
  %s57 = sld [smem:[%s56]]
  %s58 = scalar_lea.smem %s0, 29
  %s59 = sld [smem:[%s58]]
  %s60 = scalar_lea.smem %s0, 30
  %s61 = sld [smem:[%s60]]
  %s62 = scalar_lea.smem %s0, 31
  %s63 = sld [smem:[%s62]]
  %s64 = sld [smem:[#allocation0]]
  $region157: #{down_up_bone_forward.1} parent=0
    _
  %s66 = ssub.s32 1, %s64
  %s67 = scalar_select 0, %s66, %s64
  loop: start=0, step=1, limit=4
  $region2: #{down_up_bone_forward.1} parent=0 // loop_pre_header
    _
  $region3: #{down_up_bone_forward.1} parent=0 // loop_header
    %s69 = sphi 0, %s73
    %p70 = scmp.ge.s32.totalorder %s69, 4
    %s79 = sphi 0, %s81
    %s82 = sphi 0, %s79
    %s83 = sphi 0, %s82
    %s99 = sphi 0, %s83
    %s103 = sphi 0, %s103
    %s105 = sphi 0, %s103
    %s106 = sphi 0, %s105
    %s120 = sphi 0, %s106
    %s124 = sphi 0, %s124
    %s126 = sphi 0, %s124
    %s127 = sphi 0, %s126
    %s141 = sphi 0, %s127
    %s145 = sphi 0, %s145
    %s147 = sphi 0, %s145
    %s148 = sphi 0, %s147
    %s162 = sphi 0, %s148
    %s166 = sphi 0, %s166
    %s168 = sphi 0, %s166
    %s169 = sphi 0, %s168
    %s183 = sphi 0, %s169
    %s187 = sphi 0, %s187
    %s189 = sphi 0, %s187
    %s190 = sphi 0, %s189
    %s204 = sphi 0, %s190
    %s208 = sphi 0, %s208
    %s210 = sphi 0, %s208
    %s211 = sphi 0, %s210
    %s225 = sphi 0, %s211
    %s229 = sphi 0, %s229
    %s231 = sphi 0, %s229
    %s232 = sphi 0, %s231
    %s246 = sphi 0, %s232
    %s250 = sphi 0, %s250
    %s252 = sphi 0, %s250
    %s253 = sphi 0, %s252
    %s267 = sphi 0, %s253
    %s271 = sphi 0, %s271
    %s273 = sphi 0, %s271
    %s274 = sphi 0, %s273
    %s288 = sphi 0, %s274
    %s292 = sphi 0, %s292
    %s294 = sphi 0, %s292
    %s295 = sphi 0, %s294
    %s309 = sphi 0, %s295
    %s313 = sphi 0, %s313
    %s315 = sphi 0, %s313
    %s316 = sphi 0, %s315
    %s330 = sphi 0, %s316
    %s334 = sphi 0, %s334
    %s336 = sphi 0, %s334
    %s337 = sphi 0, %s336
    %s351 = sphi 0, %s337
    %s355 = sphi 0, %s355
    %s357 = sphi 0, %s355
    %s358 = sphi 0, %s357
    %s372 = sphi 0, %s358
    %s376 = sphi 0, %s376
    %s378 = sphi 0, %s376
    %s379 = sphi 0, %s378
    %s393 = sphi 0, %s379
    %s397 = sphi 0, %s397
    %s399 = sphi 0, %s397
    %s400 = sphi 0, %s399
    %s414 = sphi 0, %s400
    %s418 = sphi 0, %s418
    %s420 = sphi 0, %s418
    %s421 = sphi 0, %s420
    %s435 = sphi 0, %s421
    %s439 = sphi 0, %s439
    %s441 = sphi 0, %s439
    %s442 = sphi 0, %s441
    %s456 = sphi 0, %s442
    %s460 = sphi 0, %s460
    %s462 = sphi 0, %s460
    %s463 = sphi 0, %s462
    %s477 = sphi 0, %s463
    %s481 = sphi 0, %s481
    %s483 = sphi 0, %s481
    %s484 = sphi 0, %s483
    %s498 = sphi 0, %s484
    %s502 = sphi 0, %s502
    %s504 = sphi 0, %s502
    %s505 = sphi 0, %s504
    %s519 = sphi 0, %s505
    %s523 = sphi 0, %s523
    %s525 = sphi 0, %s523
    %s526 = sphi 0, %s525
    %s540 = sphi 0, %s526
    %s544 = sphi 0, %s544
    %s546 = sphi 0, %s544
    %s547 = sphi 0, %s546
    %s561 = sphi 0, %s547
    %s565 = sphi 0, %s565
    %s567 = sphi 0, %s565
    %s568 = sphi 0, %s567
    %s582 = sphi 0, %s568
    %s586 = sphi 0, %s586
    %s588 = sphi 0, %s586
    %s589 = sphi 0, %s588
    %s603 = sphi 0, %s589
    %s607 = sphi 0, %s607
    %s609 = sphi 0, %s607
    %s610 = sphi 0, %s609
    %s624 = sphi 0, %s610
    %s628 = sphi 0, %s628
    %s630 = sphi 0, %s628
    %s631 = sphi 0, %s630
    %s645 = sphi 0, %s631
    %s649 = sphi 0, %s649
    %s651 = sphi 0, %s649
    %s652 = sphi 0, %s651
    %s666 = sphi 0, %s652
    %s670 = sphi 0, %s670
    %s672 = sphi 0, %s670
    %s673 = sphi 0, %s672
    %s687 = sphi 0, %s673
    %s691 = sphi 0, %s691
    %s693 = sphi 0, %s691
    %s694 = sphi 0, %s693
    %s708 = sphi 0, %s694
    %s712 = sphi 0, %s712
    %s714 = sphi 0, %s712
    %s715 = sphi 0, %s714
    %s729 = sphi 0, %s715
    %s735 = sphi 0, %s737
    %s738 = sphi 0, %s735
    %s739 = sphi 0, %s738
    %s755 = sphi 0, %s739
  $region4: #{down_up_bone_forward.1} parent=0 // loop_header_branch
    %72 = sbr.rel (%p70) target = $region8
  $region5: #{down_up_bone_forward.1} parent=0 // loop_body
    %s74 = ssub.s32 %s69, 1
    %s75 = ssub.s32 %s69, 2
    %s76 = sadd.s32 %s69, 1
    %s77 = ssub.s32 %s69, %s76
    %p78 = scmp.eq.s32.totalorder %s77, 0
    %s80 = sadd.s32 %s79, 1
    %s81 = scalar_select %p78, %s79, %s80
    %p84 = pneg %p78
    %p85 = scmp.eq.s32.totalorder %s69, 1
    %p86 = por %p84, %p85
    %p87 = scmp.ne.s32.totalorder %s79, %s82
    %p88 = scmp.eq.s32.totalorder %s69, 0
    %p89 = por %p87, %p88
    %p90 = scmp.ne.s32.totalorder %s79, %s82
    %p91 = scmp.eq.s32.totalorder %s74, 1
    %p92 = por %p90, %p91
    %p93 = scmp.ne.s32.totalorder %s82, %s83
    %p94 = scmp.eq.s32.totalorder %s74, 0
    %p95 = por %p93, %p94
    %p96 = scmp.ne.s32.totalorder %s82, %s83
    %p97 = scmp.eq.s32.totalorder %s75, 1
    %p98 = por %p96, %p97
    %p100 = scmp.ne.s32.totalorder %s83, %s99
    %p101 = scmp.eq.s32.totalorder %s75, 0
    %p102 = por %p100, %p101
    %s104 = sadd.s32 %s103, 1
    %p107 = scmp.eq.s32.totalorder %s69, 1
    %p108 = scmp.ne.s32.totalorder %s103, %s105
    %p109 = scmp.eq.s32.totalorder %s69, 0
    %p110 = por %p108, %p109
    %p111 = scmp.ne.s32.totalorder %s103, %s105
    %p112 = scmp.eq.s32.totalorder %s74, 1
    %p113 = por %p111, %p112
    %p114 = scmp.ne.s32.totalorder %s105, %s106
    %p115 = scmp.eq.s32.totalorder %s74, 0
    %p116 = por %p114, %p115
    %p117 = scmp.ne.s32.totalorder %s105, %s106
    %p118 = scmp.eq.s32.totalorder %s75, 1
    %p119 = por %p117, %p118
    %p121 = scmp.ne.s32.totalorder %s106, %s120
    %p122 = scmp.eq.s32.totalorder %s75, 0
    %p123 = por %p121, %p122
    %s125 = sadd.s32 %s124, 1
    %p128 = scmp.eq.s32.totalorder %s69, 1
    %p129 = scmp.ne.s32.totalorder %s124, %s126
    %p130 = scmp.eq.s32.totalorder %s69, 0
    %p131 = por %p129, %p130
    %p132 = scmp.ne.s32.totalorder %s124, %s126
    %p133 = scmp.eq.s32.totalorder %s74, 1
    %p134 = por %p132, %p133
    %p135 = scmp.ne.s32.totalorder %s126, %s127
    %p136 = scmp.eq.s32.totalorder %s74, 0
    %p137 = por %p135, %p136
    %p138 = scmp.ne.s32.totalorder %s126, %s127
    %p139 = scmp.eq.s32.totalorder %s75, 1
    %p140 = por %p138, %p139
    %p142 = scmp.ne.s32.totalorder %s127, %s141
    %p143 = scmp.eq.s32.totalorder %s75, 0
    %p144 = por %p142, %p143
    %s146 = sadd.s32 %s145, 1
    %p149 = scmp.eq.s32.totalorder %s69, 1
    %p150 = scmp.ne.s32.totalorder %s145, %s147
    %p151 = scmp.eq.s32.totalorder %s69, 0
    %p152 = por %p150, %p151
    %p153 = scmp.ne.s32.totalorder %s145, %s147
    %p154 = scmp.eq.s32.totalorder %s74, 1
    %p155 = por %p153, %p154
    %p156 = scmp.ne.s32.totalorder %s147, %s148
    %p157 = scmp.eq.s32.totalorder %s74, 0
    %p158 = por %p156, %p157
    %p159 = scmp.ne.s32.totalorder %s147, %s148
    %p160 = scmp.eq.s32.totalorder %s75, 1
    %p161 = por %p159, %p160
    %p163 = scmp.ne.s32.totalorder %s148, %s162
    %p164 = scmp.eq.s32.totalorder %s75, 0
    %p165 = por %p163, %p164
    %s167 = sadd.s32 %s166, 1
    %p170 = scmp.eq.s32.totalorder %s69, 1
    %p171 = scmp.ne.s32.totalorder %s166, %s168
    %p172 = scmp.eq.s32.totalorder %s69, 0
    %p173 = por %p171, %p172
    %p174 = scmp.ne.s32.totalorder %s166, %s168
    %p175 = scmp.eq.s32.totalorder %s74, 1
    %p176 = por %p174, %p175
    %p177 = scmp.ne.s32.totalorder %s168, %s169
    %p178 = scmp.eq.s32.totalorder %s74, 0
    %p179 = por %p177, %p178
    %p180 = scmp.ne.s32.totalorder %s168, %s169
    %p181 = scmp.eq.s32.totalorder %s75, 1
    %p182 = por %p180, %p181
    %p184 = scmp.ne.s32.totalorder %s169, %s183
    %p185 = scmp.eq.s32.totalorder %s75, 0
    %p186 = por %p184, %p185
    %s188 = sadd.s32 %s187, 1
    %p191 = scmp.eq.s32.totalorder %s69, 1
    %p192 = scmp.ne.s32.totalorder %s187, %s189
    %p193 = scmp.eq.s32.totalorder %s69, 0
    %p194 = por %p192, %p193
    %p195 = scmp.ne.s32.totalorder %s187, %s189
    %p196 = scmp.eq.s32.totalorder %s74, 1
    %p197 = por %p195, %p196
    %p198 = scmp.ne.s32.totalorder %s189, %s190
    %p199 = scmp.eq.s32.totalorder %s74, 0
    %p200 = por %p198, %p199
    %p201 = scmp.ne.s32.totalorder %s189, %s190
    %p202 = scmp.eq.s32.totalorder %s75, 1
    %p203 = por %p201, %p202
    %p205 = scmp.ne.s32.totalorder %s190, %s204
    %p206 = scmp.eq.s32.totalorder %s75, 0
    %p207 = por %p205, %p206
    %s209 = sadd.s32 %s208, 1
    %p212 = scmp.eq.s32.totalorder %s69, 1
    %p213 = scmp.ne.s32.totalorder %s208, %s210
    %p214 = scmp.eq.s32.totalorder %s69, 0
    %p215 = por %p213, %p214
    %p216 = scmp.ne.s32.totalorder %s208, %s210
    %p217 = scmp.eq.s32.totalorder %s74, 1
    %p218 = por %p216, %p217
    %p219 = scmp.ne.s32.totalorder %s210, %s211
    %p220 = scmp.eq.s32.totalorder %s74, 0
    %p221 = por %p219, %p220
    %p222 = scmp.ne.s32.totalorder %s210, %s211
    %p223 = scmp.eq.s32.totalorder %s75, 1
    %p224 = por %p222, %p223
    %p226 = scmp.ne.s32.totalorder %s211, %s225
    %p227 = scmp.eq.s32.totalorder %s75, 0
    %p228 = por %p226, %p227
    %s230 = sadd.s32 %s229, 1
    %p233 = scmp.eq.s32.totalorder %s69, 1
    %p234 = scmp.ne.s32.totalorder %s229, %s231
    %p235 = scmp.eq.s32.totalorder %s69, 0
    %p236 = por %p234, %p235
    %p237 = scmp.ne.s32.totalorder %s229, %s231
    %p238 = scmp.eq.s32.totalorder %s74, 1
    %p239 = por %p237, %p238
    %p240 = scmp.ne.s32.totalorder %s231, %s232
    %p241 = scmp.eq.s32.totalorder %s74, 0
    %p242 = por %p240, %p241
    %p243 = scmp.ne.s32.totalorder %s231, %s232
    %p244 = scmp.eq.s32.totalorder %s75, 1
    %p245 = por %p243, %p244
    %p247 = scmp.ne.s32.totalorder %s232, %s246
    %p248 = scmp.eq.s32.totalorder %s75, 0
    %p249 = por %p247, %p248
    %s251 = sadd.s32 %s250, 1
    %p254 = scmp.eq.s32.totalorder %s69, 1
    %p255 = scmp.ne.s32.totalorder %s250, %s252
    %p256 = scmp.eq.s32.totalorder %s69, 0
    %p257 = por %p255, %p256
    %p258 = scmp.ne.s32.totalorder %s250, %s252
    %p259 = scmp.eq.s32.totalorder %s74, 1
    %p260 = por %p258, %p259
    %p261 = scmp.ne.s32.totalorder %s252, %s253
    %p262 = scmp.eq.s32.totalorder %s74, 0
    %p263 = por %p261, %p262
    %p264 = scmp.ne.s32.totalorder %s252, %s253
    %p265 = scmp.eq.s32.totalorder %s75, 1
    %p266 = por %p264, %p265
    %p268 = scmp.ne.s32.totalorder %s253, %s267
    %p269 = scmp.eq.s32.totalorder %s75, 0
    %p270 = por %p268, %p269
    %s272 = sadd.s32 %s271, 1
    %p275 = scmp.eq.s32.totalorder %s69, 1
    %p276 = scmp.ne.s32.totalorder %s271, %s273
    %p277 = scmp.eq.s32.totalorder %s69, 0
    %p278 = por %p276, %p277
    %p279 = scmp.ne.s32.totalorder %s271, %s273
    %p280 = scmp.eq.s32.totalorder %s74, 1
    %p281 = por %p279, %p280
    %p282 = scmp.ne.s32.totalorder %s273, %s274
    %p283 = scmp.eq.s32.totalorder %s74, 0
    %p284 = por %p282, %p283
    %p285 = scmp.ne.s32.totalorder %s273, %s274
    %p286 = scmp.eq.s32.totalorder %s75, 1
    %p287 = por %p285, %p286
    %p289 = scmp.ne.s32.totalorder %s274, %s288
    %p290 = scmp.eq.s32.totalorder %s75, 0
    %p291 = por %p289, %p290
    %s293 = sadd.s32 %s292, 1
    %p296 = scmp.eq.s32.totalorder %s69, 1
    %p297 = scmp.ne.s32.totalorder %s292, %s294
    %p298 = scmp.eq.s32.totalorder %s69, 0
    %p299 = por %p297, %p298
    %p300 = scmp.ne.s32.totalorder %s292, %s294
    %p301 = scmp.eq.s32.totalorder %s74, 1
    %p302 = por %p300, %p301
    %p303 = scmp.ne.s32.totalorder %s294, %s295
    %p304 = scmp.eq.s32.totalorder %s74, 0
    %p305 = por %p303, %p304
    %p306 = scmp.ne.s32.totalorder %s294, %s295
    %p307 = scmp.eq.s32.totalorder %s75, 1
    %p308 = por %p306, %p307
    %p310 = scmp.ne.s32.totalorder %s295, %s309
    %p311 = scmp.eq.s32.totalorder %s75, 0
    %p312 = por %p310, %p311
    %s314 = sadd.s32 %s313, 1
    %p317 = scmp.eq.s32.totalorder %s69, 1
    %p318 = scmp.ne.s32.totalorder %s313, %s315
    %p319 = scmp.eq.s32.totalorder %s69, 0
    %p320 = por %p318, %p319
    %p321 = scmp.ne.s32.totalorder %s313, %s315
    %p322 = scmp.eq.s32.totalorder %s74, 1
    %p323 = por %p321, %p322
    %p324 = scmp.ne.s32.totalorder %s315, %s316
    %p325 = scmp.eq.s32.totalorder %s74, 0
    %p326 = por %p324, %p325
    %p327 = scmp.ne.s32.totalorder %s315, %s316
    %p328 = scmp.eq.s32.totalorder %s75, 1
    %p329 = por %p327, %p328
    %p331 = scmp.ne.s32.totalorder %s316, %s330
    %p332 = scmp.eq.s32.totalorder %s75, 0
    %p333 = por %p331, %p332
    %s335 = sadd.s32 %s334, 1
    %p338 = scmp.eq.s32.totalorder %s69, 1
    %p339 = scmp.ne.s32.totalorder %s334, %s336
    %p340 = scmp.eq.s32.totalorder %s69, 0
    %p341 = por %p339, %p340
    %p342 = scmp.ne.s32.totalorder %s334, %s336
    %p343 = scmp.eq.s32.totalorder %s74, 1
    %p344 = por %p342, %p343
    %p345 = scmp.ne.s32.totalorder %s336, %s337
    %p346 = scmp.eq.s32.totalorder %s74, 0
    %p347 = por %p345, %p346
    %p348 = scmp.ne.s32.totalorder %s336, %s337
    %p349 = scmp.eq.s32.totalorder %s75, 1
    %p350 = por %p348, %p349
    %p352 = scmp.ne.s32.totalorder %s337, %s351
    %p353 = scmp.eq.s32.totalorder %s75, 0
    %p354 = por %p352, %p353
    %s356 = sadd.s32 %s355, 1
    %p359 = scmp.eq.s32.totalorder %s69, 1
    %p360 = scmp.ne.s32.totalorder %s355, %s357
    %p361 = scmp.eq.s32.totalorder %s69, 0
    %p362 = por %p360, %p361
    %p363 = scmp.ne.s32.totalorder %s355, %s357
    %p364 = scmp.eq.s32.totalorder %s74, 1
    %p365 = por %p363, %p364
    %p366 = scmp.ne.s32.totalorder %s357, %s358
    %p367 = scmp.eq.s32.totalorder %s74, 0
    %p368 = por %p366, %p367
    %p369 = scmp.ne.s32.totalorder %s357, %s358
    %p370 = scmp.eq.s32.totalorder %s75, 1
    %p371 = por %p369, %p370
    %p373 = scmp.ne.s32.totalorder %s358, %s372
    %p374 = scmp.eq.s32.totalorder %s75, 0
    %p375 = por %p373, %p374
    %s377 = sadd.s32 %s376, 1
    %p380 = scmp.eq.s32.totalorder %s69, 1
    %p381 = scmp.ne.s32.totalorder %s376, %s378
    %p382 = scmp.eq.s32.totalorder %s69, 0
    %p383 = por %p381, %p382
    %p384 = scmp.ne.s32.totalorder %s376, %s378
    %p385 = scmp.eq.s32.totalorder %s74, 1
    %p386 = por %p384, %p385
    %p387 = scmp.ne.s32.totalorder %s378, %s379
    %p388 = scmp.eq.s32.totalorder %s74, 0
    %p389 = por %p387, %p388
    %p390 = scmp.ne.s32.totalorder %s378, %s379
    %p391 = scmp.eq.s32.totalorder %s75, 1
    %p392 = por %p390, %p391
    %p394 = scmp.ne.s32.totalorder %s379, %s393
    %p395 = scmp.eq.s32.totalorder %s75, 0
    %p396 = por %p394, %p395
    %s398 = sadd.s32 %s397, 1
    %p401 = scmp.eq.s32.totalorder %s69, 1
    %p402 = scmp.ne.s32.totalorder %s397, %s399
    %p403 = scmp.eq.s32.totalorder %s69, 0
    %p404 = por %p402, %p403
    %p405 = scmp.ne.s32.totalorder %s397, %s399
    %p406 = scmp.eq.s32.totalorder %s74, 1
    %p407 = por %p405, %p406
    %p408 = scmp.ne.s32.totalorder %s399, %s400
    %p409 = scmp.eq.s32.totalorder %s74, 0
    %p410 = por %p408, %p409
    %p411 = scmp.ne.s32.totalorder %s399, %s400
    %p412 = scmp.eq.s32.totalorder %s75, 1
    %p413 = por %p411, %p412
    %p415 = scmp.ne.s32.totalorder %s400, %s414
    %p416 = scmp.eq.s32.totalorder %s75, 0
    %p417 = por %p415, %p416
    %s419 = sadd.s32 %s418, 1
    %p422 = scmp.eq.s32.totalorder %s69, 1
    %p423 = scmp.ne.s32.totalorder %s418, %s420
    %p424 = scmp.eq.s32.totalorder %s69, 0
    %p425 = por %p423, %p424
    %p426 = scmp.ne.s32.totalorder %s418, %s420
    %p427 = scmp.eq.s32.totalorder %s74, 1
    %p428 = por %p426, %p427
    %p429 = scmp.ne.s32.totalorder %s420, %s421
    %p430 = scmp.eq.s32.totalorder %s74, 0
    %p431 = por %p429, %p430
    %p432 = scmp.ne.s32.totalorder %s420, %s421
    %p433 = scmp.eq.s32.totalorder %s75, 1
    %p434 = por %p432, %p433
    %p436 = scmp.ne.s32.totalorder %s421, %s435
    %p437 = scmp.eq.s32.totalorder %s75, 0
    %p438 = por %p436, %p437
    %s440 = sadd.s32 %s439, 1
    %p443 = scmp.eq.s32.totalorder %s69, 1
    %p444 = scmp.ne.s32.totalorder %s439, %s441
    %p445 = scmp.eq.s32.totalorder %s69, 0
    %p446 = por %p444, %p445
    %p447 = scmp.ne.s32.totalorder %s439, %s441
    %p448 = scmp.eq.s32.totalorder %s74, 1
    %p449 = por %p447, %p448
    %p450 = scmp.ne.s32.totalorder %s441, %s442
    %p451 = scmp.eq.s32.totalorder %s74, 0
    %p452 = por %p450, %p451
    %p453 = scmp.ne.s32.totalorder %s441, %s442
    %p454 = scmp.eq.s32.totalorder %s75, 1
    %p455 = por %p453, %p454
    %p457 = scmp.ne.s32.totalorder %s442, %s456
    %p458 = scmp.eq.s32.totalorder %s75, 0
    %p459 = por %p457, %p458
    %s461 = sadd.s32 %s460, 1
    %p464 = scmp.eq.s32.totalorder %s69, 1
    %p465 = scmp.ne.s32.totalorder %s460, %s462
    %p466 = scmp.eq.s32.totalorder %s69, 0
    %p467 = por %p465, %p466
    %p468 = scmp.ne.s32.totalorder %s460, %s462
    %p469 = scmp.eq.s32.totalorder %s74, 1
    %p470 = por %p468, %p469
    %p471 = scmp.ne.s32.totalorder %s462, %s463
    %p472 = scmp.eq.s32.totalorder %s74, 0
    %p473 = por %p471, %p472
    %p474 = scmp.ne.s32.totalorder %s462, %s463
    %p475 = scmp.eq.s32.totalorder %s75, 1
    %p476 = por %p474, %p475
    %p478 = scmp.ne.s32.totalorder %s463, %s477
    %p479 = scmp.eq.s32.totalorder %s75, 0
    %p480 = por %p478, %p479
    %s482 = sadd.s32 %s481, 1
    %p485 = scmp.eq.s32.totalorder %s69, 1
    %p486 = scmp.ne.s32.totalorder %s481, %s483
    %p487 = scmp.eq.s32.totalorder %s69, 0
    %p488 = por %p486, %p487
    %p489 = scmp.ne.s32.totalorder %s481, %s483
    %p490 = scmp.eq.s32.totalorder %s74, 1
    %p491 = por %p489, %p490
    %p492 = scmp.ne.s32.totalorder %s483, %s484
    %p493 = scmp.eq.s32.totalorder %s74, 0
    %p494 = por %p492, %p493
    %p495 = scmp.ne.s32.totalorder %s483, %s484
    %p496 = scmp.eq.s32.totalorder %s75, 1
    %p497 = por %p495, %p496
    %p499 = scmp.ne.s32.totalorder %s484, %s498
    %p500 = scmp.eq.s32.totalorder %s75, 0
    %p501 = por %p499, %p500
    %s503 = sadd.s32 %s502, 1
    %p506 = scmp.eq.s32.totalorder %s69, 1
    %p507 = scmp.ne.s32.totalorder %s502, %s504
    %p508 = scmp.eq.s32.totalorder %s69, 0
    %p509 = por %p507, %p508
    %p510 = scmp.ne.s32.totalorder %s502, %s504
    %p511 = scmp.eq.s32.totalorder %s74, 1
    %p512 = por %p510, %p511
    %p513 = scmp.ne.s32.totalorder %s504, %s505
    %p514 = scmp.eq.s32.totalorder %s74, 0
    %p515 = por %p513, %p514
    %p516 = scmp.ne.s32.totalorder %s504, %s505
    %p517 = scmp.eq.s32.totalorder %s75, 1
    %p518 = por %p516, %p517
    %p520 = scmp.ne.s32.totalorder %s505, %s519
    %p521 = scmp.eq.s32.totalorder %s75, 0
    %p522 = por %p520, %p521
    %s524 = sadd.s32 %s523, 1
    %p527 = scmp.eq.s32.totalorder %s69, 1
    %p528 = scmp.ne.s32.totalorder %s523, %s525
    %p529 = scmp.eq.s32.totalorder %s69, 0
    %p530 = por %p528, %p529
    %p531 = scmp.ne.s32.totalorder %s523, %s525
    %p532 = scmp.eq.s32.totalorder %s74, 1
    %p533 = por %p531, %p532
    %p534 = scmp.ne.s32.totalorder %s525, %s526
    %p535 = scmp.eq.s32.totalorder %s74, 0
    %p536 = por %p534, %p535
    %p537 = scmp.ne.s32.totalorder %s525, %s526
    %p538 = scmp.eq.s32.totalorder %s75, 1
    %p539 = por %p537, %p538
    %p541 = scmp.ne.s32.totalorder %s526, %s540
    %p542 = scmp.eq.s32.totalorder %s75, 0
    %p543 = por %p541, %p542
    %s545 = sadd.s32 %s544, 1
    %p548 = scmp.eq.s32.totalorder %s69, 1
    %p549 = scmp.ne.s32.totalorder %s544, %s546
    %p550 = scmp.eq.s32.totalorder %s69, 0
    %p551 = por %p549, %p550
    %p552 = scmp.ne.s32.totalorder %s544, %s546
    %p553 = scmp.eq.s32.totalorder %s74, 1
    %p554 = por %p552, %p553
    %p555 = scmp.ne.s32.totalorder %s546, %s547
    %p556 = scmp.eq.s32.totalorder %s74, 0
    %p557 = por %p555, %p556
    %p558 = scmp.ne.s32.totalorder %s546, %s547
    %p559 = scmp.eq.s32.totalorder %s75, 1
    %p560 = por %p558, %p559
    %p562 = scmp.ne.s32.totalorder %s547, %s561
    %p563 = scmp.eq.s32.totalorder %s75, 0
    %p564 = por %p562, %p563
    %s566 = sadd.s32 %s565, 1
    %p569 = scmp.eq.s32.totalorder %s69, 1
    %p570 = scmp.ne.s32.totalorder %s565, %s567
    %p571 = scmp.eq.s32.totalorder %s69, 0
    %p572 = por %p570, %p571
    %p573 = scmp.ne.s32.totalorder %s565, %s567
    %p574 = scmp.eq.s32.totalorder %s74, 1
    %p575 = por %p573, %p574
    %p576 = scmp.ne.s32.totalorder %s567, %s568
    %p577 = scmp.eq.s32.totalorder %s74, 0
    %p578 = por %p576, %p577
    %p579 = scmp.ne.s32.totalorder %s567, %s568
    %p580 = scmp.eq.s32.totalorder %s75, 1
    %p581 = por %p579, %p580
    %p583 = scmp.ne.s32.totalorder %s568, %s582
    %p584 = scmp.eq.s32.totalorder %s75, 0
    %p585 = por %p583, %p584
    %s587 = sadd.s32 %s586, 1
    %p590 = scmp.eq.s32.totalorder %s69, 1
    %p591 = scmp.ne.s32.totalorder %s586, %s588
    %p592 = scmp.eq.s32.totalorder %s69, 0
    %p593 = por %p591, %p592
    %p594 = scmp.ne.s32.totalorder %s586, %s588
    %p595 = scmp.eq.s32.totalorder %s74, 1
    %p596 = por %p594, %p595
    %p597 = scmp.ne.s32.totalorder %s588, %s589
    %p598 = scmp.eq.s32.totalorder %s74, 0
    %p599 = por %p597, %p598
    %p600 = scmp.ne.s32.totalorder %s588, %s589
    %p601 = scmp.eq.s32.totalorder %s75, 1
    %p602 = por %p600, %p601
    %p604 = scmp.ne.s32.totalorder %s589, %s603
    %p605 = scmp.eq.s32.totalorder %s75, 0
    %p606 = por %p604, %p605
    %s608 = sadd.s32 %s607, 1
    %p611 = scmp.eq.s32.totalorder %s69, 1
    %p612 = scmp.ne.s32.totalorder %s607, %s609
    %p613 = scmp.eq.s32.totalorder %s69, 0
    %p614 = por %p612, %p613
    %p615 = scmp.ne.s32.totalorder %s607, %s609
    %p616 = scmp.eq.s32.totalorder %s74, 1
    %p617 = por %p615, %p616
    %p618 = scmp.ne.s32.totalorder %s609, %s610
    %p619 = scmp.eq.s32.totalorder %s74, 0
    %p620 = por %p618, %p619
    %p621 = scmp.ne.s32.totalorder %s609, %s610
    %p622 = scmp.eq.s32.totalorder %s75, 1
    %p623 = por %p621, %p622
    %p625 = scmp.ne.s32.totalorder %s610, %s624
    %p626 = scmp.eq.s32.totalorder %s75, 0
    %p627 = por %p625, %p626
    %s629 = sadd.s32 %s628, 1
    %p632 = scmp.eq.s32.totalorder %s69, 1
    %p633 = scmp.ne.s32.totalorder %s628, %s630
    %p634 = scmp.eq.s32.totalorder %s69, 0
    %p635 = por %p633, %p634
    %p636 = scmp.ne.s32.totalorder %s628, %s630
    %p637 = scmp.eq.s32.totalorder %s74, 1
    %p638 = por %p636, %p637
    %p639 = scmp.ne.s32.totalorder %s630, %s631
    %p640 = scmp.eq.s32.totalorder %s74, 0
    %p641 = por %p639, %p640
    %p642 = scmp.ne.s32.totalorder %s630, %s631
    %p643 = scmp.eq.s32.totalorder %s75, 1
    %p644 = por %p642, %p643
    %p646 = scmp.ne.s32.totalorder %s631, %s645
    %p647 = scmp.eq.s32.totalorder %s75, 0
    %p648 = por %p646, %p647
    %s650 = sadd.s32 %s649, 1
    %p653 = scmp.eq.s32.totalorder %s69, 1
    %p654 = scmp.ne.s32.totalorder %s649, %s651
    %p655 = scmp.eq.s32.totalorder %s69, 0
    %p656 = por %p654, %p655
    %p657 = scmp.ne.s32.totalorder %s649, %s651
    %p658 = scmp.eq.s32.totalorder %s74, 1
    %p659 = por %p657, %p658
    %p660 = scmp.ne.s32.totalorder %s651, %s652
    %p661 = scmp.eq.s32.totalorder %s74, 0
    %p662 = por %p660, %p661
    %p663 = scmp.ne.s32.totalorder %s651, %s652
    %p664 = scmp.eq.s32.totalorder %s75, 1
    %p665 = por %p663, %p664
    %p667 = scmp.ne.s32.totalorder %s652, %s666
    %p668 = scmp.eq.s32.totalorder %s75, 0
    %p669 = por %p667, %p668
    %s671 = sadd.s32 %s670, 1
    %p674 = scmp.eq.s32.totalorder %s69, 1
    %p675 = scmp.ne.s32.totalorder %s670, %s672
    %p676 = scmp.eq.s32.totalorder %s69, 0
    %p677 = por %p675, %p676
    %p678 = scmp.ne.s32.totalorder %s670, %s672
    %p679 = scmp.eq.s32.totalorder %s74, 1
    %p680 = por %p678, %p679
    %p681 = scmp.ne.s32.totalorder %s672, %s673
    %p682 = scmp.eq.s32.totalorder %s74, 0
    %p683 = por %p681, %p682
    %p684 = scmp.ne.s32.totalorder %s672, %s673
    %p685 = scmp.eq.s32.totalorder %s75, 1
    %p686 = por %p684, %p685
    %p688 = scmp.ne.s32.totalorder %s673, %s687
    %p689 = scmp.eq.s32.totalorder %s75, 0
    %p690 = por %p688, %p689
    %s692 = sadd.s32 %s691, 1
    %p695 = scmp.eq.s32.totalorder %s69, 1
    %p696 = scmp.ne.s32.totalorder %s691, %s693
    %p697 = scmp.eq.s32.totalorder %s69, 0
    %p698 = por %p696, %p697
    %p699 = scmp.ne.s32.totalorder %s691, %s693
    %p700 = scmp.eq.s32.totalorder %s74, 1
    %p701 = por %p699, %p700
    %p702 = scmp.ne.s32.totalorder %s693, %s694
    %p703 = scmp.eq.s32.totalorder %s74, 0
    %p704 = por %p702, %p703
    %p705 = scmp.ne.s32.totalorder %s693, %s694
    %p706 = scmp.eq.s32.totalorder %s75, 1
    %p707 = por %p705, %p706
    %p709 = scmp.ne.s32.totalorder %s694, %s708
    %p710 = scmp.eq.s32.totalorder %s75, 0
    %p711 = por %p709, %p710
    %s713 = sadd.s32 %s712, 1
    %p716 = scmp.eq.s32.totalorder %s69, 1
    %p717 = scmp.ne.s32.totalorder %s712, %s714
    %p718 = scmp.eq.s32.totalorder %s69, 0
    %p719 = por %p717, %p718
    %p720 = scmp.ne.s32.totalorder %s712, %s714
    %p721 = scmp.eq.s32.totalorder %s74, 1
    %p722 = por %p720, %p721
    %p723 = scmp.ne.s32.totalorder %s714, %s715
    %p724 = scmp.eq.s32.totalorder %s74, 0
    %p725 = por %p723, %p724
    %p726 = scmp.ne.s32.totalorder %s714, %s715
    %p727 = scmp.eq.s32.totalorder %s75, 1
    %p728 = por %p726, %p727
    %p730 = scmp.ne.s32.totalorder %s715, %s729
    %p731 = scmp.eq.s32.totalorder %s75, 0
    %p732 = por %p730, %p731
    %s733 = ssub.s32 %s69, %s76
    %p734 = scmp.eq.s32.totalorder %s733, 0
    %s736 = sadd.s32 %s735, 1
    %s737 = scalar_select %p734, %s735, %s736
    %p740 = pneg %p734
    %p741 = scmp.eq.s32.totalorder %s69, 1
    %p742 = por %p740, %p741
    %p743 = scmp.ne.s32.totalorder %s735, %s738
    %p744 = scmp.eq.s32.totalorder %s69, 0
    %p745 = por %p743, %p744
    %p746 = scmp.ne.s32.totalorder %s735, %s738
    %p747 = scmp.eq.s32.totalorder %s74, 1
    %p748 = por %p746, %p747
    %p749 = scmp.ne.s32.totalorder %s738, %s739
    %p750 = scmp.eq.s32.totalorder %s74, 0
    %p751 = por %p749, %p750
    %p752 = scmp.ne.s32.totalorder %s738, %s739
    %p753 = scmp.eq.s32.totalorder %s75, 1
    %p754 = por %p752, %p753
    %p756 = scmp.ne.s32.totalorder %s739, %s755
    %p757 = scmp.eq.s32.totalorder %s75, 0
    %p758 = por %p756, %p757
    %p759 = scmp.le.s32.totalorder 1, %s69
    %p760 = scmp.lt.s32.totalorder %s69, 3
    %p761 = pnand %p759, %p760
    %p762 = pneg %p761
    // Predicated region
    $region9: #{down_up_bone_forward.1} parent=5 // pred_check
      _
    $region10: #{down_up_bone_forward.1} parent=5 // pred_check_branch
      %764 = sbr.rel (%p761) target = $region12
    $region11: #{down_up_bone_forward.1} parent=5 // pred_region
      %s765 = ssub.s32 %s69, 1
      // Predicated region
      $region13: #{down_up_bone_forward.1} parent=11 // pred_check
        %p766 = pneg %p116
      $region14: #{down_up_bone_forward.1} parent=11 // pred_check_branch
        %768 = sbr.rel (%p766) target = $region16
      $region15: #{down_up_bone_forward.1} parent=11 // pred_region
        _
      $region16: #{down_up_bone_forward.1} parent=11 // pred_fallthru
        _
      // Predicated region
      $region17: #{down_up_bone_forward.1} parent=11 // pred_check
        %p769 = pneg %p137
      $region18: #{down_up_bone_forward.1} parent=11 // pred_check_branch
        %771 = sbr.rel (%p769) target = $region20
      $region19: #{down_up_bone_forward.1} parent=11 // pred_region
        _
      $region20: #{down_up_bone_forward.1} parent=11 // pred_fallthru
        _
      // Predicated region
      $region21: #{down_up_bone_forward.1} parent=11 // pred_check
        %p772 = pneg %p158
      $region22: #{down_up_bone_forward.1} parent=11 // pred_check_branch
        %774 = sbr.rel (%p772) target = $region24
      $region23: #{down_up_bone_forward.1} parent=11 // pred_region
        _
      $region24: #{down_up_bone_forward.1} parent=11 // pred_fallthru
        _
      // Predicated region
      $region25: #{down_up_bone_forward.1} parent=11 // pred_check
        %p775 = pneg %p179
      $region26: #{down_up_bone_forward.1} parent=11 // pred_check_branch
        %777 = sbr.rel (%p775) target = $region28
      $region27: #{down_up_bone_forward.1} parent=11 // pred_region
        _
      $region28: #{down_up_bone_forward.1} parent=11 // pred_fallthru
        _
      // Predicated region
      $region29: #{down_up_bone_forward.1} parent=11 // pred_check
        %p778 = pneg %p200
      $region30: #{down_up_bone_forward.1} parent=11 // pred_check_branch
        %780 = sbr.rel (%p778) target = $region32
      $region31: #{down_up_bone_forward.1} parent=11 // pred_region
        _
      $region32: #{down_up_bone_forward.1} parent=11 // pred_fallthru
        _
      // Predicated region
      $region33: #{down_up_bone_forward.1} parent=11 // pred_check
        %p781 = pneg %p221
      $region34: #{down_up_bone_forward.1} parent=11 // pred_check_branch
        %783 = sbr.rel (%p781) target = $region36
      $region35: #{down_up_bone_forward.1} parent=11 // pred_region
        _
      $region36: #{down_up_bone_forward.1} parent=11 // pred_fallthru
        _
      // Predicated region
      $region37: #{down_up_bone_forward.1} parent=11 // pred_check
        %p784 = pneg %p242
      $region38: #{down_up_bone_forward.1} parent=11 // pred_check_branch
        %786 = sbr.rel (%p784) target = $region40
      $region39: #{down_up_bone_forward.1} parent=11 // pred_region
        _
      $region40: #{down_up_bone_forward.1} parent=11 // pred_fallthru
        _
      // Predicated region
      $region41: #{down_up_bone_forward.1} parent=11 // pred_check
        %p787 = pneg %p263
      $region42: #{down_up_bone_forward.1} parent=11 // pred_check_branch
        %789 = sbr.rel (%p787) target = $region44
      $region43: #{down_up_bone_forward.1} parent=11 // pred_region
        _
      $region44: #{down_up_bone_forward.1} parent=11 // pred_fallthru
        _
      // Predicated region
      $region45: #{down_up_bone_forward.1} parent=11 // pred_check
        %p790 = pneg %p284
      $region46: #{down_up_bone_forward.1} parent=11 // pred_check_branch
        %792 = sbr.rel (%p790) target = $region48
      $region47: #{down_up_bone_forward.1} parent=11 // pred_region
        _
      $region48: #{down_up_bone_forward.1} parent=11 // pred_fallthru
        _
      // Predicated region
      $region49: #{down_up_bone_forward.1} parent=11 // pred_check
        %p793 = pneg %p305
      $region50: #{down_up_bone_forward.1} parent=11 // pred_check_branch
        %795 = sbr.rel (%p793) target = $region52
      $region51: #{down_up_bone_forward.1} parent=11 // pred_region
        _
      $region52: #{down_up_bone_forward.1} parent=11 // pred_fallthru
        _
      // Predicated region
      $region53: #{down_up_bone_forward.1} parent=11 // pred_check
        %p796 = pneg %p326
      $region54: #{down_up_bone_forward.1} parent=11 // pred_check_branch
        %798 = sbr.rel (%p796) target = $region56
      $region55: #{down_up_bone_forward.1} parent=11 // pred_region
        _
      $region56: #{down_up_bone_forward.1} parent=11 // pred_fallthru
        _
      // Predicated region
      $region57: #{down_up_bone_forward.1} parent=11 // pred_check
        %p799 = pneg %p347
      $region58: #{down_up_bone_forward.1} parent=11 // pred_check_branch
        %801 = sbr.rel (%p799) target = $region60
      $region59: #{down_up_bone_forward.1} parent=11 // pred_region
        _
      $region60: #{down_up_bone_forward.1} parent=11 // pred_fallthru
        _
      // Predicated region
      $region61: #{down_up_bone_forward.1} parent=11 // pred_check
        %p802 = pneg %p368
      $region62: #{down_up_bone_forward.1} parent=11 // pred_check_branch
        %804 = sbr.rel (%p802) target = $region64
      $region63: #{down_up_bone_forward.1} parent=11 // pred_region
        _
      $region64: #{down_up_bone_forward.1} parent=11 // pred_fallthru
        _
      // Predicated region
      $region65: #{down_up_bone_forward.1} parent=11 // pred_check
        %p805 = pneg %p389
      $region66: #{down_up_bone_forward.1} parent=11 // pred_check_branch
        %807 = sbr.rel (%p805) target = $region68
      $region67: #{down_up_bone_forward.1} parent=11 // pred_region
        _
      $region68: #{down_up_bone_forward.1} parent=11 // pred_fallthru
        _
      // Predicated region
      $region69: #{down_up_bone_forward.1} parent=11 // pred_check
        %p808 = pneg %p410
      $region70: #{down_up_bone_forward.1} parent=11 // pred_check_branch
        %810 = sbr.rel (%p808) target = $region72
      $region71: #{down_up_bone_forward.1} parent=11 // pred_region
        _
      $region72: #{down_up_bone_forward.1} parent=11 // pred_fallthru
        _
      // Predicated region
      $region73: #{down_up_bone_forward.1} parent=11 // pred_check
        %p811 = pneg %p431
      $region74: #{down_up_bone_forward.1} parent=11 // pred_check_branch
        %813 = sbr.rel (%p811) target = $region76
      $region75: #{down_up_bone_forward.1} parent=11 // pred_region
        _
      $region76: #{down_up_bone_forward.1} parent=11 // pred_fallthru
        _
      // Predicated region
      $region77: #{down_up_bone_forward.1} parent=11 // pred_check
        %p814 = pneg %p452
      $region78: #{down_up_bone_forward.1} parent=11 // pred_check_branch
        %816 = sbr.rel (%p814) target = $region80
      $region79: #{down_up_bone_forward.1} parent=11 // pred_region
        _
      $region80: #{down_up_bone_forward.1} parent=11 // pred_fallthru
        _
      // Predicated region
      $region81: #{down_up_bone_forward.1} parent=11 // pred_check
        %p817 = pneg %p473
      $region82: #{down_up_bone_forward.1} parent=11 // pred_check_branch
        %819 = sbr.rel (%p817) target = $region84
      $region83: #{down_up_bone_forward.1} parent=11 // pred_region
        _
      $region84: #{down_up_bone_forward.1} parent=11 // pred_fallthru
        _
      // Predicated region
      $region85: #{down_up_bone_forward.1} parent=11 // pred_check
        %p820 = pneg %p494
      $region86: #{down_up_bone_forward.1} parent=11 // pred_check_branch
        %822 = sbr.rel (%p820) target = $region88
      $region87: #{down_up_bone_forward.1} parent=11 // pred_region
        _
      $region88: #{down_up_bone_forward.1} parent=11 // pred_fallthru
        _
      // Predicated region
      $region89: #{down_up_bone_forward.1} parent=11 // pred_check
        %p823 = pneg %p515
      $region90: #{down_up_bone_forward.1} parent=11 // pred_check_branch
        %825 = sbr.rel (%p823) target = $region92
      $region91: #{down_up_bone_forward.1} parent=11 // pred_region
        _
      $region92: #{down_up_bone_forward.1} parent=11 // pred_fallthru
        _
      // Predicated region
      $region93: #{down_up_bone_forward.1} parent=11 // pred_check
        %p826 = pneg %p536
      $region94: #{down_up_bone_forward.1} parent=11 // pred_check_branch
        %828 = sbr.rel (%p826) target = $region96
      $region95: #{down_up_bone_forward.1} parent=11 // pred_region
        _
      $region96: #{down_up_bone_forward.1} parent=11 // pred_fallthru
        _
      // Predicated region
      $region97: #{down_up_bone_forward.1} parent=11 // pred_check
        %p829 = pneg %p557
      $region98: #{down_up_bone_forward.1} parent=11 // pred_check_branch
        %831 = sbr.rel (%p829) target = $region100
      $region99: #{down_up_bone_forward.1} parent=11 // pred_region
        _
      $region100: #{down_up_bone_forward.1} parent=11 // pred_fallthru
        _
      // Predicated region
      $region101: #{down_up_bone_forward.1} parent=11 // pred_check
        %p832 = pneg %p578
      $region102: #{down_up_bone_forward.1} parent=11 // pred_check_branch
        %834 = sbr.rel (%p832) target = $region104
      $region103: #{down_up_bone_forward.1} parent=11 // pred_region
        _
      $region104: #{down_up_bone_forward.1} parent=11 // pred_fallthru
        _
      // Predicated region
      $region105: #{down_up_bone_forward.1} parent=11 // pred_check
        %p835 = pneg %p599
      $region106: #{down_up_bone_forward.1} parent=11 // pred_check_branch
        %837 = sbr.rel (%p835) target = $region108
      $region107: #{down_up_bone_forward.1} parent=11 // pred_region
        _
      $region108: #{down_up_bone_forward.1} parent=11 // pred_fallthru
        _
      // Predicated region
      $region109: #{down_up_bone_forward.1} parent=11 // pred_check
        %p838 = pneg %p620
      $region110: #{down_up_bone_forward.1} parent=11 // pred_check_branch
        %840 = sbr.rel (%p838) target = $region112
      $region111: #{down_up_bone_forward.1} parent=11 // pred_region
        _
      $region112: #{down_up_bone_forward.1} parent=11 // pred_fallthru
        _
      // Predicated region
      $region113: #{down_up_bone_forward.1} parent=11 // pred_check
        %p841 = pneg %p641
      $region114: #{down_up_bone_forward.1} parent=11 // pred_check_branch
        %843 = sbr.rel (%p841) target = $region116
      $region115: #{down_up_bone_forward.1} parent=11 // pred_region
        _
      $region116: #{down_up_bone_forward.1} parent=11 // pred_fallthru
        _
      // Predicated region
      $region117: #{down_up_bone_forward.1} parent=11 // pred_check
        %p844 = pneg %p662
      $region118: #{down_up_bone_forward.1} parent=11 // pred_check_branch
        %846 = sbr.rel (%p844) target = $region120
      $region119: #{down_up_bone_forward.1} parent=11 // pred_region
        _
      $region120: #{down_up_bone_forward.1} parent=11 // pred_fallthru
        _
      // Predicated region
      $region121: #{down_up_bone_forward.1} parent=11 // pred_check
        %p847 = pneg %p683
      $region122: #{down_up_bone_forward.1} parent=11 // pred_check_branch
        %849 = sbr.rel (%p847) target = $region124
      $region123: #{down_up_bone_forward.1} parent=11 // pred_region
        _
      $region124: #{down_up_bone_forward.1} parent=11 // pred_fallthru
        _
      // Predicated region
      $region125: #{down_up_bone_forward.1} parent=11 // pred_check
        %p850 = pneg %p704
      $region126: #{down_up_bone_forward.1} parent=11 // pred_check_branch
        %852 = sbr.rel (%p850) target = $region128
      $region127: #{down_up_bone_forward.1} parent=11 // pred_region
        _
      $region128: #{down_up_bone_forward.1} parent=11 // pred_fallthru
        _
      // Predicated region
      $region129: #{down_up_bone_forward.1} parent=11 // pred_check
        %p853 = pneg %p725
      $region130: #{down_up_bone_forward.1} parent=11 // pred_check_branch
        %855 = sbr.rel (%p853) target = $region132
      $region131: #{down_up_bone_forward.1} parent=11 // pred_region
        _
      $region132: #{down_up_bone_forward.1} parent=11 // pred_fallthru
        _
    $region12: #{down_up_bone_forward.1} parent=5 // pred_fallthru
      _
    %p856 = scmp.lt.s32.totalorder %s69, 2
    // Predicated region
    $region133: #{down_up_bone_forward.1} parent=5 // pred_check
      %p857 = pneg %p856
    $region134: #{down_up_bone_forward.1} parent=5 // pred_check_branch
      %859 = sbr.rel (%p857) target = $region136
    $region135: #{down_up_bone_forward.1} parent=5 // pred_region
      // Predicated region
      $region137: #{down_up_bone_forward.1} parent=135 // pred_check
        %p860 = pneg %p89
      $region138: #{down_up_bone_forward.1} parent=135 // pred_check_branch
        %862 = sbr.rel (%p860) target = $region140
      $region139: #{down_up_bone_forward.1} parent=135 // pred_region
        %p863 = scmp.lt.s32.totalorder %s69, 1
        %s864 = scalar_select %p863, %s69, 1
        %s865 = smul.addr %s864, 4
        %s866 = smul.addr %s865, 8
        %s867 = scalar_lea.vmem %s1, %s866
      $region140: #{down_up_bone_forward.1} parent=135 // pred_fallthru
        _
    $region136: #{down_up_bone_forward.1} parent=5 // pred_fallthru
      _
    %p868 = scmp.le.s32.totalorder 1, %s69
    %p869 = scmp.lt.s32.totalorder %s69, 3
    %p870 = pnand %p868, %p869
    %p871 = pneg %p870
    // Predicated region
    $region141: #{down_up_bone_forward.1} parent=5 // pred_check
      _
    $region142: #{down_up_bone_forward.1} parent=5 // pred_check_branch
      %873 = sbr.rel (%p870) target = $region144
    $region143: #{down_up_bone_forward.1} parent=5 // pred_region
      %s874 = ssub.s32 %s69, 1
      %p875 = scmp.lt.s32.totalorder %s74, 1
      %s876 = scalar_select %p875, %s74, 1
      %s877 = smul.addr %s876, 4
      %s878 = smul.addr %s877, 8
      %s879 = scalar_lea.vmem %s1, %s878
      %p880 = pneg %p95
      %p881 = pneg %p92
      %p882 = pneg %p116
      %p883 = pneg %p113
      %p884 = pneg %p137
      %p885 = pneg %p134
      %p886 = pneg %p158
      %p887 = pneg %p155
      %p888 = pneg %p179
      %p889 = pneg %p176
      %p890 = pneg %p200
      %p891 = pneg %p197
      %p892 = pneg %p221
      %p893 = pneg %p218
      %p894 = pneg %p242
      %p895 = pneg %p239
      %p896 = pneg %p263
      %p897 = pneg %p260
      %p898 = pneg %p284
      %p899 = pneg %p281
      %p900 = pneg %p305
      %p901 = pneg %p302
      %p902 = pneg %p326
      %p903 = pneg %p323
      %p904 = pneg %p347
      %p905 = pneg %p344
      %p906 = pneg %p368
      %p907 = pneg %p365
      %p908 = pneg %p389
      %p909 = pneg %p386
      %p910 = pneg %p410
      %p911 = pneg %p407
      %p912 = pneg %p431
      %p913 = pneg %p428
      %p914 = pneg %p452
      %p915 = pneg %p449
      %p916 = pneg %p473
      %p917 = pneg %p470
      %p918 = pneg %p494
      %p919 = pneg %p491
      %p920 = pneg %p515
      %p921 = pneg %p512
      %p922 = pneg %p536
      %p923 = pneg %p533
      %p924 = pneg %p557
      %p925 = pneg %p554
      %p926 = pneg %p578
      %p927 = pneg %p575
      %p928 = pneg %p599
      %p929 = pneg %p596
      %p930 = pneg %p620
      %p931 = pneg %p617
      %p932 = pneg %p641
      %p933 = pneg %p638
      %p934 = pneg %p662
      %p935 = pneg %p659
      %p936 = pneg %p683
      %p937 = pneg %p680
      %p938 = pneg %p704
      %p939 = pneg %p701
      %p940 = pneg %p725
      %p941 = pneg %p722
      %p942 = pneg %p751
      %p943 = pneg %p748
      %p944 = scmp.lt.s32.totalorder %s74, 1
      %s945 = scalar_select %p944, %s74, 1
      %s946 = smul.addr %s945, 4
      %s947 = smul.addr %s946, 8
      %s948 = scalar_lea.vmem %s63, %s947
      %p949 = scmp.lt.s32.totalorder %s74, 1
      %s950 = scalar_select %p949, %s74, 1
      %s951 = smul.addr %s950, 4
      %s952 = smul.addr %s951, 8
      %s953 = scalar_lea.vmem %s1, %s952
      %p954 = scmp.lt.s32.totalorder %s74, 1
      %s955 = scalar_select %p954, %s74, 1
      %s956 = smul.addr %s955, 4
      %s957 = smul.addr %s956, 8
      %s958 = scalar_lea.vmem %s63, %s957
      %v960 = vld [vmem:[%s953] sm:$0xff]
      %v961 = vld [vmem:[%s953 + $0x8] sm:$0xff]
      %v962 = vld [vmem:[%s953 + $0x10] sm:$0xff]
      %v963 = vld [vmem:[%s953 + $0x18] sm:$0xff]
      %v964 = vpack.c.bf16 %v962, %v960
      %v965 = vpack.c.bf16 %v963, %v961
      %v966 = vld [vmem:[%s3] sm:$0xff]
      %v967 = vld [vmem:[%s3 + $0x8] sm:$0xff]
      %v968 = vld [vmem:[%s3 + $0x10] sm:$0x1]
      %v969 = vld [vmem:[%s3 + $0x18] sm:$0x1]
      %v970 = vld [vmem:[%s5] sm:$0xff]
      %v971 = vld [vmem:[%s5 + $0x8] sm:$0xff]
      %973 = vset.pattern.permute.xlu0 0
      %974 = vperm.xlu0 %973, %v970
      %v975 = vpop.permute.xlu0 %974
      %978 = vset.pattern.permute.xlu0 0
      %979 = vperm.xlu0 %978, %v971
      %v980 = vpop.permute.xlu0 %979
      %v982 = vmul.f32 %v960, %v975
      %v983 = vmul.f32 %v961, %v975
      %v984 = vmul.f32 %v962, %v980
      %v985 = vmul.f32 %v963, %v980
      %v986 = vld [vmem:[%s7] sm:$0xff]
      %v987 = vld [vmem:[%s7 + $0x8] sm:$0xff]
      %989 = vset.pattern.permute.xlu0 0
      %990 = vperm.xlu0 %989, %v986
      %v991 = vpop.permute.xlu0 %990
      %994 = vset.pattern.permute.xlu0 0
      %995 = vperm.xlu0 %994, %v987
      %v996 = vpop.permute.xlu0 %995
      %v998 = vadd.f32 %v982, %v991
      %v999 = vadd.f32 %v983, %v991
      %v1000 = vadd.f32 %v984, %v996
      %v1001 = vadd.f32 %v985, %v996
      %v1002 = vmax.f32 %v998, 0.0
      %v1003 = vmax.f32 %v999, 0.0
      %v1004 = vmax.f32 %v1000, 0.0
      %v1005 = vmax.f32 %v1001, 0.0
      %v1006 = vpack.c.bf16 %v1004, %v1002
      %v1007 = vpack.c.bf16 %v1005, %v1003
      %v1008 = vld [vmem:[%s9] sm:$0xf]
      %vm1009 = vcmask 130048
      %v1011 = vsel %vm1009, %v1008, 0
      %1013 = vmatpush.bf16.msra.mxu0 0
      %1014 = vmatpush.bf16.msra.mxu0 0
      %1015 = vmatpush.bf16.msra.mxu0 0
      %1016 = vmatpush.bf16.msra.mxu0 0
      %1017 = vmatpush.bf16.msra.mxu0 0
      %1018 = vmatpush.bf16.msra.mxu0 0
      %1019 = vmatpush.bf16.msra.mxu0 0
      %1020 = vmatpush.bf16.msra.mxu0 %v1006
      %1021 = vmatmul.bf16.gmra.mxu0 %v1011
      %v1022 = vpop.f32.mrf.mxu0
      %v1023 = vadd.f32 0.0, %v1022
      %v1024 = vpop.f32.mrf.mxu0
      %1025 = vdwg.mxu0
      %1026 = vmatpush.bf16.msra.mxu0 0
      %1027 = vmatpush.bf16.msra.mxu0 0
      %1028 = vmatpush.bf16.msra.mxu0 0
      %1029 = vmatpush.bf16.msra.mxu0 0
      %1030 = vmatpush.bf16.msra.mxu0 0
      %1031 = vmatpush.bf16.msra.mxu0 0
      %1032 = vmatpush.bf16.msra.mxu0 0
      %1033 = vmatpush.bf16.msra.mxu0 %v1007
      %1034 = vmatmul.bf16.gmra.mxu0 %v1011
      %v1035 = vpop.f32.mrf.mxu0
      %v1036 = vadd.f32 0.0, %v1035
      %v1037 = vpop.f32.mrf.mxu0
      %1038 = vdwg.mxu0
      %v1039 = vld [vmem:[%s11] sm:$0xf]
      %v1040 = vld [vmem:[%s11 + $0x4] sm:$0xf]
      %v1043 = vunpack.c.l.b16 %v1039
      %v1044 = vunpack.c.l.b16 %v1040
      %v1045 = vpack.c.b16 %v1044, %v1043
      %v1047 = vsel %vm1009, %v1045, 0
      %1049 = vmatpush.bf16.msra.mxu0 0
      %1050 = vmatpush.bf16.msra.mxu0 0
      %1051 = vmatpush.bf16.msra.mxu0 0
      %1052 = vmatpush.bf16.msra.mxu0 0
      %1053 = vmatpush.bf16.msra.mxu0 0
      %1054 = vmatpush.bf16.msra.mxu0 0
      %1055 = vmatpush.bf16.msra.mxu0 0
      %1056 = vmatpush.bf16.msra.mxu0 %v964
      %1057 = vmatmul.bf16.gmra.mxu0 %v1047
      %v1058 = vpop.f32.mrf.mxu0
      %v1059 = vadd.f32 0.0, %v1058
      %v1060 = vpop.f32.mrf.mxu0
      %v1061 = vadd.f32 0.0, %v1060
      %1062 = vdwg.mxu0
      %1063 = vmatpush.bf16.msra.mxu0 0
      %1064 = vmatpush.bf16.msra.mxu0 0
      %1065 = vmatpush.bf16.msra.mxu0 0
      %1066 = vmatpush.bf16.msra.mxu0 0
      %1067 = vmatpush.bf16.msra.mxu0 0
      %1068 = vmatpush.bf16.msra.mxu0 0
      %1069 = vmatpush.bf16.msra.mxu0 0
      %1070 = vmatpush.bf16.msra.mxu0 %v965
      %1071 = vmatmul.bf16.gmra.mxu0 %v1047
      %v1072 = vpop.f32.mrf.mxu0
      %v1073 = vadd.f32 0.0, %v1072
      %v1074 = vpop.f32.mrf.mxu0
      %v1075 = vadd.f32 0.0, %v1074
      %1076 = vdwg.mxu0
      %v1077 = vpack.c.bf16 %v1059, %v1059
      %v1078 = vpack.c.bf16 %v1073, %v1073
      %v1079 = vld [vmem:[%s17] sm:$0xf]
      %v1080 = vld [vmem:[%s17 + $0x4] sm:$0xf]
      %v1081 = vld [vmem:[%s17 + $0x8] sm:$0xf]
      %v1082 = vld [vmem:[%s17 + $0xc] sm:$0xf]
      %v1083 = vld [vmem:[%s17 + $0x10] sm:$0xf]
      %v1084 = vld [vmem:[%s17 + $0x14] sm:$0xf]
      %v1085 = vld [vmem:[%s17 + $0x18] sm:$0xf]
      %v1086 = vld [vmem:[%s17 + $0x1c] sm:$0xf]
      %v1087 = vld [vmem:[%s17 + $0x20] sm:$0xf]
      %v1088 = vld [vmem:[%s17 + $0x24] sm:$0xf]
      %v1089 = vld [vmem:[%s17 + $0x28] sm:$0xf]
      %v1090 = vld [vmem:[%s17 + $0x2c] sm:$0xf]
      %v1091 = vld [vmem:[%s17 + $0x30] sm:$0xf]
      %v1092 = vld [vmem:[%s17 + $0x34] sm:$0xf]
      %v1093 = vld [vmem:[%s17 + $0x38] sm:$0xf]
      %v1094 = vld [vmem:[%s17 + $0x3c] sm:$0xf]
      %v1095 = vld [vmem:[%s17 + $0x40] sm:$0xf]
      %v1096 = vld [vmem:[%s17 + $0x44] sm:$0xf]
      %v1097 = vld [vmem:[%s17 + $0x48] sm:$0xf]
      %v1098 = vld [vmem:[%s17 + $0x4c] sm:$0xf]
      %v1099 = vld [vmem:[%s17 + $0x50] sm:$0xf]
      %v1100 = vld [vmem:[%s17 + $0x54] sm:$0xf]
      %v1101 = vld [vmem:[%s17 + $0x58] sm:$0xf]
      %v1102 = vld [vmem:[%s17 + $0x5c] sm:$0xf]
      %v1103 = vld [vmem:[%s17 + $0x60] sm:$0xf]
      %v1104 = vld [vmem:[%s17 + $0x64] sm:$0xf]
      %v1105 = vld [vmem:[%s17 + $0x68] sm:$0xf]
      %v1106 = vld [vmem:[%s17 + $0x6c] sm:$0xf]
      %v1107 = vld [vmem:[%s17 + $0x70] sm:$0xf]
      %v1108 = vld [vmem:[%s17 + $0x74] sm:$0xf]
      %v1109 = vld [vmem:[%s17 + $0x78] sm:$0xf]
      %v1110 = vld [vmem:[%s17 + $0x7c] sm:$0xf]
      %v1143 = vunpack.c.l.b16 %v1079
      %v1144 = vunpack.c.l.b16 %v1080
      %v1145 = vunpack.c.l.b16 %v1081
      %v1146 = vunpack.c.l.b16 %v1082
      %v1147 = vunpack.c.l.b16 %v1083
      %v1148 = vunpack.c.l.b16 %v1084
      %v1149 = vunpack.c.l.b16 %v1085
      %v1150 = vunpack.c.l.b16 %v1086
      %v1151 = vunpack.c.l.b16 %v1087
      %v1152 = vunpack.c.l.b16 %v1088
      %v1153 = vunpack.c.l.b16 %v1089
      %v1154 = vunpack.c.l.b16 %v1090
      %v1155 = vunpack.c.l.b16 %v1091
      %v1156 = vunpack.c.l.b16 %v1092
      %v1157 = vunpack.c.l.b16 %v1093
      %v1158 = vunpack.c.l.b16 %v1094
      %v1159 = vunpack.c.l.b16 %v1095
      %v1160 = vunpack.c.l.b16 %v1096
      %v1161 = vunpack.c.l.b16 %v1097
      %v1162 = vunpack.c.l.b16 %v1098
      %v1163 = vunpack.c.l.b16 %v1099
      %v1164 = vunpack.c.l.b16 %v1100
      %v1165 = vunpack.c.l.b16 %v1101
      %v1166 = vunpack.c.l.b16 %v1102
      %v1167 = vunpack.c.l.b16 %v1103
      %v1168 = vunpack.c.l.b16 %v1104
      %v1169 = vunpack.c.l.b16 %v1105
      %v1170 = vunpack.c.l.b16 %v1106
      %v1171 = vunpack.c.l.b16 %v1107
      %v1172 = vunpack.c.l.b16 %v1108
      %v1173 = vunpack.c.l.b16 %v1109
      %v1174 = vunpack.c.l.b16 %v1110
      %v1175 = vpack.c.b16 %v1144, %v1143
      %v1176 = vpack.c.b16 %v1146, %v1145
      %v1177 = vpack.c.b16 %v1148, %v1147
      %v1178 = vpack.c.b16 %v1150, %v1149
      %v1179 = vpack.c.b16 %v1152, %v1151
      %v1180 = vpack.c.b16 %v1154, %v1153
      %v1181 = vpack.c.b16 %v1156, %v1155
      %v1182 = vpack.c.b16 %v1158, %v1157
      %v1183 = vpack.c.b16 %v1160, %v1159
      %v1184 = vpack.c.b16 %v1162, %v1161
      %v1185 = vpack.c.b16 %v1164, %v1163
      %v1186 = vpack.c.b16 %v1166, %v1165
      %v1187 = vpack.c.b16 %v1168, %v1167
      %v1188 = vpack.c.b16 %v1170, %v1169
      %v1189 = vpack.c.b16 %v1172, %v1171
      %v1190 = vpack.c.b16 %v1174, %v1173
      %1207 = vmatpush.bf16.msra.mxu0 %v1182
      %1208 = vmatpush.bf16.msra.mxu0 %v1181
      %1209 = vmatpush.bf16.msra.mxu0 %v1180
      %1210 = vmatpush.bf16.msra.mxu0 %v1179
      %1211 = vmatpush.bf16.msra.mxu0 %v1178
      %1212 = vmatpush.bf16.msra.mxu0 %v1177
      %1213 = vmatpush.bf16.msra.mxu0 %v1176
      %1214 = vmatpush.bf16.msra.mxu0 %v1175
      %1215 = vmatmul.bf16.gmra.mxu0 %v1077
      %v1216 = vpop.f32.mrf.mxu0
      %v1217 = vadd.f32 0.0, %v1216
      %v1218 = vpop.f32.mrf.mxu0
      %1219 = vdwg.mxu0
      %1220 = vmatpush.bf16.msra.mxu0 %v1190
      %1221 = vmatpush.bf16.msra.mxu0 %v1189
      %1222 = vmatpush.bf16.msra.mxu0 %v1188
      %1223 = vmatpush.bf16.msra.mxu0 %v1187
      %1224 = vmatpush.bf16.msra.mxu0 %v1186
      %1225 = vmatpush.bf16.msra.mxu0 %v1185
      %1226 = vmatpush.bf16.msra.mxu0 %v1184
      %1227 = vmatpush.bf16.msra.mxu0 %v1183
      %1228 = vmatmul.bf16.gmra.mxu0 %v1078
      %v1229 = vpop.f32.mrf.mxu0
      %v1230 = vadd.f32 %v1217, %v1229
      %v1231 = vpop.f32.mrf.mxu0
      %1232 = vdwg.mxu0
      %v1233 = vmul.f32 %v1230, 0.04
      %v1234 = vld [vmem:[%s13] sm:$0xff]
      %1236 = vset.pattern.permute.xlu0 0
      %1237 = vperm.xlu0 %1236, %v1234
      %v1238 = vpop.permute.xlu0 %1237
      %v1240 = vadd.f32 %v1233, %v1238
      %v1241 = vpack.c.bf16 %v1061, %v1061
      %v1242 = vpack.c.bf16 %v1075, %v1075
      %v1243 = vld [vmem:[%s19] sm:$0xf]
      %v1244 = vld [vmem:[%s19 + $0x4] sm:$0xf]
      %v1245 = vld [vmem:[%s19 + $0x8] sm:$0xf]
      %v1246 = vld [vmem:[%s19 + $0xc] sm:$0xf]
      %v1247 = vld [vmem:[%s19 + $0x10] sm:$0xf]
      %v1248 = vld [vmem:[%s19 + $0x14] sm:$0xf]
      %v1249 = vld [vmem:[%s19 + $0x18] sm:$0xf]
      %v1250 = vld [vmem:[%s19 + $0x1c] sm:$0xf]
      %v1251 = vld [vmem:[%s19 + $0x20] sm:$0xf]
      %v1252 = vld [vmem:[%s19 + $0x24] sm:$0xf]
      %v1253 = vld [vmem:[%s19 + $0x28] sm:$0xf]
      %v1254 = vld [vmem:[%s19 + $0x2c] sm:$0xf]
      %v1255 = vld [vmem:[%s19 + $0x30] sm:$0xf]
      %v1256 = vld [vmem:[%s19 + $0x34] sm:$0xf]
      %v1257 = vld [vmem:[%s19 + $0x38] sm:$0xf]
      %v1258 = vld [vmem:[%s19 + $0x3c] sm:$0xf]
      %v1259 = vld [vmem:[%s19 + $0x40] sm:$0xf]
      %v1260 = vld [vmem:[%s19 + $0x44] sm:$0xf]
      %v1261 = vld [vmem:[%s19 + $0x48] sm:$0xf]
      %v1262 = vld [vmem:[%s19 + $0x4c] sm:$0xf]
      %v1263 = vld [vmem:[%s19 + $0x50] sm:$0xf]
      %v1264 = vld [vmem:[%s19 + $0x54] sm:$0xf]
      %v1265 = vld [vmem:[%s19 + $0x58] sm:$0xf]
      %v1266 = vld [vmem:[%s19 + $0x5c] sm:$0xf]
      %v1267 = vld [vmem:[%s19 + $0x60] sm:$0xf]
      %v1268 = vld [vmem:[%s19 + $0x64] sm:$0xf]
      %v1269 = vld [vmem:[%s19 + $0x68] sm:$0xf]
      %v1270 = vld [vmem:[%s19 + $0x6c] sm:$0xf]
      %v1271 = vld [vmem:[%s19 + $0x70] sm:$0xf]
      %v1272 = vld [vmem:[%s19 + $0x74] sm:$0xf]
      %v1273 = vld [vmem:[%s19 + $0x78] sm:$0xf]
      %v1274 = vld [vmem:[%s19 + $0x7c] sm:$0xf]
      %v1307 = vunpack.c.l.b16 %v1243
      %v1308 = vunpack.c.l.b16 %v1244
      %v1309 = vunpack.c.l.b16 %v1245
      %v1310 = vunpack.c.l.b16 %v1246
      %v1311 = vunpack.c.l.b16 %v1247
      %v1312 = vunpack.c.l.b16 %v1248
      %v1313 = vunpack.c.l.b16 %v1249
      %v1314 = vunpack.c.l.b16 %v1250
      %v1315 = vunpack.c.l.b16 %v1251
      %v1316 = vunpack.c.l.b16 %v1252
      %v1317 = vunpack.c.l.b16 %v1253
      %v1318 = vunpack.c.l.b16 %v1254
      %v1319 = vunpack.c.l.b16 %v1255
      %v1320 = vunpack.c.l.b16 %v1256
      %v1321 = vunpack.c.l.b16 %v1257
      %v1322 = vunpack.c.l.b16 %v1258
      %v1323 = vunpack.c.l.b16 %v1259
      %v1324 = vunpack.c.l.b16 %v1260
      %v1325 = vunpack.c.l.b16 %v1261
      %v1326 = vunpack.c.l.b16 %v1262
      %v1327 = vunpack.c.l.b16 %v1263
      %v1328 = vunpack.c.l.b16 %v1264
      %v1329 = vunpack.c.l.b16 %v1265
      %v1330 = vunpack.c.l.b16 %v1266
      %v1331 = vunpack.c.l.b16 %v1267
      %v1332 = vunpack.c.l.b16 %v1268
      %v1333 = vunpack.c.l.b16 %v1269
      %v1334 = vunpack.c.l.b16 %v1270
      %v1335 = vunpack.c.l.b16 %v1271
      %v1336 = vunpack.c.l.b16 %v1272
      %v1337 = vunpack.c.l.b16 %v1273
      %v1338 = vunpack.c.l.b16 %v1274
      %v1339 = vpack.c.b16 %v1308, %v1307
      %v1340 = vpack.c.b16 %v1310, %v1309
      %v1341 = vpack.c.b16 %v1312, %v1311
      %v1342 = vpack.c.b16 %v1314, %v1313
      %v1343 = vpack.c.b16 %v1316, %v1315
      %v1344 = vpack.c.b16 %v1318, %v1317
      %v1345 = vpack.c.b16 %v1320, %v1319
      %v1346 = vpack.c.b16 %v1322, %v1321
      %v1347 = vpack.c.b16 %v1324, %v1323
      %v1348 = vpack.c.b16 %v1326, %v1325
      %v1349 = vpack.c.b16 %v1328, %v1327
      %v1350 = vpack.c.b16 %v1330, %v1329
      %v1351 = vpack.c.b16 %v1332, %v1331
      %v1352 = vpack.c.b16 %v1334, %v1333
      %v1353 = vpack.c.b16 %v1336, %v1335
      %v1354 = vpack.c.b16 %v1338, %v1337
      %1371 = vmatpush.bf16.msra.mxu0 %v1346
      %1372 = vmatpush.bf16.msra.mxu0 %v1345
      %1373 = vmatpush.bf16.msra.mxu0 %v1344
      %1374 = vmatpush.bf16.msra.mxu0 %v1343
      %1375 = vmatpush.bf16.msra.mxu0 %v1342
      %1376 = vmatpush.bf16.msra.mxu0 %v1341
      %1377 = vmatpush.bf16.msra.mxu0 %v1340
      %1378 = vmatpush.bf16.msra.mxu0 %v1339
      %1379 = vmatmul.bf16.gmra.mxu0 %v1241
      %v1380 = vpop.f32.mrf.mxu0
      %v1381 = vadd.f32 0.0, %v1380
      %v1382 = vpop.f32.mrf.mxu0
      %1383 = vdwg.mxu0
      %1384 = vmatpush.bf16.msra.mxu0 %v1354
      %1385 = vmatpush.bf16.msra.mxu0 %v1353
      %1386 = vmatpush.bf16.msra.mxu0 %v1352
      %1387 = vmatpush.bf16.msra.mxu0 %v1351
      %1388 = vmatpush.bf16.msra.mxu0 %v1350
      %1389 = vmatpush.bf16.msra.mxu0 %v1349
      %1390 = vmatpush.bf16.msra.mxu0 %v1348
      %1391 = vmatpush.bf16.msra.mxu0 %v1347
      %1392 = vmatmul.bf16.gmra.mxu0 %v1242
      %v1393 = vpop.f32.mrf.mxu0
      %v1394 = vadd.f32 %v1381, %v1393
      %v1395 = vpop.f32.mrf.mxu0
      %1396 = vdwg.mxu0
      %v1397 = vmul.f32 %v1394, 0.012345679
      %v1398 = vld [vmem:[%s15] sm:$0xff]
      %1400 = vset.pattern.permute.xlu0 0
      %1401 = vperm.xlu0 %1400, %v1398
      %v1402 = vpop.permute.xlu0 %1401
      %v1404 = vadd.f32 %v1397, %v1402
      %s1405 = scalar_lea.vmem %s25, 64
      %v1406 = vld [vmem:[%s1405] sm:$0xff]
      %v1407 = vld [vmem:[%s1405 + $0x8] sm:$0xff]
      %1409 = vset.pattern.permute.xlu0 0
      %1410 = vperm.xlu0 %1409, %v1406
      %v1411 = vpop.permute.xlu0 %1410
      %1414 = vset.pattern.permute.xlu0 0
      %1415 = vperm.xlu0 %1414, %v1407
      %v1416 = vpop.permute.xlu0 %1415
      %v1418 = vmul.f32 %v960, %v1411
      %v1419 = vmul.f32 %v961, %v1411
      %v1420 = vmul.f32 %v962, %v1416
      %v1421 = vmul.f32 %v963, %v1416
      %v1422 = vld [vmem:[%s25] sm:$0xff]
      %v1423 = vld [vmem:[%s25 + $0x8] sm:$0xff]
      %1424 = vrot.lane.b32.xlu0 %v960, 17
      %v1425 = vpop.permute.xlu0 %1424
      %1426 = vrot.lane.b32.xlu0 %v962, 17
      %v1427 = vpop.permute.xlu0 %1426
      %1428 = vrot.lane.b32.xlu0 %v961, 17
      %v1429 = vpop.permute.xlu0 %1428
      %1430 = vrot.lane.b32.xlu0 %v963, 17
      %v1431 = vpop.permute.xlu0 %1430
      %v1432 = vlaneseq
      %v1433 = vand.u32 %v1432, 127
      %vm1434 = vcmp.lt.s32.totalorder %v1433, 17
      %v1435 = vsel %vm1434, %v1425, %v1429
      %v1436 = vsel %vm1434, %v1427, %v1431
      %v1437 = vsel %vm1434, %v1429, %v1425
      %v1438 = vsel %vm1434, %v1431, %v1427
      %v1439 = vperm.slane %v966, 0
      %v1440 = vperm.slane %v967, 0
      %v1441 = vmul.f32 %v1437, %v1439
      %v1442 = vmul.f32 %v1435, %v1440
      %v1443 = vmul.f32 %v1438, %v1439
      %v1444 = vmul.f32 %v1436, %v1440
      %1446 = vset.pattern.permute.xlu0 0
      %1447 = vperm.xlu0 %1446, %v1422
      %v1448 = vpop.permute.xlu0 %1447
      %1451 = vset.pattern.permute.xlu0 0
      %1452 = vperm.xlu0 %1451, %v1423
      %v1453 = vpop.permute.xlu0 %1452
      %v1455 = vmul.f32 %v1448, %v1441
      %v1456 = vmul.f32 %v1448, %v1442
      %v1457 = vmul.f32 %v1453, %v1443
      %v1458 = vmul.f32 %v1453, %v1444
      %v1459 = vadd.f32 %v1418, %v1455
      %v1460 = vadd.f32 %v1419, %v1456
      %v1461 = vadd.f32 %v1420, %v1457
      %v1462 = vadd.f32 %v1421, %v1458
      %s1463 = scalar_lea.vmem %s25, 16
      %v1464 = vld [vmem:[%s1463] sm:$0xff]
      %v1465 = vld [vmem:[%s1463 + $0x8] sm:$0xff]
      %1466 = vrot.lane.b32.xlu0 %v960, 16
      %v1467 = vpop.permute.xlu0 %1466
      %1468 = vrot.lane.b32.xlu0 %v962, 16
      %v1469 = vpop.permute.xlu0 %1468
      %1470 = vrot.lane.b32.xlu0 %v961, 16
      %v1471 = vpop.permute.xlu0 %1470
      %1472 = vrot.lane.b32.xlu0 %v963, 16
      %v1473 = vpop.permute.xlu0 %1472
      %vm1474 = vcmp.lt.s32.totalorder %v1433, 16
      %v1475 = vsel %vm1474, %v1467, %v1471
      %v1476 = vsel %vm1474, %v1469, %v1473
      %v1477 = vsel %vm1474, %v1471, %v1467
      %v1478 = vsel %vm1474, %v1473, %v1469
      %v1479 = vperm.slane %v966, 1
      %v1480 = vperm.slane %v967, 1
      %v1481 = vmul.f32 %v1477, %v1479
      %v1482 = vmul.f32 %v1475, %v1480
      %v1483 = vmul.f32 %v1478, %v1479
      %v1484 = vmul.f32 %v1476, %v1480
      %1486 = vset.pattern.permute.xlu0 0
      %1487 = vperm.xlu0 %1486, %v1464
      %v1488 = vpop.permute.xlu0 %1487
      %1491 = vset.pattern.permute.xlu0 0
      %1492 = vperm.xlu0 %1491, %v1465
      %v1493 = vpop.permute.xlu0 %1492
      %v1495 = vmul.f32 %v1488, %v1481
      %v1496 = vmul.f32 %v1488, %v1482
      %v1497 = vmul.f32 %v1493, %v1483
      %v1498 = vmul.f32 %v1493, %v1484
      %v1499 = vadd.f32 %v1459, %v1495
      %v1500 = vadd.f32 %v1460, %v1496
      %v1501 = vadd.f32 %v1461, %v1497
      %v1502 = vadd.f32 %v1462, %v1498
      %s1503 = scalar_lea.vmem %s25, 32
      %v1504 = vld [vmem:[%s1503] sm:$0xff]
      %v1505 = vld [vmem:[%s1503 + $0x8] sm:$0xff]
      %1506 = vrot.lane.b32.xlu0 %v960, 15
      %v1507 = vpop.permute.xlu0 %1506
      %1508 = vrot.lane.b32.xlu0 %v962, 15
      %v1509 = vpop.permute.xlu0 %1508
      %1510 = vrot.lane.b32.xlu0 %v961, 15
      %v1511 = vpop.permute.xlu0 %1510
      %1512 = vrot.lane.b32.xlu0 %v963, 15
      %v1513 = vpop.permute.xlu0 %1512
      %vm1514 = vcmp.lt.s32.totalorder %v1433, 15
      %v1515 = vsel %vm1514, %v1507, %v1511
      %v1516 = vsel %vm1514, %v1509, %v1513
      %v1517 = vsel %vm1514, %v1511, %v1507
      %v1518 = vsel %vm1514, %v1513, %v1509
      %v1519 = vperm.slane %v966, 2
      %v1520 = vperm.slane %v967, 2
      %v1521 = vmul.f32 %v1517, %v1519
      %v1522 = vmul.f32 %v1515, %v1520
      %v1523 = vmul.f32 %v1518, %v1519
      %v1524 = vmul.f32 %v1516, %v1520
      %1526 = vset.pattern.permute.xlu0 0
      %1527 = vperm.xlu0 %1526, %v1504
      %v1528 = vpop.permute.xlu0 %1527
      %1531 = vset.pattern.permute.xlu0 0
      %1532 = vperm.xlu0 %1531, %v1505
      %v1533 = vpop.permute.xlu0 %1532
      %v1535 = vmul.f32 %v1528, %v1521
      %v1536 = vmul.f32 %v1528, %v1522
      %v1537 = vmul.f32 %v1533, %v1523
      %v1538 = vmul.f32 %v1533, %v1524
      %v1539 = vadd.f32 %v1499, %v1535
      %v1540 = vadd.f32 %v1500, %v1536
      %v1541 = vadd.f32 %v1501, %v1537
      %v1542 = vadd.f32 %v1502, %v1538
      %s1543 = scalar_lea.vmem %s25, 48
      %v1544 = vld [vmem:[%s1543] sm:$0xff]
      %v1545 = vld [vmem:[%s1543 + $0x8] sm:$0xff]
      %1546 = vrot.lane.b32.xlu0 %v960, 1
      %v1547 = vpop.permute.xlu0 %1546
      %1548 = vrot.lane.b32.xlu0 %v962, 1
      %v1549 = vpop.permute.xlu0 %1548
      %1550 = vrot.lane.b32.xlu0 %v961, 1
      %v1551 = vpop.permute.xlu0 %1550
      %1552 = vrot.lane.b32.xlu0 %v963, 1
      %v1553 = vpop.permute.xlu0 %1552
      %vm1554 = vcmp.lt.s32.totalorder %v1433, 1
      %v1555 = vsel %vm1554, %v1547, %v1551
      %v1556 = vsel %vm1554, %v1549, %v1553
      %v1557 = vsel %vm1554, %v1551, %v1547
      %v1558 = vsel %vm1554, %v1553, %v1549
      %v1559 = vperm.slane %v966, 3
      %v1560 = vperm.slane %v967, 3
      %v1561 = vmul.f32 %v1557, %v1559
      %v1562 = vmul.f32 %v1555, %v1560
      %v1563 = vmul.f32 %v1558, %v1559
      %v1564 = vmul.f32 %v1556, %v1560
      %1566 = vset.pattern.permute.xlu0 0
      %1567 = vperm.xlu0 %1566, %v1544
      %v1568 = vpop.permute.xlu0 %1567
      %1571 = vset.pattern.permute.xlu0 0
      %1572 = vperm.xlu0 %1571, %v1545
      %v1573 = vpop.permute.xlu0 %1572
      %v1575 = vmul.f32 %v1568, %v1561
      %v1576 = vmul.f32 %v1568, %v1562
      %v1577 = vmul.f32 %v1573, %v1563
      %v1578 = vmul.f32 %v1573, %v1564
      %v1579 = vadd.f32 %v1539, %v1575
      %v1580 = vadd.f32 %v1540, %v1576
      %v1581 = vadd.f32 %v1541, %v1577
      %v1582 = vadd.f32 %v1542, %v1578
      %s1583 = scalar_lea.vmem %s25, 80
      %v1584 = vld [vmem:[%s1583] sm:$0xff]
      %v1585 = vld [vmem:[%s1583 + $0x8] sm:$0xff]
      %1586 = vrot.lane.b32.xlu0 %v960, 127
      %v1587 = vpop.permute.xlu0 %1586
      %1588 = vrot.lane.b32.xlu0 %v962, 127
      %v1589 = vpop.permute.xlu0 %1588
      %1590 = vrot.lane.b32.xlu0 %v961, 127
      %v1591 = vpop.permute.xlu0 %1590
      %1592 = vrot.lane.b32.xlu0 %v963, 127
      %v1593 = vpop.permute.xlu0 %1592
      %vm1594 = vcmp.lt.s32.totalorder %v1433, 127
      %v1595 = vsel %vm1594, %v1587, %v1591
      %v1596 = vsel %vm1594, %v1589, %v1593
      %v1597 = vsel %vm1594, %v1591, %v1587
      %v1598 = vsel %vm1594, %v1593, %v1589
      %v1599 = vperm.slane %v966, 5
      %v1600 = vperm.slane %v967, 5
      %v1601 = vmul.f32 %v1595, %v1599
      %v1602 = vmul.f32 %v1597, %v1600
      %v1603 = vmul.f32 %v1596, %v1599
      %v1604 = vmul.f32 %v1598, %v1600
      %1606 = vset.pattern.permute.xlu0 0
      %1607 = vperm.xlu0 %1606, %v1584
      %v1608 = vpop.permute.xlu0 %1607
      %1611 = vset.pattern.permute.xlu0 0
      %1612 = vperm.xlu0 %1611, %v1585
      %v1613 = vpop.permute.xlu0 %1612
      %v1615 = vmul.f32 %v1608, %v1601
      %v1616 = vmul.f32 %v1608, %v1602
      %v1617 = vmul.f32 %v1613, %v1603
      %v1618 = vmul.f32 %v1613, %v1604
      %v1619 = vadd.f32 %v1579, %v1615
      %v1620 = vadd.f32 %v1580, %v1616
      %v1621 = vadd.f32 %v1581, %v1617
      %v1622 = vadd.f32 %v1582, %v1618
      %s1623 = scalar_lea.vmem %s25, 96
      %v1624 = vld [vmem:[%s1623] sm:$0xff]
      %v1625 = vld [vmem:[%s1623 + $0x8] sm:$0xff]
      %1626 = vrot.lane.b32.xlu0 %v960, 113
      %v1627 = vpop.permute.xlu0 %1626
      %1628 = vrot.lane.b32.xlu0 %v962, 113
      %v1629 = vpop.permute.xlu0 %1628
      %1630 = vrot.lane.b32.xlu0 %v961, 113
      %v1631 = vpop.permute.xlu0 %1630
      %1632 = vrot.lane.b32.xlu0 %v963, 113
      %v1633 = vpop.permute.xlu0 %1632
      %vm1634 = vcmp.lt.s32.totalorder %v1433, 113
      %v1635 = vsel %vm1634, %v1627, %v1631
      %v1636 = vsel %vm1634, %v1629, %v1633
      %v1637 = vsel %vm1634, %v1631, %v1627
      %v1638 = vsel %vm1634, %v1633, %v1629
      %v1639 = vperm.slane %v966, 6
      %v1640 = vperm.slane %v967, 6
      %v1641 = vmul.f32 %v1635, %v1639
      %v1642 = vmul.f32 %v1637, %v1640
      %v1643 = vmul.f32 %v1636, %v1639
      %v1644 = vmul.f32 %v1638, %v1640
      %1646 = vset.pattern.permute.xlu0 0
      %1647 = vperm.xlu0 %1646, %v1624
      %v1648 = vpop.permute.xlu0 %1647
      %1651 = vset.pattern.permute.xlu0 0
      %1652 = vperm.xlu0 %1651, %v1625
      %v1653 = vpop.permute.xlu0 %1652
      %v1655 = vmul.f32 %v1648, %v1641
      %v1656 = vmul.f32 %v1648, %v1642
      %v1657 = vmul.f32 %v1653, %v1643
      %v1658 = vmul.f32 %v1653, %v1644
      %v1659 = vadd.f32 %v1619, %v1655
      %v1660 = vadd.f32 %v1620, %v1656
      %v1661 = vadd.f32 %v1621, %v1657
      %v1662 = vadd.f32 %v1622, %v1658
      %s1663 = scalar_lea.vmem %s25, 112
      %v1664 = vld [vmem:[%s1663] sm:$0xff]
      %v1665 = vld [vmem:[%s1663 + $0x8] sm:$0xff]
      %1666 = vrot.lane.b32.xlu0 %v960, 112
      %v1667 = vpop.permute.xlu0 %1666
      %1668 = vrot.lane.b32.xlu0 %v962, 112
      %v1669 = vpop.permute.xlu0 %1668
      %1670 = vrot.lane.b32.xlu0 %v961, 112
      %v1671 = vpop.permute.xlu0 %1670
      %1672 = vrot.lane.b32.xlu0 %v963, 112
      %v1673 = vpop.permute.xlu0 %1672
      %vm1674 = vcmp.lt.s32.totalorder %v1433, 112
      %v1675 = vsel %vm1674, %v1667, %v1671
      %v1676 = vsel %vm1674, %v1669, %v1673
      %v1677 = vsel %vm1674, %v1671, %v1667
      %v1678 = vsel %vm1674, %v1673, %v1669
      %v1679 = vperm.slane %v966, 7
      %v1680 = vperm.slane %v967, 7
      %v1681 = vmul.f32 %v1675, %v1679
      %v1682 = vmul.f32 %v1677, %v1680
      %v1683 = vmul.f32 %v1676, %v1679
      %v1684 = vmul.f32 %v1678, %v1680
      %1686 = vset.pattern.permute.xlu0 0
      %1687 = vperm.xlu0 %1686, %v1664
      %v1688 = vpop.permute.xlu0 %1687
      %1691 = vset.pattern.permute.xlu0 0
      %1692 = vperm.xlu0 %1691, %v1665
      %v1693 = vpop.permute.xlu0 %1692
      %v1695 = vmul.f32 %v1688, %v1681
      %v1696 = vmul.f32 %v1688, %v1682
      %v1697 = vmul.f32 %v1693, %v1683
      %v1698 = vmul.f32 %v1693, %v1684
      %v1699 = vadd.f32 %v1659, %v1695
      %v1700 = vadd.f32 %v1660, %v1696
      %v1701 = vadd.f32 %v1661, %v1697
      %v1702 = vadd.f32 %v1662, %v1698
      %s1703 = scalar_lea.vmem %s25, 128
      %v1704 = vld [vmem:[%s1703] sm:$0xff]
      %v1705 = vld [vmem:[%s1703 + $0x8] sm:$0xff]
      %1706 = vrot.lane.b32.xlu0 %v960, 111
      %v1707 = vpop.permute.xlu0 %1706
      %1708 = vrot.lane.b32.xlu0 %v962, 111
      %v1709 = vpop.permute.xlu0 %1708
      %1710 = vrot.lane.b32.xlu0 %v961, 111
      %v1711 = vpop.permute.xlu0 %1710
      %1712 = vrot.lane.b32.xlu0 %v963, 111
      %v1713 = vpop.permute.xlu0 %1712
      %vm1714 = vcmp.lt.s32.totalorder %v1433, 111
      %v1715 = vsel %vm1714, %v1707, %v1711
      %v1716 = vsel %vm1714, %v1709, %v1713
      %v1717 = vsel %vm1714, %v1711, %v1707
      %v1718 = vsel %vm1714, %v1713, %v1709
      %v1719 = vperm.slane %v968, 0
      %v1720 = vperm.slane %v969, 0
      %v1721 = vmul.f32 %v1715, %v1719
      %v1722 = vmul.f32 %v1717, %v1720
      %v1723 = vmul.f32 %v1716, %v1719
      %v1724 = vmul.f32 %v1718, %v1720
      %1726 = vset.pattern.permute.xlu0 0
      %1727 = vperm.xlu0 %1726, %v1704
      %v1728 = vpop.permute.xlu0 %1727
      %1731 = vset.pattern.permute.xlu0 0
      %1732 = vperm.xlu0 %1731, %v1705
      %v1733 = vpop.permute.xlu0 %1732
      %v1735 = vmul.f32 %v1728, %v1721
      %v1736 = vmul.f32 %v1728, %v1722
      %v1737 = vmul.f32 %v1733, %v1723
      %v1738 = vmul.f32 %v1733, %v1724
      %v1739 = vadd.f32 %v1699, %v1735
      %v1740 = vadd.f32 %v1700, %v1736
      %v1741 = vadd.f32 %v1701, %v1737
      %v1742 = vadd.f32 %v1702, %v1738
      %v1743 = vld [vmem:[%s21] sm:$0xf]
      %v1744 = vpack.c.bf16 %v1741, %v1739
      %v1745 = vpack.c.bf16 %v1742, %v1740
      %v1747 = vsel %vm1009, %v1743, 0
      %1749 = vmatpush.bf16.msra.mxu0 0
      %1750 = vmatpush.bf16.msra.mxu0 0
      %1751 = vmatpush.bf16.msra.mxu0 0
      %1752 = vmatpush.bf16.msra.mxu0 0
      %1753 = vmatpush.bf16.msra.mxu0 0
      %1754 = vmatpush.bf16.msra.mxu0 0
      %1755 = vmatpush.bf16.msra.mxu0 0
      %1756 = vmatpush.bf16.msra.mxu0 %v1744
      %1757 = vmatmul.bf16.gmra.mxu0 %v1747
      %v1758 = vpop.f32.mrf.mxu0
      %v1759 = vadd.f32 0.0, %v1758
      %v1760 = vpop.f32.mrf.mxu0
      %1761 = vdwg.mxu0
      %1762 = vmatpush.bf16.msra.mxu0 0
      %1763 = vmatpush.bf16.msra.mxu0 0
      %1764 = vmatpush.bf16.msra.mxu0 0
      %1765 = vmatpush.bf16.msra.mxu0 0
      %1766 = vmatpush.bf16.msra.mxu0 0
      %1767 = vmatpush.bf16.msra.mxu0 0
      %1768 = vmatpush.bf16.msra.mxu0 0
      %1769 = vmatpush.bf16.msra.mxu0 %v1745
      %1770 = vmatmul.bf16.gmra.mxu0 %v1747
      %v1771 = vpop.f32.mrf.mxu0
      %v1772 = vadd.f32 0.0, %v1771
      %v1773 = vpop.f32.mrf.mxu0
      %1774 = vdwg.mxu0
      %v1775 = vpack.c.bf16 %v1759, %v1759
      %v1776 = vpack.c.bf16 %v1772, %v1772
      %v1777 = vld [vmem:[%s27] sm:$0xf]
      %v1778 = vld [vmem:[%s27 + $0x4] sm:$0xf]
      %v1779 = vld [vmem:[%s27 + $0x8] sm:$0xf]
      %v1780 = vld [vmem:[%s27 + $0xc] sm:$0xf]
      %v1781 = vld [vmem:[%s27 + $0x10] sm:$0xf]
      %v1782 = vld [vmem:[%s27 + $0x14] sm:$0xf]
      %v1783 = vld [vmem:[%s27 + $0x18] sm:$0xf]
      %v1784 = vld [vmem:[%s27 + $0x1c] sm:$0xf]
      %v1785 = vld [vmem:[%s27 + $0x20] sm:$0xf]
      %v1786 = vld [vmem:[%s27 + $0x24] sm:$0xf]
      %v1787 = vld [vmem:[%s27 + $0x28] sm:$0xf]
      %v1788 = vld [vmem:[%s27 + $0x2c] sm:$0xf]
      %v1789 = vld [vmem:[%s27 + $0x30] sm:$0xf]
      %v1790 = vld [vmem:[%s27 + $0x34] sm:$0xf]
      %v1791 = vld [vmem:[%s27 + $0x38] sm:$0xf]
      %v1792 = vld [vmem:[%s27 + $0x3c] sm:$0xf]
      %v1793 = vld [vmem:[%s27 + $0x40] sm:$0xf]
      %v1794 = vld [vmem:[%s27 + $0x44] sm:$0xf]
      %v1795 = vld [vmem:[%s27 + $0x48] sm:$0xf]
      %v1796 = vld [vmem:[%s27 + $0x4c] sm:$0xf]
      %v1797 = vld [vmem:[%s27 + $0x50] sm:$0xf]
      %v1798 = vld [vmem:[%s27 + $0x54] sm:$0xf]
      %v1799 = vld [vmem:[%s27 + $0x58] sm:$0xf]
      %v1800 = vld [vmem:[%s27 + $0x5c] sm:$0xf]
      %v1801 = vld [vmem:[%s27 + $0x60] sm:$0xf]
      %v1802 = vld [vmem:[%s27 + $0x64] sm:$0xf]
      %v1803 = vld [vmem:[%s27 + $0x68] sm:$0xf]
      %v1804 = vld [vmem:[%s27 + $0x6c] sm:$0xf]
      %v1805 = vld [vmem:[%s27 + $0x70] sm:$0xf]
      %v1806 = vld [vmem:[%s27 + $0x74] sm:$0xf]
      %v1807 = vld [vmem:[%s27 + $0x78] sm:$0xf]
      %v1808 = vld [vmem:[%s27 + $0x7c] sm:$0xf]
      %v1809 = vld [vmem:[%s23] sm:$0xff]
      %1811 = vset.pattern.permute.xlu0 0
      %1812 = vperm.xlu0 %1811, %v1809
      %v1813 = vpop.permute.xlu0 %1812
      %v1847 = vunpack.c.l.b16 %v1777
      %v1848 = vunpack.c.l.b16 %v1778
      %v1849 = vunpack.c.l.b16 %v1779
      %v1850 = vunpack.c.l.b16 %v1780
      %v1851 = vunpack.c.l.b16 %v1781
      %v1852 = vunpack.c.l.b16 %v1782
      %v1853 = vunpack.c.l.b16 %v1783
      %v1854 = vunpack.c.l.b16 %v1784
      %v1855 = vunpack.c.l.b16 %v1785
      %v1856 = vunpack.c.l.b16 %v1786
      %v1857 = vunpack.c.l.b16 %v1787
      %v1858 = vunpack.c.l.b16 %v1788
      %v1859 = vunpack.c.l.b16 %v1789
      %v1860 = vunpack.c.l.b16 %v1790
      %v1861 = vunpack.c.l.b16 %v1791
      %v1862 = vunpack.c.l.b16 %v1792
      %v1863 = vunpack.c.l.b16 %v1793
      %v1864 = vunpack.c.l.b16 %v1794
      %v1865 = vunpack.c.l.b16 %v1795
      %v1866 = vunpack.c.l.b16 %v1796
      %v1867 = vunpack.c.l.b16 %v1797
      %v1868 = vunpack.c.l.b16 %v1798
      %v1869 = vunpack.c.l.b16 %v1799
      %v1870 = vunpack.c.l.b16 %v1800
      %v1871 = vunpack.c.l.b16 %v1801
      %v1872 = vunpack.c.l.b16 %v1802
      %v1873 = vunpack.c.l.b16 %v1803
      %v1874 = vunpack.c.l.b16 %v1804
      %v1875 = vunpack.c.l.b16 %v1805
      %v1876 = vunpack.c.l.b16 %v1806
      %v1877 = vunpack.c.l.b16 %v1807
      %v1878 = vunpack.c.l.b16 %v1808
      %v1879 = vpack.c.b16 %v1848, %v1847
      %v1880 = vpack.c.b16 %v1850, %v1849
      %v1881 = vpack.c.b16 %v1852, %v1851
      %v1882 = vpack.c.b16 %v1854, %v1853
      %v1883 = vpack.c.b16 %v1856, %v1855
      %v1884 = vpack.c.b16 %v1858, %v1857
      %v1885 = vpack.c.b16 %v1860, %v1859
      %v1886 = vpack.c.b16 %v1862, %v1861
      %v1887 = vpack.c.b16 %v1864, %v1863
      %v1888 = vpack.c.b16 %v1866, %v1865
      %v1889 = vpack.c.b16 %v1868, %v1867
      %v1890 = vpack.c.b16 %v1870, %v1869
      %v1891 = vpack.c.b16 %v1872, %v1871
      %v1892 = vpack.c.b16 %v1874, %v1873
      %v1893 = vpack.c.b16 %v1876, %v1875
      %v1894 = vpack.c.b16 %v1878, %v1877
      %1911 = vmatpush.bf16.msra.mxu0 %v1886
      %1912 = vmatpush.bf16.msra.mxu0 %v1885
      %1913 = vmatpush.bf16.msra.mxu0 %v1884
      %1914 = vmatpush.bf16.msra.mxu0 %v1883
      %1915 = vmatpush.bf16.msra.mxu0 %v1882
      %1916 = vmatpush.bf16.msra.mxu0 %v1881
      %1917 = vmatpush.bf16.msra.mxu0 %v1880
      %1918 = vmatpush.bf16.msra.mxu0 %v1879
      %1919 = vmatmul.bf16.gmra.mxu0 %v1775
      %v1920 = vpop.f32.mrf.mxu0
      %v1921 = vadd.f32 %v1813, %v1920
      %v1922 = vpop.f32.mrf.mxu0
      %1923 = vdwg.mxu0
      %1924 = vmatpush.bf16.msra.mxu0 %v1894
      %1925 = vmatpush.bf16.msra.mxu0 %v1893
      %1926 = vmatpush.bf16.msra.mxu0 %v1892
      %1927 = vmatpush.bf16.msra.mxu0 %v1891
      %1928 = vmatpush.bf16.msra.mxu0 %v1890
      %1929 = vmatpush.bf16.msra.mxu0 %v1889
      %1930 = vmatpush.bf16.msra.mxu0 %v1888
      %1931 = vmatpush.bf16.msra.mxu0 %v1887
      %1932 = vmatmul.bf16.gmra.mxu0 %v1776
      %v1933 = vpop.f32.mrf.mxu0
      %v1934 = vadd.f32 %v1921, %v1933
      %v1935 = vpop.f32.mrf.mxu0
      %1936 = vdwg.mxu0
      %v1937 = vpack.c.bf16 %v1240, %v1240
      %v1938 = vld [vmem:[%s29] sm:$0xff]
      %v1939 = vld [vmem:[%s29 + $0x8] sm:$0xff]
      %v1940 = vld [vmem:[%s29 + $0x10] sm:$0xff]
      %v1941 = vld [vmem:[%s29 + $0x18] sm:$0xff]
      %v1942 = vld [vmem:[%s29 + $0x20] sm:$0xff]
      %v1943 = vld [vmem:[%s29 + $0x28] sm:$0xff]
      %v1944 = vld [vmem:[%s29 + $0x30] sm:$0xff]
      %v1945 = vld [vmem:[%s29 + $0x38] sm:$0xff]
      %v1954 = vunpack.c.l.b16 %v1938
      %v1955 = vunpack.c.h.b16 %v1938
      %v1956 = vunpack.c.l.b16 %v1939
      %v1957 = vunpack.c.h.b16 %v1939
      %v1958 = vunpack.c.l.b16 %v1940
      %v1959 = vunpack.c.h.b16 %v1940
      %v1960 = vunpack.c.l.b16 %v1941
      %v1961 = vunpack.c.h.b16 %v1941
      %v1962 = vunpack.c.l.b16 %v1942
      %v1963 = vunpack.c.h.b16 %v1942
      %v1964 = vunpack.c.l.b16 %v1943
      %v1965 = vunpack.c.h.b16 %v1943
      %v1966 = vunpack.c.l.b16 %v1944
      %v1967 = vunpack.c.h.b16 %v1944
      %v1968 = vunpack.c.l.b16 %v1945
      %v1969 = vunpack.c.h.b16 %v1945
      %v1970 = vpack.c.b16 %v1956, %v1954
      %v1971 = vpack.c.b16 %v1957, %v1955
      %v1972 = vpack.c.b16 %v1960, %v1958
      %v1973 = vpack.c.b16 %v1961, %v1959
      %v1974 = vpack.c.b16 %v1964, %v1962
      %v1975 = vpack.c.b16 %v1965, %v1963
      %v1976 = vpack.c.b16 %v1968, %v1966
      %v1977 = vpack.c.b16 %v1969, %v1967
      %vm1986 = vcmask 523264
      %v1988 = vsel %vm1986, %v1937, 0
      %1990 = vmatpush.bf16.msra.mxu0 0
      %1991 = vmatpush.bf16.msra.mxu0 0
      %1992 = vmatpush.bf16.msra.mxu0 0
      %1993 = vmatpush.bf16.msra.mxu0 0
      %1994 = vmatpush.bf16.msra.mxu0 %v1976
      %1995 = vmatpush.bf16.msra.mxu0 %v1974
      %1996 = vmatpush.bf16.msra.mxu0 %v1972
      %1997 = vmatpush.bf16.msra.mxu0 %v1970
      %1998 = vmatmul.bf16.gmra.mxu0 %v1988
      %v1999 = vpop.f32.mrf.mxu0
      %v2000 = vadd.f32 %v1023, %v1999
      %v2001 = vpop.f32.mrf.mxu0
      %2002 = vdwg.mxu0
      %2003 = vmatpush.bf16.msra.mxu0 0
      %2004 = vmatpush.bf16.msra.mxu0 0
      %2005 = vmatpush.bf16.msra.mxu0 0
      %2006 = vmatpush.bf16.msra.mxu0 0
      %2007 = vmatpush.bf16.msra.mxu0 %v1977
      %2008 = vmatpush.bf16.msra.mxu0 %v1975
      %2009 = vmatpush.bf16.msra.mxu0 %v1973
      %2010 = vmatpush.bf16.msra.mxu0 %v1971
      %2011 = vmatmul.bf16.gmra.mxu0 %v1988
      %v2012 = vpop.f32.mrf.mxu0
      %v2013 = vadd.f32 %v1036, %v2012
      %v2014 = vpop.f32.mrf.mxu0
      %2015 = vdwg.mxu0
      %v2016 = vld [vmem:[%s33] sm:$0xff]
      %2018 = vset.pattern.permute.xlu0 0
      %2019 = vperm.xlu0 %2018, %v2016
      %v2020 = vpop.permute.xlu0 %2019
      %v2022 = vmul.f32 %v2000, %v2020
      %v2023 = vmul.f32 %v2013, %v2020
      %v2024 = vld [vmem:[%s35] sm:$0xff]
      %2026 = vset.pattern.permute.xlu0 0
      %2027 = vperm.xlu0 %2026, %v2024
      %v2028 = vpop.permute.xlu0 %2027
      %v2030 = vadd.f32 %v2022, %v2028
      %v2031 = vadd.f32 %v2023, %v2028
      %v2032 = vmax.f32 %v2030, 0.0
      %v2033 = vmax.f32 %v2031, 0.0
      %v2034 = vpack.c.bf16 %v2032, %v2032
      %v2035 = vpack.c.bf16 %v2033, %v2033
      %v2036 = vld [vmem:[%s37] sm:$0xf]
      %v2037 = vld [vmem:[%s37 + $0x4] sm:$0xf]
      %v2038 = vld [vmem:[%s37 + $0x8] sm:$0xf]
      %v2039 = vld [vmem:[%s37 + $0xc] sm:$0xf]
      %v2040 = vld [vmem:[%s37 + $0x10] sm:$0xf]
      %v2041 = vld [vmem:[%s37 + $0x14] sm:$0xf]
      %v2042 = vld [vmem:[%s37 + $0x18] sm:$0xf]
      %v2043 = vld [vmem:[%s37 + $0x1c] sm:$0xf]
      %v2044 = vld [vmem:[%s37 + $0x20] sm:$0xf]
      %v2054 = vunpack.c.l.b16 %v2036
      %v2055 = vunpack.c.l.b16 %v2037
      %v2056 = vunpack.c.l.b16 %v2038
      %v2057 = vunpack.c.l.b16 %v2039
      %v2058 = vunpack.c.l.b16 %v2040
      %v2059 = vunpack.c.l.b16 %v2041
      %v2060 = vunpack.c.l.b16 %v2042
      %v2061 = vunpack.c.l.b16 %v2043
      %v2062 = vunpack.c.l.b16 %v2044
      %v2063 = vpack.c.b16 %v2055, %v2054
      %v2064 = vpack.c.b16 %v2057, %v2056
      %v2065 = vpack.c.b16 %v2059, %v2058
      %v2066 = vpack.c.b16 %v2061, %v2060
      %v2067 = vpack.c.b16 %v2062, %v2062
      %vm2068 = vcmask 64512
      %v2070 = vsel %vm2068, %v2063, 0
      %v2073 = vsel %vm2068, %v2064, 0
      %v2076 = vsel %vm2068, %v2065, 0
      %v2079 = vsel %vm2068, %v2066, 0
      %v2082 = vsel %vm2068, %v2067, 0
      %vm2084 = vcmask 1043456
      %v2086 = vsel %vm2084, %v2034, 0
      %v2089 = vsel %vm2084, %v2035, 0
      %2091 = vmatpush.bf16.msra.mxu0 0
      %2092 = vmatpush.bf16.msra.mxu0 0
      %2093 = vmatpush.bf16.msra.mxu0 0
      %2094 = vmatpush.bf16.msra.mxu0 0
      %2095 = vmatpush.bf16.msra.mxu0 0
      %2096 = vmatpush.bf16.msra.mxu0 0
      %2097 = vmatpush.bf16.msra.mxu0 0
      %2098 = vmatpush.bf16.msra.mxu0 %v2086
      %2099 = vmatmul.bf16.gmra.mxu0 %v2070
      %v2100 = vpop.f32.mrf.mxu0
      %v2101 = vadd.f32 0.0, %v2100
      %v2102 = vpop.f32.mrf.mxu0
      %v2103 = vadd.f32 0.0, %v2102
      %2104 = vmatmul.bf16.gmra.mxu0 %v2073
      %v2105 = vpop.f32.mrf.mxu0
      %v2106 = vadd.f32 0.0, %v2105
      %v2107 = vpop.f32.mrf.mxu0
      %v2108 = vadd.f32 0.0, %v2107
      %2109 = vmatmul.bf16.gmra.mxu0 %v2076
      %v2110 = vpop.f32.mrf.mxu0
      %v2111 = vadd.f32 0.0, %v2110
      %v2112 = vpop.f32.mrf.mxu0
      %v2113 = vadd.f32 0.0, %v2112
      %2114 = vmatmul.bf16.gmra.mxu0 %v2079
      %v2115 = vpop.f32.mrf.mxu0
      %v2116 = vadd.f32 0.0, %v2115
      %v2117 = vpop.f32.mrf.mxu0
      %v2118 = vadd.f32 0.0, %v2117
      %2119 = vmatmul.bf16.gmra.mxu0 %v2082
      %v2120 = vpop.f32.mrf.mxu0
      %v2121 = vadd.f32 0.0, %v2120
      %v2122 = vpop.f32.mrf.mxu0
      %2123 = vdwg.mxu0
      %2124 = vmatpush.bf16.msra.mxu0 0
      %2125 = vmatpush.bf16.msra.mxu0 0
      %2126 = vmatpush.bf16.msra.mxu0 0
      %2127 = vmatpush.bf16.msra.mxu0 0
      %2128 = vmatpush.bf16.msra.mxu0 0
      %2129 = vmatpush.bf16.msra.mxu0 0
      %2130 = vmatpush.bf16.msra.mxu0 0
      %2131 = vmatpush.bf16.msra.mxu0 %v2089
      %2132 = vmatmul.bf16.gmra.mxu0 %v2070
      %v2133 = vpop.f32.mrf.mxu0
      %v2134 = vadd.f32 0.0, %v2133
      %v2135 = vpop.f32.mrf.mxu0
      %v2136 = vadd.f32 0.0, %v2135
      %2137 = vmatmul.bf16.gmra.mxu0 %v2073
      %v2138 = vpop.f32.mrf.mxu0
      %v2139 = vadd.f32 0.0, %v2138
      %v2140 = vpop.f32.mrf.mxu0
      %v2141 = vadd.f32 0.0, %v2140
      %2142 = vmatmul.bf16.gmra.mxu0 %v2076
      %v2143 = vpop.f32.mrf.mxu0
      %v2144 = vadd.f32 0.0, %v2143
      %v2145 = vpop.f32.mrf.mxu0
      %v2146 = vadd.f32 0.0, %v2145
      %2147 = vmatmul.bf16.gmra.mxu0 %v2079
      %v2148 = vpop.f32.mrf.mxu0
      %v2149 = vadd.f32 0.0, %v2148
      %v2150 = vpop.f32.mrf.mxu0
      %v2151 = vadd.f32 0.0, %v2150
      %2152 = vmatmul.bf16.gmra.mxu0 %v2082
      %v2153 = vpop.f32.mrf.mxu0
      %v2154 = vadd.f32 0.0, %v2153
      %v2155 = vpop.f32.mrf.mxu0
      %2156 = vdwg.mxu0
      %2157 = vrot.lane.b32.xlu0 %v2101, 17
      %v2158 = vpop.permute.xlu0 %2157
      %2159 = vrot.lane.b32.xlu0 %v2134, 17
      %v2160 = vpop.permute.xlu0 %2159
      %v2161 = vsel %vm1434, %v2158, %v2160
      %v2162 = vsel %vm1434, %v2160, %v2158
      %v2163 = vmul.f32 %v2162, %v1439
      %v2164 = vmul.f32 %v2161, %v1440
      %v2165 = vadd.f32 %v2111, %v2163
      %v2166 = vadd.f32 %v2144, %v2164
      %2167 = vrot.lane.b32.xlu0 %v2103, 16
      %v2168 = vpop.permute.xlu0 %2167
      %2169 = vrot.lane.b32.xlu0 %v2136, 16
      %v2170 = vpop.permute.xlu0 %2169
      %v2171 = vsel %vm1474, %v2168, %v2170
      %v2172 = vsel %vm1474, %v2170, %v2168
      %v2173 = vmul.f32 %v2172, %v1479
      %v2174 = vmul.f32 %v2171, %v1480
      %v2175 = vadd.f32 %v2165, %v2173
      %v2176 = vadd.f32 %v2166, %v2174
      %2177 = vrot.lane.b32.xlu0 %v2106, 15
      %v2178 = vpop.permute.xlu0 %2177
      %2179 = vrot.lane.b32.xlu0 %v2139, 15
      %v2180 = vpop.permute.xlu0 %2179
      %v2181 = vsel %vm1514, %v2178, %v2180
      %v2182 = vsel %vm1514, %v2180, %v2178
      %v2183 = vmul.f32 %v2182, %v1519
      %v2184 = vmul.f32 %v2181, %v1520
      %v2185 = vadd.f32 %v2175, %v2183
      %v2186 = vadd.f32 %v2176, %v2184
      %2187 = vrot.lane.b32.xlu0 %v2108, 1
      %v2188 = vpop.permute.xlu0 %2187
      %2189 = vrot.lane.b32.xlu0 %v2141, 1
      %v2190 = vpop.permute.xlu0 %2189
      %v2191 = vsel %vm1554, %v2188, %v2190
      %v2192 = vsel %vm1554, %v2190, %v2188
      %v2193 = vmul.f32 %v2192, %v1559
      %v2194 = vmul.f32 %v2191, %v1560
      %v2195 = vadd.f32 %v2185, %v2193
      %v2196 = vadd.f32 %v2186, %v2194
      %2197 = vrot.lane.b32.xlu0 %v2113, 127
      %v2198 = vpop.permute.xlu0 %2197
      %2199 = vrot.lane.b32.xlu0 %v2146, 127
      %v2200 = vpop.permute.xlu0 %2199
      %v2201 = vsel %vm1594, %v2198, %v2200
      %v2202 = vsel %vm1594, %v2200, %v2198
      %v2203 = vmul.f32 %v2201, %v1599
      %v2204 = vmul.f32 %v2202, %v1600
      %v2205 = vadd.f32 %v2195, %v2203
      %v2206 = vadd.f32 %v2196, %v2204
      %2207 = vrot.lane.b32.xlu0 %v2116, 113
      %v2208 = vpop.permute.xlu0 %2207
      %2209 = vrot.lane.b32.xlu0 %v2149, 113
      %v2210 = vpop.permute.xlu0 %2209
      %v2211 = vsel %vm1634, %v2208, %v2210
      %v2212 = vsel %vm1634, %v2210, %v2208
      %v2213 = vmul.f32 %v2211, %v1639
      %v2214 = vmul.f32 %v2212, %v1640
      %v2215 = vadd.f32 %v2205, %v2213
      %v2216 = vadd.f32 %v2206, %v2214
      %2217 = vrot.lane.b32.xlu0 %v2118, 112
      %v2218 = vpop.permute.xlu0 %2217
      %2219 = vrot.lane.b32.xlu0 %v2151, 112
      %v2220 = vpop.permute.xlu0 %2219
      %v2221 = vsel %vm1674, %v2218, %v2220
      %v2222 = vsel %vm1674, %v2220, %v2218
      %v2223 = vmul.f32 %v2221, %v1679
      %v2224 = vmul.f32 %v2222, %v1680
      %v2225 = vadd.f32 %v2215, %v2223
      %v2226 = vadd.f32 %v2216, %v2224
      %2227 = vrot.lane.b32.xlu0 %v2121, 111
      %v2228 = vpop.permute.xlu0 %2227
      %2229 = vrot.lane.b32.xlu0 %v2154, 111
      %v2230 = vpop.permute.xlu0 %2229
      %v2231 = vsel %vm1714, %v2228, %v2230
      %v2232 = vsel %vm1714, %v2230, %v2228
      %v2233 = vmul.f32 %v2231, %v1719
      %v2234 = vmul.f32 %v2232, %v1720
      %v2235 = vadd.f32 %v2225, %v2233
      %v2236 = vadd.f32 %v2226, %v2234
      %v2237 = vpack.c.bf16 %v1404, %v1404
      %v2238 = vld [vmem:[%s31] sm:$0xff]
      %v2239 = vld [vmem:[%s31 + $0x8] sm:$0xff]
      %v2242 = vunpack.c.l.b16 %v2238
      %v2243 = vunpack.c.h.b16 %v2238
      %v2244 = vunpack.c.l.b16 %v2239
      %v2245 = vunpack.c.h.b16 %v2239
      %v2246 = vpack.c.b16 %v2244, %v2242
      %v2247 = vpack.c.b16 %v2245, %v2243
      %v2251 = vsel %vm1009, %v2237, 0
      %2253 = vmatpush.bf16.msra.mxu0 0
      %2254 = vmatpush.bf16.msra.mxu0 0
      %2255 = vmatpush.bf16.msra.mxu0 0
      %2256 = vmatpush.bf16.msra.mxu0 0
      %2257 = vmatpush.bf16.msra.mxu0 0
      %2258 = vmatpush.bf16.msra.mxu0 0
      %2259 = vmatpush.bf16.msra.mxu0 0
      %2260 = vmatpush.bf16.msra.mxu0 %v2246
      %2261 = vmatmul.bf16.gmra.mxu0 %v2251
      %v2262 = vpop.f32.mrf.mxu0
      %v2263 = vadd.f32 %v2235, %v2262
      %v2264 = vpop.f32.mrf.mxu0
      %2265 = vdwg.mxu0
      %2266 = vmatpush.bf16.msra.mxu0 0
      %2267 = vmatpush.bf16.msra.mxu0 0
      %2268 = vmatpush.bf16.msra.mxu0 0
      %2269 = vmatpush.bf16.msra.mxu0 0
      %2270 = vmatpush.bf16.msra.mxu0 0
      %2271 = vmatpush.bf16.msra.mxu0 0
      %2272 = vmatpush.bf16.msra.mxu0 0
      %2273 = vmatpush.bf16.msra.mxu0 %v2247
      %2274 = vmatmul.bf16.gmra.mxu0 %v2251
      %v2275 = vpop.f32.mrf.mxu0
      %v2276 = vadd.f32 %v2236, %v2275
      %v2277 = vpop.f32.mrf.mxu0
      %2278 = vdwg.mxu0
      %v2279 = vld [vmem:[%s39] sm:$0xff]
      %2281 = vset.pattern.permute.xlu0 0
      %2282 = vperm.xlu0 %2281, %v2279
      %v2283 = vpop.permute.xlu0 %2282
      %v2285 = vmul.f32 %v2263, %v2283
      %v2286 = vmul.f32 %v2276, %v2283
      %v2287 = vld [vmem:[%s41] sm:$0xff]
      %2289 = vset.pattern.permute.xlu0 0
      %2290 = vperm.xlu0 %2289, %v2287
      %v2291 = vpop.permute.xlu0 %2290
      %v2293 = vadd.f32 %v2285, %v2291
      %v2294 = vadd.f32 %v2286, %v2291
      %v2295 = vmax.f32 %v2293, 0.0
      %v2296 = vmax.f32 %v2294, 0.0
      %v2297 = vpack.c.bf16 %v2295, %v2295
      %v2298 = vpack.c.bf16 %v2296, %v2296
      %v2299 = vld [vmem:[%s43] sm:$0xf]
      %v2300 = vld [vmem:[%s43 + $0x4] sm:$0xf]
      %v2301 = vld [vmem:[%s43 + $0x8] sm:$0xf]
      %v2302 = vld [vmem:[%s43 + $0xc] sm:$0xf]
      %v2303 = vld [vmem:[%s43 + $0x10] sm:$0xf]
      %v2304 = vld [vmem:[%s43 + $0x14] sm:$0xf]
      %v2305 = vld [vmem:[%s43 + $0x18] sm:$0xf]
      %v2306 = vld [vmem:[%s43 + $0x1c] sm:$0xf]
      %v2307 = vld [vmem:[%s43 + $0x20] sm:$0xf]
      %v2317 = vunpack.c.l.b16 %v2299
      %v2318 = vunpack.c.l.b16 %v2300
      %v2319 = vunpack.c.l.b16 %v2301
      %v2320 = vunpack.c.l.b16 %v2302
      %v2321 = vunpack.c.l.b16 %v2303
      %v2322 = vunpack.c.l.b16 %v2304
      %v2323 = vunpack.c.l.b16 %v2305
      %v2324 = vunpack.c.l.b16 %v2306
      %v2325 = vunpack.c.l.b16 %v2307
      %v2326 = vpack.c.b16 %v2318, %v2317
      %v2327 = vpack.c.b16 %v2320, %v2319
      %v2328 = vpack.c.b16 %v2322, %v2321
      %v2329 = vpack.c.b16 %v2324, %v2323
      %v2330 = vpack.c.b16 %v2325, %v2325
      %v2332 = vsel %vm2068, %v2326, 0
      %v2335 = vsel %vm2068, %v2327, 0
      %v2338 = vsel %vm2068, %v2328, 0
      %v2341 = vsel %vm2068, %v2329, 0
      %v2344 = vsel %vm2068, %v2330, 0
      %v2347 = vsel %vm2084, %v2297, 0
      %v2350 = vsel %vm2084, %v2298, 0
      %2352 = vmatpush.bf16.msra.mxu0 0
      %2353 = vmatpush.bf16.msra.mxu0 0
      %2354 = vmatpush.bf16.msra.mxu0 0
      %2355 = vmatpush.bf16.msra.mxu0 0
      %2356 = vmatpush.bf16.msra.mxu0 0
      %2357 = vmatpush.bf16.msra.mxu0 0
      %2358 = vmatpush.bf16.msra.mxu0 0
      %2359 = vmatpush.bf16.msra.mxu0 %v2347
      %2360 = vmatmul.bf16.gmra.mxu0 %v2332
      %v2361 = vpop.f32.mrf.mxu0
      %v2362 = vadd.f32 0.0, %v2361
      %v2363 = vpop.f32.mrf.mxu0
      %v2364 = vadd.f32 0.0, %v2363
      %2365 = vmatmul.bf16.gmra.mxu0 %v2335
      %v2366 = vpop.f32.mrf.mxu0
      %v2367 = vadd.f32 0.0, %v2366
      %v2368 = vpop.f32.mrf.mxu0
      %v2369 = vadd.f32 0.0, %v2368
      %2370 = vmatmul.bf16.gmra.mxu0 %v2338
      %v2371 = vpop.f32.mrf.mxu0
      %v2372 = vadd.f32 0.0, %v2371
      %v2373 = vpop.f32.mrf.mxu0
      %v2374 = vadd.f32 0.0, %v2373
      %2375 = vmatmul.bf16.gmra.mxu0 %v2341
      %v2376 = vpop.f32.mrf.mxu0
      %v2377 = vadd.f32 0.0, %v2376
      %v2378 = vpop.f32.mrf.mxu0
      %v2379 = vadd.f32 0.0, %v2378
      %2380 = vmatmul.bf16.gmra.mxu0 %v2344
      %v2381 = vpop.f32.mrf.mxu0
      %v2382 = vadd.f32 0.0, %v2381
      %v2383 = vpop.f32.mrf.mxu0
      %2384 = vdwg.mxu0
      %2385 = vmatpush.bf16.msra.mxu0 0
      %2386 = vmatpush.bf16.msra.mxu0 0
      %2387 = vmatpush.bf16.msra.mxu0 0
      %2388 = vmatpush.bf16.msra.mxu0 0
      %2389 = vmatpush.bf16.msra.mxu0 0
      %2390 = vmatpush.bf16.msra.mxu0 0
      %2391 = vmatpush.bf16.msra.mxu0 0
      %2392 = vmatpush.bf16.msra.mxu0 %v2350
      %2393 = vmatmul.bf16.gmra.mxu0 %v2332
      %v2394 = vpop.f32.mrf.mxu0
      %v2395 = vadd.f32 0.0, %v2394
      %v2396 = vpop.f32.mrf.mxu0
      %v2397 = vadd.f32 0.0, %v2396
      %2398 = vmatmul.bf16.gmra.mxu0 %v2335
      %v2399 = vpop.f32.mrf.mxu0
      %v2400 = vadd.f32 0.0, %v2399
      %v2401 = vpop.f32.mrf.mxu0
      %v2402 = vadd.f32 0.0, %v2401
      %2403 = vmatmul.bf16.gmra.mxu0 %v2338
      %v2404 = vpop.f32.mrf.mxu0
      %v2405 = vadd.f32 0.0, %v2404
      %v2406 = vpop.f32.mrf.mxu0
      %v2407 = vadd.f32 0.0, %v2406
      %2408 = vmatmul.bf16.gmra.mxu0 %v2341
      %v2409 = vpop.f32.mrf.mxu0
      %v2410 = vadd.f32 0.0, %v2409
      %v2411 = vpop.f32.mrf.mxu0
      %v2412 = vadd.f32 0.0, %v2411
      %2413 = vmatmul.bf16.gmra.mxu0 %v2344
      %v2414 = vpop.f32.mrf.mxu0
      %v2415 = vadd.f32 0.0, %v2414
      %v2416 = vpop.f32.mrf.mxu0
      %2417 = vdwg.mxu0
      %2418 = vrot.lane.b32.xlu0 %v2362, 17
      %v2419 = vpop.permute.xlu0 %2418
      %2420 = vrot.lane.b32.xlu0 %v2395, 17
      %v2421 = vpop.permute.xlu0 %2420
      %v2422 = vsel %vm1434, %v2419, %v2421
      %v2423 = vsel %vm1434, %v2421, %v2419
      %v2424 = vmul.f32 %v2423, %v1439
      %v2425 = vmul.f32 %v2422, %v1440
      %v2426 = vadd.f32 %v2372, %v2424
      %v2427 = vadd.f32 %v2405, %v2425
      %2428 = vrot.lane.b32.xlu0 %v2364, 16
      %v2429 = vpop.permute.xlu0 %2428
      %2430 = vrot.lane.b32.xlu0 %v2397, 16
      %v2431 = vpop.permute.xlu0 %2430
      %v2432 = vsel %vm1474, %v2429, %v2431
      %v2433 = vsel %vm1474, %v2431, %v2429
      %v2434 = vmul.f32 %v2433, %v1479
      %v2435 = vmul.f32 %v2432, %v1480
      %v2436 = vadd.f32 %v2426, %v2434
      %v2437 = vadd.f32 %v2427, %v2435
      %2438 = vrot.lane.b32.xlu0 %v2367, 15
      %v2439 = vpop.permute.xlu0 %2438
      %2440 = vrot.lane.b32.xlu0 %v2400, 15
      %v2441 = vpop.permute.xlu0 %2440
      %v2442 = vsel %vm1514, %v2439, %v2441
      %v2443 = vsel %vm1514, %v2441, %v2439
      %v2444 = vmul.f32 %v2443, %v1519
      %v2445 = vmul.f32 %v2442, %v1520
      %v2446 = vadd.f32 %v2436, %v2444
      %v2447 = vadd.f32 %v2437, %v2445
      %2448 = vrot.lane.b32.xlu0 %v2369, 1
      %v2449 = vpop.permute.xlu0 %2448
      %2450 = vrot.lane.b32.xlu0 %v2402, 1
      %v2451 = vpop.permute.xlu0 %2450
      %v2452 = vsel %vm1554, %v2449, %v2451
      %v2453 = vsel %vm1554, %v2451, %v2449
      %v2454 = vmul.f32 %v2453, %v1559
      %v2455 = vmul.f32 %v2452, %v1560
      %v2456 = vadd.f32 %v2446, %v2454
      %v2457 = vadd.f32 %v2447, %v2455
      %2458 = vrot.lane.b32.xlu0 %v2374, 127
      %v2459 = vpop.permute.xlu0 %2458
      %2460 = vrot.lane.b32.xlu0 %v2407, 127
      %v2461 = vpop.permute.xlu0 %2460
      %v2462 = vsel %vm1594, %v2459, %v2461
      %v2463 = vsel %vm1594, %v2461, %v2459
      %v2464 = vmul.f32 %v2462, %v1599
      %v2465 = vmul.f32 %v2463, %v1600
      %v2466 = vadd.f32 %v2456, %v2464
      %v2467 = vadd.f32 %v2457, %v2465
      %2468 = vrot.lane.b32.xlu0 %v2377, 113
      %v2469 = vpop.permute.xlu0 %2468
      %2470 = vrot.lane.b32.xlu0 %v2410, 113
      %v2471 = vpop.permute.xlu0 %2470
      %v2472 = vsel %vm1634, %v2469, %v2471
      %v2473 = vsel %vm1634, %v2471, %v2469
      %v2474 = vmul.f32 %v2472, %v1639
      %v2475 = vmul.f32 %v2473, %v1640
      %v2476 = vadd.f32 %v2466, %v2474
      %v2477 = vadd.f32 %v2467, %v2475
      %2478 = vrot.lane.b32.xlu0 %v2379, 112
      %v2479 = vpop.permute.xlu0 %2478
      %2480 = vrot.lane.b32.xlu0 %v2412, 112
      %v2481 = vpop.permute.xlu0 %2480
      %v2482 = vsel %vm1674, %v2479, %v2481
      %v2483 = vsel %vm1674, %v2481, %v2479
      %v2484 = vmul.f32 %v2482, %v1679
      %v2485 = vmul.f32 %v2483, %v1680
      %v2486 = vadd.f32 %v2476, %v2484
      %v2487 = vadd.f32 %v2477, %v2485
      %2488 = vrot.lane.b32.xlu0 %v2382, 111
      %v2489 = vpop.permute.xlu0 %2488
      %2490 = vrot.lane.b32.xlu0 %v2415, 111
      %v2491 = vpop.permute.xlu0 %2490
      %v2492 = vsel %vm1714, %v2489, %v2491
      %v2493 = vsel %vm1714, %v2491, %v2489
      %v2494 = vmul.f32 %v2492, %v1719
      %v2495 = vmul.f32 %v2493, %v1720
      %v2496 = vadd.f32 %v2486, %v2494
      %v2497 = vadd.f32 %v2487, %v2495
      %v2498 = vpack.c.bf16 %v1934, %v1934
      %v2500 = vsel %vm1986, %v2498, 0
      %2502 = vmatpush.bf16.msra.mxu0 0
      %2503 = vmatpush.bf16.msra.mxu0 0
      %2504 = vmatpush.bf16.msra.mxu0 0
      %2505 = vmatpush.bf16.msra.mxu0 0
      %2506 = vmatpush.bf16.msra.mxu0 %v1976
      %2507 = vmatpush.bf16.msra.mxu0 %v1974
      %2508 = vmatpush.bf16.msra.mxu0 %v1972
      %2509 = vmatpush.bf16.msra.mxu0 %v1970
      %2510 = vmatmul.bf16.gmra.mxu0 %v2500
      %v2511 = vpop.f32.mrf.mxu0
      %v2512 = vadd.f32 %v2496, %v2511
      %v2513 = vpop.f32.mrf.mxu0
      %2514 = vdwg.mxu0
      %2515 = vmatpush.bf16.msra.mxu0 0
      %2516 = vmatpush.bf16.msra.mxu0 0
      %2517 = vmatpush.bf16.msra.mxu0 0
      %2518 = vmatpush.bf16.msra.mxu0 0
      %2519 = vmatpush.bf16.msra.mxu0 %v1977
      %2520 = vmatpush.bf16.msra.mxu0 %v1975
      %2521 = vmatpush.bf16.msra.mxu0 %v1973
      %2522 = vmatpush.bf16.msra.mxu0 %v1971
      %2523 = vmatmul.bf16.gmra.mxu0 %v2500
      %v2524 = vpop.f32.mrf.mxu0
      %v2525 = vadd.f32 %v2497, %v2524
      %v2526 = vpop.f32.mrf.mxu0
      %2527 = vdwg.mxu0
      %v2528 = vld [vmem:[%s45] sm:$0xff]
      %2530 = vset.pattern.permute.xlu0 0
      %2531 = vperm.xlu0 %2530, %v2528
      %v2532 = vpop.permute.xlu0 %2531
      %v2534 = vmul.f32 %v2512, %v2532
      %v2535 = vmul.f32 %v2525, %v2532
      %v2536 = vld [vmem:[%s47] sm:$0xff]
      %2538 = vset.pattern.permute.xlu0 0
      %2539 = vperm.xlu0 %2538, %v2536
      %v2540 = vpop.permute.xlu0 %2539
      %v2542 = vadd.f32 %v2534, %v2540
      %v2543 = vadd.f32 %v2535, %v2540
      %v2544 = vmax.f32 %v2542, 0.0
      %v2545 = vmax.f32 %v2543, 0.0
      %v2546 = vpack.c.bf16 %v2544, %v2544
      %v2547 = vpack.c.bf16 %v2545, %v2545
      %v2548 = vld [vmem:[%s49] sm:$0xf]
      %v2549 = vld [vmem:[%s49 + $0x4] sm:$0xf]
      %v2550 = vld [vmem:[%s49 + $0x8] sm:$0xf]
      %v2551 = vld [vmem:[%s49 + $0xc] sm:$0xf]
      %v2552 = vld [vmem:[%s49 + $0x10] sm:$0xf]
      %v2553 = vld [vmem:[%s49 + $0x14] sm:$0xf]
      %v2554 = vld [vmem:[%s49 + $0x18] sm:$0xf]
      %v2555 = vld [vmem:[%s49 + $0x1c] sm:$0xf]
      %v2556 = vld [vmem:[%s49 + $0x20] sm:$0xf]
      %v2566 = vunpack.c.l.b16 %v2548
      %v2567 = vunpack.c.l.b16 %v2549
      %v2568 = vunpack.c.l.b16 %v2550
      %v2569 = vunpack.c.l.b16 %v2551
      %v2570 = vunpack.c.l.b16 %v2552
      %v2571 = vunpack.c.l.b16 %v2553
      %v2572 = vunpack.c.l.b16 %v2554
      %v2573 = vunpack.c.l.b16 %v2555
      %v2574 = vunpack.c.l.b16 %v2556
      %v2575 = vpack.c.b16 %v2567, %v2566
      %v2576 = vpack.c.b16 %v2569, %v2568
      %v2577 = vpack.c.b16 %v2571, %v2570
      %v2578 = vpack.c.b16 %v2573, %v2572
      %v2579 = vpack.c.b16 %v2574, %v2574
      %v2581 = vsel %vm2068, %v2575, 0
      %v2584 = vsel %vm2068, %v2576, 0
      %v2587 = vsel %vm2068, %v2577, 0
      %v2590 = vsel %vm2068, %v2578, 0
      %v2593 = vsel %vm2068, %v2579, 0
      %v2596 = vsel %vm2084, %v2546, 0
      %v2599 = vsel %vm2084, %v2547, 0
      %2601 = vmatpush.bf16.msra.mxu0 0
      %2602 = vmatpush.bf16.msra.mxu0 0
      %2603 = vmatpush.bf16.msra.mxu0 0
      %2604 = vmatpush.bf16.msra.mxu0 0
      %2605 = vmatpush.bf16.msra.mxu0 0
      %2606 = vmatpush.bf16.msra.mxu0 0
      %2607 = vmatpush.bf16.msra.mxu0 0
      %2608 = vmatpush.bf16.msra.mxu0 %v2596
      %2609 = vmatmul.bf16.gmra.mxu0 %v2581
      %v2610 = vpop.f32.mrf.mxu0
      %v2611 = vadd.f32 0.0, %v2610
      %v2612 = vpop.f32.mrf.mxu0
      %v2613 = vadd.f32 0.0, %v2612
      %2614 = vmatmul.bf16.gmra.mxu0 %v2584
      %v2615 = vpop.f32.mrf.mxu0
      %v2616 = vadd.f32 0.0, %v2615
      %v2617 = vpop.f32.mrf.mxu0
      %v2618 = vadd.f32 0.0, %v2617
      %2619 = vmatmul.bf16.gmra.mxu0 %v2587
      %v2620 = vpop.f32.mrf.mxu0
      %v2621 = vadd.f32 0.0, %v2620
      %v2622 = vpop.f32.mrf.mxu0
      %v2623 = vadd.f32 0.0, %v2622
      %2624 = vmatmul.bf16.gmra.mxu0 %v2590
      %v2625 = vpop.f32.mrf.mxu0
      %v2626 = vadd.f32 0.0, %v2625
      %v2627 = vpop.f32.mrf.mxu0
      %v2628 = vadd.f32 0.0, %v2627
      %2629 = vmatmul.bf16.gmra.mxu0 %v2593
      %v2630 = vpop.f32.mrf.mxu0
      %v2631 = vadd.f32 0.0, %v2630
      %v2632 = vpop.f32.mrf.mxu0
      %2633 = vdwg.mxu0
      %2634 = vmatpush.bf16.msra.mxu0 0
      %2635 = vmatpush.bf16.msra.mxu0 0
      %2636 = vmatpush.bf16.msra.mxu0 0
      %2637 = vmatpush.bf16.msra.mxu0 0
      %2638 = vmatpush.bf16.msra.mxu0 0
      %2639 = vmatpush.bf16.msra.mxu0 0
      %2640 = vmatpush.bf16.msra.mxu0 0
      %2641 = vmatpush.bf16.msra.mxu0 %v2599
      %2642 = vmatmul.bf16.gmra.mxu0 %v2581
      %v2643 = vpop.f32.mrf.mxu0
      %v2644 = vadd.f32 0.0, %v2643
      %v2645 = vpop.f32.mrf.mxu0
      %v2646 = vadd.f32 0.0, %v2645
      %2647 = vmatmul.bf16.gmra.mxu0 %v2584
      %v2648 = vpop.f32.mrf.mxu0
      %v2649 = vadd.f32 0.0, %v2648
      %v2650 = vpop.f32.mrf.mxu0
      %v2651 = vadd.f32 0.0, %v2650
      %2652 = vmatmul.bf16.gmra.mxu0 %v2587
      %v2653 = vpop.f32.mrf.mxu0
      %v2654 = vadd.f32 0.0, %v2653
      %v2655 = vpop.f32.mrf.mxu0
      %v2656 = vadd.f32 0.0, %v2655
      %2657 = vmatmul.bf16.gmra.mxu0 %v2590
      %v2658 = vpop.f32.mrf.mxu0
      %v2659 = vadd.f32 0.0, %v2658
      %v2660 = vpop.f32.mrf.mxu0
      %v2661 = vadd.f32 0.0, %v2660
      %2662 = vmatmul.bf16.gmra.mxu0 %v2593
      %v2663 = vpop.f32.mrf.mxu0
      %v2664 = vadd.f32 0.0, %v2663
      %v2665 = vpop.f32.mrf.mxu0
      %2666 = vdwg.mxu0
      %2667 = vrot.lane.b32.xlu0 %v2611, 17
      %v2668 = vpop.permute.xlu0 %2667
      %2669 = vrot.lane.b32.xlu0 %v2644, 17
      %v2670 = vpop.permute.xlu0 %2669
      %v2671 = vsel %vm1434, %v2668, %v2670
      %v2672 = vsel %vm1434, %v2670, %v2668
      %v2673 = vmul.f32 %v2672, %v1439
      %v2674 = vmul.f32 %v2671, %v1440
      %v2675 = vadd.f32 %v2621, %v2673
      %v2676 = vadd.f32 %v2654, %v2674
      %2677 = vrot.lane.b32.xlu0 %v2613, 16
      %v2678 = vpop.permute.xlu0 %2677
      %2679 = vrot.lane.b32.xlu0 %v2646, 16
      %v2680 = vpop.permute.xlu0 %2679
      %v2681 = vsel %vm1474, %v2678, %v2680
      %v2682 = vsel %vm1474, %v2680, %v2678
      %v2683 = vmul.f32 %v2682, %v1479
      %v2684 = vmul.f32 %v2681, %v1480
      %v2685 = vadd.f32 %v2675, %v2683
      %v2686 = vadd.f32 %v2676, %v2684
      %2687 = vrot.lane.b32.xlu0 %v2616, 15
      %v2688 = vpop.permute.xlu0 %2687
      %2689 = vrot.lane.b32.xlu0 %v2649, 15
      %v2690 = vpop.permute.xlu0 %2689
      %v2691 = vsel %vm1514, %v2688, %v2690
      %v2692 = vsel %vm1514, %v2690, %v2688
      %v2693 = vmul.f32 %v2692, %v1519
      %v2694 = vmul.f32 %v2691, %v1520
      %v2695 = vadd.f32 %v2685, %v2693
      %v2696 = vadd.f32 %v2686, %v2694
      %2697 = vrot.lane.b32.xlu0 %v2618, 1
      %v2698 = vpop.permute.xlu0 %2697
      %2699 = vrot.lane.b32.xlu0 %v2651, 1
      %v2700 = vpop.permute.xlu0 %2699
      %v2701 = vsel %vm1554, %v2698, %v2700
      %v2702 = vsel %vm1554, %v2700, %v2698
      %v2703 = vmul.f32 %v2702, %v1559
      %v2704 = vmul.f32 %v2701, %v1560
      %v2705 = vadd.f32 %v2695, %v2703
      %v2706 = vadd.f32 %v2696, %v2704
      %2707 = vrot.lane.b32.xlu0 %v2623, 127
      %v2708 = vpop.permute.xlu0 %2707
      %2709 = vrot.lane.b32.xlu0 %v2656, 127
      %v2710 = vpop.permute.xlu0 %2709
      %v2711 = vsel %vm1594, %v2708, %v2710
      %v2712 = vsel %vm1594, %v2710, %v2708
      %v2713 = vmul.f32 %v2711, %v1599
      %v2714 = vmul.f32 %v2712, %v1600
      %v2715 = vadd.f32 %v2705, %v2713
      %v2716 = vadd.f32 %v2706, %v2714
      %2717 = vrot.lane.b32.xlu0 %v2626, 113
      %v2718 = vpop.permute.xlu0 %2717
      %2719 = vrot.lane.b32.xlu0 %v2659, 113
      %v2720 = vpop.permute.xlu0 %2719
      %v2721 = vsel %vm1634, %v2718, %v2720
      %v2722 = vsel %vm1634, %v2720, %v2718
      %v2723 = vmul.f32 %v2721, %v1639
      %v2724 = vmul.f32 %v2722, %v1640
      %v2725 = vadd.f32 %v2715, %v2723
      %v2726 = vadd.f32 %v2716, %v2724
      %2727 = vrot.lane.b32.xlu0 %v2628, 112
      %v2728 = vpop.permute.xlu0 %2727
      %2729 = vrot.lane.b32.xlu0 %v2661, 112
      %v2730 = vpop.permute.xlu0 %2729
      %v2731 = vsel %vm1674, %v2728, %v2730
      %v2732 = vsel %vm1674, %v2730, %v2728
      %v2733 = vmul.f32 %v2731, %v1679
      %v2734 = vmul.f32 %v2732, %v1680
      %v2735 = vadd.f32 %v2725, %v2733
      %v2736 = vadd.f32 %v2726, %v2734
      %2737 = vrot.lane.b32.xlu0 %v2631, 111
      %v2738 = vpop.permute.xlu0 %2737
      %2739 = vrot.lane.b32.xlu0 %v2664, 111
      %v2740 = vpop.permute.xlu0 %2739
      %v2741 = vsel %vm1714, %v2738, %v2740
      %v2742 = vsel %vm1714, %v2740, %v2738
      %v2743 = vmul.f32 %v2741, %v1719
      %v2744 = vmul.f32 %v2742, %v1720
      %v2745 = vadd.f32 %v2735, %v2743
      %v2746 = vadd.f32 %v2736, %v2744
      %v2747 = vld [vmem:[%s51] sm:$0xff]
      %v2748 = vld [vmem:[%s51 + $0x8] sm:$0xff]
      %v2749 = vld [vmem:[%s51 + $0x10] sm:$0xff]
      %v2750 = vld [vmem:[%s51 + $0x18] sm:$0xff]
      %2752 = vset.pattern.permute.xlu0 0
      %2753 = vperm.xlu0 %2752, %v2747
      %v2754 = vpop.permute.xlu0 %2753
      %2757 = vset.pattern.permute.xlu0 0
      %2758 = vperm.xlu0 %2757, %v2748
      %v2759 = vpop.permute.xlu0 %2758
      %2762 = vset.pattern.permute.xlu0 0
      %2763 = vperm.xlu0 %2762, %v2749
      %v2764 = vpop.permute.xlu0 %2763
      %2767 = vset.pattern.permute.xlu0 0
      %2768 = vperm.xlu0 %2767, %v2750
      %v2769 = vpop.permute.xlu0 %2768
      %v2771 = vmul.f32 %v1023, %v2754
      %v2772 = vmul.f32 %v1036, %v2754
      %v2773 = vmul.f32 %v2235, %v2759
      %v2774 = vmul.f32 %v2236, %v2759
      %v2775 = vmul.f32 %v2496, %v2764
      %v2776 = vmul.f32 %v2497, %v2764
      %v2777 = vmul.f32 %v2745, %v2769
      %v2778 = vmul.f32 %v2746, %v2769
      %v2779 = vld [vmem:[%s53] sm:$0xff]
      %v2780 = vld [vmem:[%s53 + $0x8] sm:$0xff]
      %v2781 = vld [vmem:[%s53 + $0x10] sm:$0xff]
      %v2782 = vld [vmem:[%s53 + $0x18] sm:$0xff]
      %2784 = vset.pattern.permute.xlu0 0
      %2785 = vperm.xlu0 %2784, %v2779
      %v2786 = vpop.permute.xlu0 %2785
      %2789 = vset.pattern.permute.xlu0 0
      %2790 = vperm.xlu0 %2789, %v2780
      %v2791 = vpop.permute.xlu0 %2790
      %2794 = vset.pattern.permute.xlu0 0
      %2795 = vperm.xlu0 %2794, %v2781
      %v2796 = vpop.permute.xlu0 %2795
      %2799 = vset.pattern.permute.xlu0 0
      %2800 = vperm.xlu0 %2799, %v2782
      %v2801 = vpop.permute.xlu0 %2800
      %v2803 = vadd.f32 %v2771, %v2786
      %v2804 = vadd.f32 %v2772, %v2786
      %v2805 = vadd.f32 %v2773, %v2791
      %v2806 = vadd.f32 %v2774, %v2791
      %v2807 = vadd.f32 %v2775, %v2796
      %v2808 = vadd.f32 %v2776, %v2796
      %v2809 = vadd.f32 %v2777, %v2801
      %v2810 = vadd.f32 %v2778, %v2801
      %v2811 = vmax.f32 %v2803, 0.0
      %v2812 = vmax.f32 %v2804, 0.0
      %v2813 = vmax.f32 %v2805, 0.0
      %v2814 = vmax.f32 %v2806, 0.0
      %v2815 = vmax.f32 %v2807, 0.0
      %v2816 = vmax.f32 %v2808, 0.0
      %v2817 = vmax.f32 %v2809, 0.0
      %v2818 = vmax.f32 %v2810, 0.0
      %v2819 = vpack.c.bf16 %v2813, %v2811
      %v2820 = vpack.c.bf16 %v2814, %v2812
      %v2821 = vpack.c.bf16 %v2817, %v2815
      %v2822 = vpack.c.bf16 %v2818, %v2816
      %v2823 = vld [vmem:[%s57] sm:$0xff]
      %v2824 = vld [vmem:[%s57 + $0x8] sm:$0xff]
      %2826 = vset.pattern.permute.xlu0 0
      %2827 = vperm.xlu0 %2826, %v2823
      %v2828 = vpop.permute.xlu0 %2827
      %2831 = vset.pattern.permute.xlu0 0
      %2832 = vperm.xlu0 %2831, %v2824
      %v2833 = vpop.permute.xlu0 %2832
      %v2835 = vmul.f32 %v960, %v2828
      %v2836 = vmul.f32 %v961, %v2828
      %v2837 = vmul.f32 %v962, %v2833
      %v2838 = vmul.f32 %v963, %v2833
      %v2839 = vld [vmem:[%s59] sm:$0xff]
      %v2840 = vld [vmem:[%s59 + $0x8] sm:$0xff]
      %2842 = vset.pattern.permute.xlu0 0
      %2843 = vperm.xlu0 %2842, %v2839
      %v2844 = vpop.permute.xlu0 %2843
      %2847 = vset.pattern.permute.xlu0 0
      %2848 = vperm.xlu0 %2847, %v2840
      %v2849 = vpop.permute.xlu0 %2848
      %v2851 = vadd.f32 %v2835, %v2844
      %v2852 = vadd.f32 %v2836, %v2844
      %v2853 = vadd.f32 %v2837, %v2849
      %v2854 = vadd.f32 %v2838, %v2849
      %v2855 = vmax.f32 %v2851, 0.0
      %v2856 = vmax.f32 %v2852, 0.0
      %v2857 = vmax.f32 %v2853, 0.0
      %v2858 = vmax.f32 %v2854, 0.0
      %v2859 = vpack.c.bf16 %v2857, %v2855
      %v2860 = vpack.c.bf16 %v2858, %v2856
      %v2861 = vld [vmem:[%s55] sm:$0xf]
      %v2862 = vld [vmem:[%s55 + $0x4] sm:$0xf]
      %v2863 = vld [vmem:[%s61] sm:$0xf]
      %v2864 = vld [vmem:[%s61 + $0x4] sm:$0xf]
      %v2867 = vunpack.c.l.b16 %v2863
      %v2868 = vunpack.c.l.b16 %v2864
      %v2869 = vpack.c.b16 %v2868, %v2867
      %v2871 = vsel %vm1009, %v2869, 0
      %2873 = vmatpush.bf16.msra.mxu0 0
      %2874 = vmatpush.bf16.msra.mxu0 0
      %2875 = vmatpush.bf16.msra.mxu0 0
      %2876 = vmatpush.bf16.msra.mxu0 0
      %2877 = vmatpush.bf16.msra.mxu0 0
      %2878 = vmatpush.bf16.msra.mxu0 0
      %2879 = vmatpush.bf16.msra.mxu0 0
      %2880 = vmatpush.bf16.msra.mxu0 %v2859
      %2881 = vmatmul.bf16.gmra.mxu0 %v2871
      %v2882 = vpop.f32.mrf.mxu0
      %v2883 = vadd.f32 0.0, %v2882
      %v2884 = vpop.f32.mrf.mxu0
      %v2885 = vadd.f32 0.0, %v2884
      %2886 = vdwg.mxu0
      %2887 = vmatpush.bf16.msra.mxu0 0
      %2888 = vmatpush.bf16.msra.mxu0 0
      %2889 = vmatpush.bf16.msra.mxu0 0
      %2890 = vmatpush.bf16.msra.mxu0 0
      %2891 = vmatpush.bf16.msra.mxu0 0
      %2892 = vmatpush.bf16.msra.mxu0 0
      %2893 = vmatpush.bf16.msra.mxu0 0
      %2894 = vmatpush.bf16.msra.mxu0 %v2860
      %2895 = vmatmul.bf16.gmra.mxu0 %v2871
      %v2896 = vpop.f32.mrf.mxu0
      %v2897 = vadd.f32 0.0, %v2896
      %v2898 = vpop.f32.mrf.mxu0
      %v2899 = vadd.f32 0.0, %v2898
      %2900 = vdwg.mxu0
      %v2903 = vunpack.c.l.b16 %v2861
      %v2904 = vunpack.c.l.b16 %v2862
      %v2905 = vpack.c.b16 %v2904, %v2903
      %vm2906 = vcmask 261120
      %v2908 = vsel %vm2906, %v2905, 0
      %2910 = vmatpush.bf16.msra.mxu0 0
      %2911 = vmatpush.bf16.msra.mxu0 0
      %2912 = vmatpush.bf16.msra.mxu0 0
      %2913 = vmatpush.bf16.msra.mxu0 0
      %2914 = vmatpush.bf16.msra.mxu0 0
      %2915 = vmatpush.bf16.msra.mxu0 0
      %2916 = vmatpush.bf16.msra.mxu0 %v2821
      %2917 = vmatpush.bf16.msra.mxu0 %v2819
      %2918 = vmatmul.bf16.gmra.mxu0 %v2908
      %v2919 = vpop.f32.mrf.mxu0
      %v2920 = vadd.f32 %v2883, %v2919
      %v2921 = vpop.f32.mrf.mxu0
      %v2922 = vadd.f32 %v2885, %v2921
      %2923 = vdwg.mxu0
      %2924 = vmatpush.bf16.msra.mxu0 0
      %2925 = vmatpush.bf16.msra.mxu0 0
      %2926 = vmatpush.bf16.msra.mxu0 0
      %2927 = vmatpush.bf16.msra.mxu0 0
      %2928 = vmatpush.bf16.msra.mxu0 0
      %2929 = vmatpush.bf16.msra.mxu0 0
      %2930 = vmatpush.bf16.msra.mxu0 %v2822
      %2931 = vmatpush.bf16.msra.mxu0 %v2820
      %2932 = vmatmul.bf16.gmra.mxu0 %v2908
      %v2933 = vpop.f32.mrf.mxu0
      %v2934 = vadd.f32 %v2897, %v2933
      %v2935 = vpop.f32.mrf.mxu0
      %v2936 = vadd.f32 %v2899, %v2935
      %2937 = vdwg.mxu0
      %2938 = vst [vmem:[%s958] sm:$0xff] %v2920
      %2939 = vst [vmem:[%s958 + $0x8] sm:$0xff] %v2934
      %2940 = vst [vmem:[%s958 + $0x10] sm:$0xff] %v2922
      %2941 = vst [vmem:[%s958 + $0x18] sm:$0xff] %v2936
      %p2942 = scmp.lt.s32.totalorder %s74, 1
      %s2943 = scalar_select %p2942, %s74, 1
      %s2944 = smul.addr %s2943, 4
      %s2945 = smul.addr %s2944, 8
      %s2946 = scalar_lea.vmem %s63, %s2945
      // Predicated region
      $region145: #{down_up_bone_forward.1} parent=143 // pred_check
        %p2947 = pneg %p748
      $region146: #{down_up_bone_forward.1} parent=143 // pred_check_branch
        %2949 = sbr.rel (%p2947) target = $region148
      $region147: #{down_up_bone_forward.1} parent=143 // pred_region
        _
      $region148: #{down_up_bone_forward.1} parent=143 // pred_fallthru
        _
    $region144: #{down_up_bone_forward.1} parent=5 // pred_fallthru
      _
    %p2950 = scmp.le.s32.totalorder 2, %s69
    // Predicated region
    $region149: #{down_up_bone_forward.1} parent=5 // pred_check
      %p2951 = pneg %p2950
    $region150: #{down_up_bone_forward.1} parent=5 // pred_check_branch
      %2953 = sbr.rel (%p2951) target = $region152
    $region151: #{down_up_bone_forward.1} parent=5 // pred_region
      %s2954 = ssub.s32 %s69, 2
      // Predicated region
      $region153: #{down_up_bone_forward.1} parent=151 // pred_check
        %p2955 = pneg %p754
      $region154: #{down_up_bone_forward.1} parent=151 // pred_check_branch
        %2957 = sbr.rel (%p2955) target = $region156
      $region155: #{down_up_bone_forward.1} parent=151 // pred_region
        %p2958 = scmp.lt.s32.totalorder %s75, 1
        %s2959 = scalar_select %p2958, %s75, 1
        %s2960 = smul.addr %s2959, 4
        %s2961 = smul.addr %s2960, 8
        %s2962 = scalar_lea.vmem %s63, %s2961
      $region156: #{down_up_bone_forward.1} parent=151 // pred_fallthru
        _
    $region152: #{down_up_bone_forward.1} parent=5 // pred_fallthru
      _
  $region6: #{down_up_bone_forward.1} parent=0 // loop_footer
    %s73 = sadd.s32 1, %s69
  $region7: #{down_up_bone_forward.1} parent=0 // loop_footer_branch
    %68 = sbr.rel target = $region3
  $region8: #{down_up_bone_forward.1} parent=0 // loop_exit
    _

</llo_original>
